<compile_context>
chip_gen: v7x
topology: tpu7x:2x2x1
jax: 0.10.0
libtpu: 0.0.40
codegen_flags: <defaults>
</compile_context>

<pallas_src>
import functools

import jax
import jax.numpy as jnp
from jax.experimental import pallas as pl
from jax.experimental.pallas import tpu as pltpu

LEAK = 0.2
BN_EPS = 0.8


def _round_up(x, m):
    return ((x + m - 1) // m) * m


def _leaky(x):
    # One VPU op instead of compare+select.
    return jnp.maximum(x, LEAK * x)


def _bn_train(x, gamma, beta):
    """BatchNorm1d, training mode: biased batch variance, eps=0.8.

    Single-pass form: sum(x) and sum(x*x) are independent reductions (can overlap
    on the XLUs); var = E[x^2] - mean^2.
    """
    inv_n = 1.0 / x.shape[0]
    s1 = jnp.sum(x, axis=0, keepdims=True)
    s2 = jnp.sum(x * x, axis=0, keepdims=True)
    mean = s1 * inv_n
    var = s2 * inv_n - mean * mean
    return (x - mean) * jax.lax.rsqrt(var + BN_EPS) * gamma + beta


def _mxu_dot(x, w):
    # bf16 MXU inputs, f32 accumulation.
    return jnp.dot(x.astype(jnp.bfloat16), w, preferred_element_type=jnp.float32)


def wgan_div_kernel(z_ref,
                    gw1, gb1,
                    gw2, gb2, gn2_g, gn2_b,
                    gw3, gb3, gn3_g, gn3_b,
                    gw4, gb4, gn4_g, gn4_b,
                    gw5, gb5,
                    dw1, db1, dw2, db2, dw3v, db3,
                    out_ref, *, val_lane):
    z = z_ref[...]                                                        # (B, L) f32

    # ---- Generator ----
    h = _leaky(_mxu_dot(z, gw1[...]) + gb1[...])                          # (B, 128)
    h = _leaky(_bn_train(_mxu_dot(h, gw2[...]) + gb2[...],
                         gn2_g[...], gn2_b[...]))                         # (B, 256)
    h = _leaky(_bn_train(_mxu_dot(h, gw3[...]) + gb3[...],
                         gn3_g[...], gn3_b[...]))                         # (B, 512)
    h = _leaky(_bn_train(_mxu_dot(h, gw4[...]) + gb4[...],
                         gn4_g[...], gn4_b[...]))                         # (B, 1024)
    gen = _mxu_dot(h, gw5[...]) + gb5[...]                                # (B, OUT_PAD); pad lanes == 0

    # ---- Discriminator on generated data ----
    d = _leaky(_mxu_dot(gen, dw1[...]) + db1[...])                        # (B, 512)
    d = _leaky(_mxu_dot(d, dw2[...]) + db2[...])                          # (B, 256)
    # N=1 head: VPU multiply + lane (XLU) reduction instead of a 1-column MXU matmul.
    val = jnp.sum(d * dw3v[...], axis=-1, keepdims=True) + db3[...]       # (B, 1)

    # Pack gen (lanes 0..D-1) and validity (lane D) into one lane-dense output slab.
    lane = jax.lax.broadcasted_iota(jnp.int32, out_ref.shape, 1)
    out_ref[...] = jnp.where(lane == val_lane, val, gen)


def prepare_params(params, data_dim):
    """One-time weight preprocessing: pad lane-minor dims to 128 multiples and cast
    matmul weights to bf16. Call once (after init / after each optimizer step) and
    reuse the result across forward calls -- this is deliberately NOT in the forward
    path so per-call HBM traffic is only the bf16 weights themselves."""
    out_pad = _round_up(data_dim + 1, 128)   # room for gen lanes + 1 validity lane
    bf16 = jnp.bfloat16

    def pad2(a, rows, cols):
        return jnp.pad(a, ((0, rows - a.shape[0]), (0, cols - a.shape[1])))

    return {
        "gw1": params["gw1"].astype(bf16), "gb1": params["gb1"],
        "gw2": params["gw2"].astype(bf16), "gb2": params["gb2"],
        "gn2_g": params["gn2_g"], "gn2_b": params["gn2_b"],
        "gw3": params["gw3"].astype(bf16), "gb3": params["gb3"],
        "gn3_g": params["gn3_g"], "gn3_b": params["gn3_b"],
        "gw4": params["gw4"].astype(bf16), "gb4": params["gb4"],
        "gn4_g": params["gn4_g"], "gn4_b": params["gn4_b"],
        # Pad output columns so gen + validity share one lane-dense 128-multiple slab.
        "gw5": pad2(params["gw5"], 1024, out_pad).astype(bf16),
        "gb5": pad2(params["gb5"], 1, out_pad),
        # Pad dw1 rows with zeros so the zero gen pad lanes cannot contaminate D.
        "dw1": pad2(params["dw1"], out_pad, 512).astype(bf16),
        "db1": params["db1"],
        "dw2": params["dw2"].astype(bf16), "db2": params["db2"],
        "dw3": params["dw3"].reshape(1, 256).astype(jnp.float32),  # row vec for lane reduce
        "db3": params["db3"],
    }


@functools.partial(jax.jit, static_argnums=(2,))
def wgan_div_forward(z, prep, data_dim):
    """Runs G(z) and D(G(z)) in a single fused Pallas kernel. Returns (gen, val).

    `prep` must come from prepare_params(); all per-call work is the kernel itself
    plus two cheap output slices."""
    B = z.shape[0]
    out_pad = prep["gw5"].shape[1]

    # All weights / params are small (~2 MiB bf16 total): make everything
    # BlockSpec/VMEM-resident and let the Pallas pipeline do the (single) DMA per
    # input -- no manual streaming, no extra semaphores/waits.
    vmem_inputs = [
        z,
        prep["gw1"], prep["gb1"],
        prep["gw2"], prep["gb2"], prep["gn2_g"], prep["gn2_b"],
        prep["gw3"], prep["gb3"], prep["gn3_g"], prep["gn3_b"],
        prep["gw4"], prep["gb4"], prep["gn4_g"], prep["gn4_b"],
        prep["gw5"], prep["gb5"],
        prep["dw1"], prep["db1"], prep["dw2"], prep["db2"],
        prep["dw3"], prep["db3"],
    ]

    def full_spec(a):
        nd = a.ndim
        return pl.BlockSpec(a.shape, lambda i, nd=nd: (0,) * nd)

    kernel = functools.partial(wgan_div_kernel, val_lane=data_dim)

    slab = pl.pallas_call(
        kernel,
        out_shape=jax.ShapeDtypeStruct((B, out_pad), jnp.float32),
        grid=(1,),
        in_specs=[full_spec(a) for a in vmem_inputs],
        out_specs=pl.BlockSpec((B, out_pad), lambda i: (0, 0)),
        compiler_params=pltpu.CompilerParams(
            dimension_semantics=("arbitrary",),
            # Guard for v5e's smaller default scoped VMEM; trivially enough on all gens
            # (total resident inputs ~2.3 MiB, double-buffered ~4.6 MiB).
            vmem_limit_bytes=32 * 1024 * 1024,
        ),
    )(*vmem_inputs)

    gen = slab[:, :data_dim]
    val = slab[:, data_dim:data_dim + 1]
    return gen, val


def init_params(key, latent_dim, data_dim):
    """Deterministic PyTorch-default-style init (U(-1/sqrt(fan_in), 1/sqrt(fan_in)))."""
    params = {}

    def linear(k, fan_in, fan_out):
        k1, k2 = jax.random.split(k)
        bound = 1.0 / float(fan_in) ** 0.5
        w = jax.random.uniform(k1, (fan_in, fan_out), jnp.float32, -bound, bound)
        b = jax.random.uniform(k2, (1, fan_out), jnp.float32, -bound, bound)
        return w, b

    keys = jax.random.split(key, 8)
    params["gw1"], params["gb1"] = linear(keys[0], latent_dim, 128)
    params["gw2"], params["gb2"] = linear(keys[1], 128, 256)
    params["gw3"], params["gb3"] = linear(keys[2], 256, 512)
    params["gw4"], params["gb4"] = linear(keys[3], 512, 1024)
    params["gw5"], params["gb5"] = linear(keys[4], 1024, data_dim)
    for name, n in (("gn2", 256), ("gn3", 512), ("gn4", 1024)):
        params[name + "_g"] = jnp.ones((1, n), jnp.float32)
        params[name + "_b"] = jnp.zeros((1, n), jnp.float32)
    params["dw1"], params["db1"] = linear(keys[5], data_dim, 512)
    params["dw2"], params["db2"] = linear(keys[6], 512, 256)
    params["dw3"], params["db3"] = linear(keys[7], 256, 1)
    return params


def reference_forward(z, p):
    """Pure-JAX full-f32 reference (PyTorch semantics)."""
    h = _leaky(z @ p["gw1"] + p["gb1"])
    h = _leaky(_bn_train(h @ p["gw2"] + p["gb2"], p["gn2_g"], p["gn2_b"]))
    h = _leaky(_bn_train(h @ p["gw3"] + p["gb3"], p["gn3_g"], p["gn3_b"]))
    h = _leaky(_bn_train(h @ p["gw4"] + p["gb4"], p["gn4_g"], p["gn4_b"]))
    gen = h @ p["gw5"] + p["gb5"]
    d = _leaky(gen @ p["dw1"] + p["db1"])
    d = _leaky(d @ p["dw2"] + p["db2"])
    val = d @ p["dw3"] + p["db3"]
    return gen, val


def reference_forward_mixed(z, p):
    """Pure-JAX reference using the same bf16-weight / f32-accumulate recipe as the kernel."""
    def dot(x, w):
        return jnp.dot(x.astype(jnp.bfloat16), w.astype(jnp.bfloat16),
                       preferred_element_type=jnp.float32)
    h = _leaky(dot(z, p["gw1"]) + p["gb1"])
    h = _leaky(_bn_train(dot(h, p["gw2"]) + p["gb2"], p["gn2_g"], p["gn2_b"]))
    h = _leaky(_bn_train(dot(h, p["gw3"]) + p["gb3"], p["gn3_g"], p["gn3_b"]))
    h = _leaky(_bn_train(dot(h, p["gw4"]) + p["gb4"], p["gn4_g"], p["gn4_b"]))
    gen = dot(h, p["gw5"]) + p["gb5"]
    d = _leaky(dot(gen, p["dw1"]) + p["db1"])
    d = _leaky(dot(d, p["dw2"]) + p["db2"])
    val = d @ p["dw3"] + p["db3"]          # head stays f32 in the kernel too
    return gen, val


if __name__ == "__main__":
    B = 8           # batch size (full batch in one call: BN needs whole-batch stats)
    DATA_DIM = 32   # total_dim == latent_dim (latent_dim=None branch)
    LATENT = DATA_DIM

    key = jax.random.PRNGKey(0)
    k_param, k_noise = jax.random.split(key)
    params = init_params(k_param, LATENT, DATA_DIM)
    z = jax.random.normal(k_noise, (B, LATENT), jnp.float32)

    # One-time weight prep (hoisted out of the per-call forward path).
    prep = prepare_params(params, DATA_DIM)
    prep = jax.tree_util.tree_map(jax.block_until_ready, prep)

    gen, val = wgan_div_forward(z, prep, DATA_DIM)
    gen, val = jax.block_until_ready((gen, val))

    gen_mx, val_mx = reference_forward_mixed(z, params)
    gen_f32, val_f32 = reference_forward(z, params)

    assert gen.shape == (B, DATA_DIM) and val.shape == (B, 1)
    # Tight: kernel matches a pure-JAX model of the identical bf16 mixed precision.
    assert jnp.allclose(gen, gen_mx, rtol=1e-2, atol=2e-3)
    assert jnp.allclose(val, val_mx, rtol=1e-2, atol=2e-3)
    # Loose: still close to the original full-f32 PyTorch semantics.
    assert jnp.allclose(gen, gen_f32, rtol=5e-2, atol=5e-2)
    assert jnp.allclose(val, val_f32, rtol=5e-2, atol=5e-2)

    print("KERNEL_OK")
</pallas_src>

<mosaic_0001>
module attributes {stable_mosaic.version = 11 : i64} {
  func.func @wgan_div_kernel(%arg0: i32, %arg1: memref<8x32xf32, #tpu.memory_space<vmem>>, %arg2: memref<32x128xbf16, #tpu.memory_space<vmem>>, %arg3: memref<1x128xf32, #tpu.memory_space<vmem>>, %arg4: memref<128x256xbf16, #tpu.memory_space<vmem>>, %arg5: memref<1x256xf32, #tpu.memory_space<vmem>>, %arg6: memref<1x256xf32, #tpu.memory_space<vmem>>, %arg7: memref<1x256xf32, #tpu.memory_space<vmem>>, %arg8: memref<256x512xbf16, #tpu.memory_space<vmem>>, %arg9: memref<1x512xf32, #tpu.memory_space<vmem>>, %arg10: memref<1x512xf32, #tpu.memory_space<vmem>>, %arg11: memref<1x512xf32, #tpu.memory_space<vmem>>, %arg12: memref<512x1024xbf16, #tpu.memory_space<vmem>>, %arg13: memref<1x1024xf32, #tpu.memory_space<vmem>>, %arg14: memref<1x1024xf32, #tpu.memory_space<vmem>>, %arg15: memref<1x1024xf32, #tpu.memory_space<vmem>>, %arg16: memref<1024x128xbf16, #tpu.memory_space<vmem>>, %arg17: memref<1x128xf32, #tpu.memory_space<vmem>>, %arg18: memref<128x512xbf16, #tpu.memory_space<vmem>>, %arg19: memref<1x512xf32, #tpu.memory_space<vmem>>, %arg20: memref<512x256xbf16, #tpu.memory_space<vmem>>, %arg21: memref<1x256xf32, #tpu.memory_space<vmem>>, %arg22: memref<1x256xf32, #tpu.memory_space<vmem>>, %arg23: memref<1x1xf32, #tpu.memory_space<vmem>>, %arg24: memref<8x128xf32, #tpu.memory_space<vmem>>) attributes {dimension_semantics = [#tpu.dimension_semantics<arbitrary>], iteration_bounds = array<i64: 1>, scalar_prefetch = 0 : i64, scratch_operands = 0 : i64, tpu.core_type = #tpu.core_type<tc>, window_params = [{pipeline_mode = #tpu.pipeline_mode<synchronous>, transform_indices = @transform_0, window_bounds = array<i64: 8, 32>}, {pipeline_mode = #tpu.pipeline_mode<synchronous>, transform_indices = @transform_1, window_bounds = array<i64: 32, 128>}, {pipeline_mode = #tpu.pipeline_mode<synchronous>, transform_indices = @transform_2, window_bounds = array<i64: 1, 128>}, {pipeline_mode = #tpu.pipeline_mode<synchronous>, transform_indices = @transform_3, window_bounds = array<i64: 128, 256>}, {pipeline_mode = #tpu.pipeline_mode<synchronous>, transform_indices = @transform_4, window_bounds = array<i64: 1, 256>}, {pipeline_mode = #tpu.pipeline_mode<synchronous>, transform_indices = @transform_5, window_bounds = array<i64: 1, 256>}, {pipeline_mode = #tpu.pipeline_mode<synchronous>, transform_indices = @transform_6, window_bounds = array<i64: 1, 256>}, {pipeline_mode = #tpu.pipeline_mode<synchronous>, transform_indices = @transform_7, window_bounds = array<i64: 256, 512>}, {pipeline_mode = #tpu.pipeline_mode<synchronous>, transform_indices = @transform_8, window_bounds = array<i64: 1, 512>}, {pipeline_mode = #tpu.pipeline_mode<synchronous>, transform_indices = @transform_9, window_bounds = array<i64: 1, 512>}, {pipeline_mode = #tpu.pipeline_mode<synchronous>, transform_indices = @transform_10, window_bounds = array<i64: 1, 512>}, {pipeline_mode = #tpu.pipeline_mode<synchronous>, transform_indices = @transform_11, window_bounds = array<i64: 512, 1024>}, {pipeline_mode = #tpu.pipeline_mode<synchronous>, transform_indices = @transform_12, window_bounds = array<i64: 1, 1024>}, {pipeline_mode = #tpu.pipeline_mode<synchronous>, transform_indices = @transform_13, window_bounds = array<i64: 1, 1024>}, {pipeline_mode = #tpu.pipeline_mode<synchronous>, transform_indices = @transform_14, window_bounds = array<i64: 1, 1024>}, {pipeline_mode = #tpu.pipeline_mode<synchronous>, transform_indices = @transform_15, window_bounds = array<i64: 1024, 128>}, {pipeline_mode = #tpu.pipeline_mode<synchronous>, transform_indices = @transform_16, window_bounds = array<i64: 1, 128>}, {pipeline_mode = #tpu.pipeline_mode<synchronous>, transform_indices = @transform_17, window_bounds = array<i64: 128, 512>}, {pipeline_mode = #tpu.pipeline_mode<synchronous>, transform_indices = @transform_18, window_bounds = array<i64: 1, 512>}, {pipeline_mode = #tpu.pipeline_mode<synchronous>, transform_indices = @transform_19, window_bounds = array<i64: 512, 256>}, {pipeline_mode = #tpu.pipeline_mode<synchronous>, transform_indices = @transform_20, window_bounds = array<i64: 1, 256>}, {pipeline_mode = #tpu.pipeline_mode<synchronous>, transform_indices = @transform_21, window_bounds = array<i64: 1, 256>}, {pipeline_mode = #tpu.pipeline_mode<synchronous>, transform_indices = @transform_22, window_bounds = array<i64: 1, 1>}, {pipeline_mode = #tpu.pipeline_mode<synchronous>, transform_indices = @transform_23, window_bounds = array<i64: 8, 128>}]} {
    %c0 = arith.constant 0 : index
    %c0_0 = arith.constant 0 : index
    %0 = vector.load %arg1[%c0, %c0_0] : memref<8x32xf32, #tpu.memory_space<vmem>>, vector<8x32xf32>
    %c0_1 = arith.constant 0 : index
    %c0_2 = arith.constant 0 : index
    %1 = vector.load %arg2[%c0_1, %c0_2] : memref<32x128xbf16, #tpu.memory_space<vmem>>, vector<32x128xbf16>
    %2 = arith.truncf %0 : vector<8x32xf32> to vector<8x32xbf16>
    %cst = arith.constant dense<0.000000e+00> : vector<8x128xf32>
    %3 = tpu.matmul %2, %1, %cst {dimension_numbers = #tpu.dot_dimension_numbers<[1], [0], [0], [1], [0, 0, 1, 1], [], []>} : vector<8x32xbf16>, vector<32x128xbf16>, vector<8x128xf32> -> vector<8x128xf32>
    %c0_3 = arith.constant 0 : index
    %c0_4 = arith.constant 0 : index
    %4 = vector.load %arg3[%c0_3, %c0_4] : memref<1x128xf32, #tpu.memory_space<vmem>>, vector<1x128xf32>
    %5 = vector.broadcast %4 : vector<1x128xf32> to vector<8x128xf32>
    %6 = arith.addf %3, %5 : vector<8x128xf32>
    %cst_5 = arith.constant 2.000000e-01 : f32
    %7 = vector.broadcast %cst_5 : f32 to vector<8x128xf32>
    %8 = arith.mulf %7, %6 : vector<8x128xf32>
    %9 = arith.maximumf %6, %8 : vector<8x128xf32>
    %c0_6 = arith.constant 0 : index
    %c0_7 = arith.constant 0 : index
    %10 = vector.load %arg4[%c0_6, %c0_7] : memref<128x256xbf16, #tpu.memory_space<vmem>>, vector<128x256xbf16>
    %11 = arith.truncf %9 : vector<8x128xf32> to vector<8x128xbf16>
    %cst_8 = arith.constant dense<0.000000e+00> : vector<8x256xf32>
    %12 = tpu.matmul %11, %10, %cst_8 {dimension_numbers = #tpu.dot_dimension_numbers<[1], [0], [0], [1], [0, 0, 1, 1], [], []>} : vector<8x128xbf16>, vector<128x256xbf16>, vector<8x256xf32> -> vector<8x256xf32>
    %c0_9 = arith.constant 0 : index
    %c0_10 = arith.constant 0 : index
    %13 = vector.load %arg5[%c0_9, %c0_10] : memref<1x256xf32, #tpu.memory_space<vmem>>, vector<1x256xf32>
    %14 = vector.broadcast %13 : vector<1x256xf32> to vector<8x256xf32>
    %15 = arith.addf %12, %14 : vector<8x256xf32>
    %c0_11 = arith.constant 0 : index
    %c0_12 = arith.constant 0 : index
    %16 = vector.load %arg6[%c0_11, %c0_12] : memref<1x256xf32, #tpu.memory_space<vmem>>, vector<1x256xf32>
    %c0_13 = arith.constant 0 : index
    %c0_14 = arith.constant 0 : index
    %17 = vector.load %arg7[%c0_13, %c0_14] : memref<1x256xf32, #tpu.memory_space<vmem>>, vector<1x256xf32>
    %cst_15 = arith.constant dense<0.000000e+00> : vector<256xf32>
    %18 = vector.multi_reduction <add>, %15, %cst_15 [0] : vector<8x256xf32> to vector<256xf32>
    %19 = vector.shape_cast %18 : vector<256xf32> to vector<1x256xf32>
    %20 = arith.mulf %15, %15 : vector<8x256xf32>
    %cst_16 = arith.constant dense<0.000000e+00> : vector<256xf32>
    %21 = vector.multi_reduction <add>, %20, %cst_16 [0] : vector<8x256xf32> to vector<256xf32>
    %22 = vector.shape_cast %21 : vector<256xf32> to vector<1x256xf32>
    %cst_17 = arith.constant 1.250000e-01 : f32
    %23 = vector.broadcast %cst_17 : f32 to vector<1x256xf32>
    %24 = arith.mulf %19, %23 : vector<1x256xf32>
    %cst_18 = arith.constant 1.250000e-01 : f32
    %25 = vector.broadcast %cst_18 : f32 to vector<1x256xf32>
    %26 = arith.mulf %22, %25 : vector<1x256xf32>
    %27 = arith.mulf %24, %24 : vector<1x256xf32>
    %28 = arith.subf %26, %27 : vector<1x256xf32>
    %29 = vector.broadcast %24 : vector<1x256xf32> to vector<8x256xf32>
    %30 = arith.subf %15, %29 : vector<8x256xf32>
    %cst_19 = arith.constant 8.000000e-01 : f32
    %31 = vector.broadcast %cst_19 : f32 to vector<1x256xf32>
    %32 = arith.addf %28, %31 : vector<1x256xf32>
    %33 = math.rsqrt %32 : vector<1x256xf32>
    %34 = vector.broadcast %33 : vector<1x256xf32> to vector<8x256xf32>
    %35 = arith.mulf %30, %34 : vector<8x256xf32>
    %36 = vector.broadcast %16 : vector<1x256xf32> to vector<8x256xf32>
    %37 = arith.mulf %35, %36 : vector<8x256xf32>
    %38 = vector.broadcast %17 : vector<1x256xf32> to vector<8x256xf32>
    %39 = arith.addf %37, %38 : vector<8x256xf32>
    %cst_20 = arith.constant 2.000000e-01 : f32
    %40 = vector.broadcast %cst_20 : f32 to vector<8x256xf32>
    %41 = arith.mulf %40, %39 : vector<8x256xf32>
    %42 = arith.maximumf %39, %41 : vector<8x256xf32>
    %c0_21 = arith.constant 0 : index
    %c0_22 = arith.constant 0 : index
    %43 = vector.load %arg8[%c0_21, %c0_22] : memref<256x512xbf16, #tpu.memory_space<vmem>>, vector<256x512xbf16>
    %44 = arith.truncf %42 : vector<8x256xf32> to vector<8x256xbf16>
    %cst_23 = arith.constant dense<0.000000e+00> : vector<8x512xf32>
    %45 = tpu.matmul %44, %43, %cst_23 {dimension_numbers = #tpu.dot_dimension_numbers<[1], [0], [0], [1], [0, 0, 1, 1], [], []>} : vector<8x256xbf16>, vector<256x512xbf16>, vector<8x512xf32> -> vector<8x512xf32>
    %c0_24 = arith.constant 0 : index
    %c0_25 = arith.constant 0 : index
    %46 = vector.load %arg9[%c0_24, %c0_25] : memref<1x512xf32, #tpu.memory_space<vmem>>, vector<1x512xf32>
    %47 = vector.broadcast %46 : vector<1x512xf32> to vector<8x512xf32>
    %48 = arith.addf %45, %47 : vector<8x512xf32>
    %c0_26 = arith.constant 0 : index
    %c0_27 = arith.constant 0 : index
    %49 = vector.load %arg10[%c0_26, %c0_27] : memref<1x512xf32, #tpu.memory_space<vmem>>, vector<1x512xf32>
    %c0_28 = arith.constant 0 : index
    %c0_29 = arith.constant 0 : index
    %50 = vector.load %arg11[%c0_28, %c0_29] : memref<1x512xf32, #tpu.memory_space<vmem>>, vector<1x512xf32>
    %cst_30 = arith.constant dense<0.000000e+00> : vector<512xf32>
    %51 = vector.multi_reduction <add>, %48, %cst_30 [0] : vector<8x512xf32> to vector<512xf32>
    %52 = vector.shape_cast %51 : vector<512xf32> to vector<1x512xf32>
    %53 = arith.mulf %48, %48 : vector<8x512xf32>
    %cst_31 = arith.constant dense<0.000000e+00> : vector<512xf32>
    %54 = vector.multi_reduction <add>, %53, %cst_31 [0] : vector<8x512xf32> to vector<512xf32>
    %55 = vector.shape_cast %54 : vector<512xf32> to vector<1x512xf32>
    %cst_32 = arith.constant 1.250000e-01 : f32
    %56 = vector.broadcast %cst_32 : f32 to vector<1x512xf32>
    %57 = arith.mulf %52, %56 : vector<1x512xf32>
    %cst_33 = arith.constant 1.250000e-01 : f32
    %58 = vector.broadcast %cst_33 : f32 to vector<1x512xf32>
    %59 = arith.mulf %55, %58 : vector<1x512xf32>
    %60 = arith.mulf %57, %57 : vector<1x512xf32>
    %61 = arith.subf %59, %60 : vector<1x512xf32>
    %62 = vector.broadcast %57 : vector<1x512xf32> to vector<8x512xf32>
    %63 = arith.subf %48, %62 : vector<8x512xf32>
    %cst_34 = arith.constant 8.000000e-01 : f32
    %64 = vector.broadcast %cst_34 : f32 to vector<1x512xf32>
    %65 = arith.addf %61, %64 : vector<1x512xf32>
    %66 = math.rsqrt %65 : vector<1x512xf32>
    %67 = vector.broadcast %66 : vector<1x512xf32> to vector<8x512xf32>
    %68 = arith.mulf %63, %67 : vector<8x512xf32>
    %69 = vector.broadcast %49 : vector<1x512xf32> to vector<8x512xf32>
    %70 = arith.mulf %68, %69 : vector<8x512xf32>
    %71 = vector.broadcast %50 : vector<1x512xf32> to vector<8x512xf32>
    %72 = arith.addf %70, %71 : vector<8x512xf32>
    %cst_35 = arith.constant 2.000000e-01 : f32
    %73 = vector.broadcast %cst_35 : f32 to vector<8x512xf32>
    %74 = arith.mulf %73, %72 : vector<8x512xf32>
    %75 = arith.maximumf %72, %74 : vector<8x512xf32>
    %c0_36 = arith.constant 0 : index
    %c0_37 = arith.constant 0 : index
    %76 = vector.load %arg12[%c0_36, %c0_37] : memref<512x1024xbf16, #tpu.memory_space<vmem>>, vector<512x1024xbf16>
    %77 = arith.truncf %75 : vector<8x512xf32> to vector<8x512xbf16>
    %cst_38 = arith.constant dense<0.000000e+00> : vector<8x1024xf32>
    %78 = tpu.matmul %77, %76, %cst_38 {dimension_numbers = #tpu.dot_dimension_numbers<[1], [0], [0], [1], [0, 0, 1, 1], [], []>} : vector<8x512xbf16>, vector<512x1024xbf16>, vector<8x1024xf32> -> vector<8x1024xf32>
    %c0_39 = arith.constant 0 : index
    %c0_40 = arith.constant 0 : index
    %79 = vector.load %arg13[%c0_39, %c0_40] : memref<1x1024xf32, #tpu.memory_space<vmem>>, vector<1x1024xf32>
    %80 = vector.broadcast %79 : vector<1x1024xf32> to vector<8x1024xf32>
    %81 = arith.addf %78, %80 : vector<8x1024xf32>
    %c0_41 = arith.constant 0 : index
    %c0_42 = arith.constant 0 : index
    %82 = vector.load %arg14[%c0_41, %c0_42] : memref<1x1024xf32, #tpu.memory_space<vmem>>, vector<1x1024xf32>
    %c0_43 = arith.constant 0 : index
    %c0_44 = arith.constant 0 : index
    %83 = vector.load %arg15[%c0_43, %c0_44] : memref<1x1024xf32, #tpu.memory_space<vmem>>, vector<1x1024xf32>
    %cst_45 = arith.constant dense<0.000000e+00> : vector<1024xf32>
    %84 = vector.multi_reduction <add>, %81, %cst_45 [0] : vector<8x1024xf32> to vector<1024xf32>
    %85 = vector.shape_cast %84 : vector<1024xf32> to vector<1x1024xf32>
    %86 = arith.mulf %81, %81 : vector<8x1024xf32>
    %cst_46 = arith.constant dense<0.000000e+00> : vector<1024xf32>
    %87 = vector.multi_reduction <add>, %86, %cst_46 [0] : vector<8x1024xf32> to vector<1024xf32>
    %88 = vector.shape_cast %87 : vector<1024xf32> to vector<1x1024xf32>
    %cst_47 = arith.constant 1.250000e-01 : f32
    %89 = vector.broadcast %cst_47 : f32 to vector<1x1024xf32>
    %90 = arith.mulf %85, %89 : vector<1x1024xf32>
    %cst_48 = arith.constant 1.250000e-01 : f32
    %91 = vector.broadcast %cst_48 : f32 to vector<1x1024xf32>
    %92 = arith.mulf %88, %91 : vector<1x1024xf32>
    %93 = arith.mulf %90, %90 : vector<1x1024xf32>
    %94 = arith.subf %92, %93 : vector<1x1024xf32>
    %95 = vector.broadcast %90 : vector<1x1024xf32> to vector<8x1024xf32>
    %96 = arith.subf %81, %95 : vector<8x1024xf32>
    %cst_49 = arith.constant 8.000000e-01 : f32
    %97 = vector.broadcast %cst_49 : f32 to vector<1x1024xf32>
    %98 = arith.addf %94, %97 : vector<1x1024xf32>
    %99 = math.rsqrt %98 : vector<1x1024xf32>
    %100 = vector.broadcast %99 : vector<1x1024xf32> to vector<8x1024xf32>
    %101 = arith.mulf %96, %100 : vector<8x1024xf32>
    %102 = vector.broadcast %82 : vector<1x1024xf32> to vector<8x1024xf32>
    %103 = arith.mulf %101, %102 : vector<8x1024xf32>
    %104 = vector.broadcast %83 : vector<1x1024xf32> to vector<8x1024xf32>
    %105 = arith.addf %103, %104 : vector<8x1024xf32>
    %cst_50 = arith.constant 2.000000e-01 : f32
    %106 = vector.broadcast %cst_50 : f32 to vector<8x1024xf32>
    %107 = arith.mulf %106, %105 : vector<8x1024xf32>
    %108 = arith.maximumf %105, %107 : vector<8x1024xf32>
    %c0_51 = arith.constant 0 : index
    %c0_52 = arith.constant 0 : index
    %109 = vector.load %arg16[%c0_51, %c0_52] : memref<1024x128xbf16, #tpu.memory_space<vmem>>, vector<1024x128xbf16>
    %110 = arith.truncf %108 : vector<8x1024xf32> to vector<8x1024xbf16>
    %cst_53 = arith.constant dense<0.000000e+00> : vector<8x128xf32>
    %111 = tpu.matmul %110, %109, %cst_53 {dimension_numbers = #tpu.dot_dimension_numbers<[1], [0], [0], [1], [0, 0, 1, 1], [], []>} : vector<8x1024xbf16>, vector<1024x128xbf16>, vector<8x128xf32> -> vector<8x128xf32>
    %c0_54 = arith.constant 0 : index
    %c0_55 = arith.constant 0 : index
    %112 = vector.load %arg17[%c0_54, %c0_55] : memref<1x128xf32, #tpu.memory_space<vmem>>, vector<1x128xf32>
    %113 = vector.broadcast %112 : vector<1x128xf32> to vector<8x128xf32>
    %114 = arith.addf %111, %113 : vector<8x128xf32>
    %c0_56 = arith.constant 0 : index
    %c0_57 = arith.constant 0 : index
    %115 = vector.load %arg18[%c0_56, %c0_57] : memref<128x512xbf16, #tpu.memory_space<vmem>>, vector<128x512xbf16>
    %116 = arith.truncf %114 : vector<8x128xf32> to vector<8x128xbf16>
    %cst_58 = arith.constant dense<0.000000e+00> : vector<8x512xf32>
    %117 = tpu.matmul %116, %115, %cst_58 {dimension_numbers = #tpu.dot_dimension_numbers<[1], [0], [0], [1], [0, 0, 1, 1], [], []>} : vector<8x128xbf16>, vector<128x512xbf16>, vector<8x512xf32> -> vector<8x512xf32>
    %c0_59 = arith.constant 0 : index
    %c0_60 = arith.constant 0 : index
    %118 = vector.load %arg19[%c0_59, %c0_60] : memref<1x512xf32, #tpu.memory_space<vmem>>, vector<1x512xf32>
    %119 = vector.broadcast %118 : vector<1x512xf32> to vector<8x512xf32>
    %120 = arith.addf %117, %119 : vector<8x512xf32>
    %cst_61 = arith.constant 2.000000e-01 : f32
    %121 = vector.broadcast %cst_61 : f32 to vector<8x512xf32>
    %122 = arith.mulf %121, %120 : vector<8x512xf32>
    %123 = arith.maximumf %120, %122 : vector<8x512xf32>
    %c0_62 = arith.constant 0 : index
    %c0_63 = arith.constant 0 : index
    %124 = vector.load %arg20[%c0_62, %c0_63] : memref<512x256xbf16, #tpu.memory_space<vmem>>, vector<512x256xbf16>
    %125 = arith.truncf %123 : vector<8x512xf32> to vector<8x512xbf16>
    %cst_64 = arith.constant dense<0.000000e+00> : vector<8x256xf32>
    %126 = tpu.matmul %125, %124, %cst_64 {dimension_numbers = #tpu.dot_dimension_numbers<[1], [0], [0], [1], [0, 0, 1, 1], [], []>} : vector<8x512xbf16>, vector<512x256xbf16>, vector<8x256xf32> -> vector<8x256xf32>
    %c0_65 = arith.constant 0 : index
    %c0_66 = arith.constant 0 : index
    %127 = vector.load %arg21[%c0_65, %c0_66] : memref<1x256xf32, #tpu.memory_space<vmem>>, vector<1x256xf32>
    %128 = vector.broadcast %127 : vector<1x256xf32> to vector<8x256xf32>
    %129 = arith.addf %126, %128 : vector<8x256xf32>
    %cst_67 = arith.constant 2.000000e-01 : f32
    %130 = vector.broadcast %cst_67 : f32 to vector<8x256xf32>
    %131 = arith.mulf %130, %129 : vector<8x256xf32>
    %132 = arith.maximumf %129, %131 : vector<8x256xf32>
    %c0_68 = arith.constant 0 : index
    %c0_69 = arith.constant 0 : index
    %133 = vector.load %arg22[%c0_68, %c0_69] : memref<1x256xf32, #tpu.memory_space<vmem>>, vector<1x256xf32>
    %134 = vector.broadcast %133 : vector<1x256xf32> to vector<8x256xf32>
    %135 = arith.mulf %132, %134 : vector<8x256xf32>
    %cst_70 = arith.constant dense<0.000000e+00> : vector<8xf32>
    %136 = vector.multi_reduction <add>, %135, %cst_70 [1] : vector<8x256xf32> to vector<8xf32>
    %137 = vector.shape_cast %136 : vector<8xf32> to vector<8x1xf32>
    %c0_71 = arith.constant 0 : index
    %c0_72 = arith.constant 0 : index
    %138 = vector.load %arg23[%c0_71, %c0_72] : memref<1x1xf32, #tpu.memory_space<vmem>>, vector<1x1xf32>
    %139 = vector.broadcast %138 : vector<1x1xf32> to vector<8x1xf32>
    %140 = arith.addf %137, %139 : vector<8x1xf32>
    %141 = tpu.iota {dimensions = array<i32: 1>} : vector<8x128xi32>
    %c32_i32 = arith.constant 32 : i32
    %142 = vector.broadcast %c32_i32 : i32 to vector<8x128xi32>
    %143 = arith.cmpi eq, %141, %142 : vector<8x128xi32>
    %144 = vector.shape_cast %140 : vector<8x1xf32> to vector<8x1xf32>
    %145 = vector.broadcast %144 : vector<8x1xf32> to vector<8x128xf32>
    %146 = arith.select %143, %145, %114 : vector<8x128xi1>, vector<8x128xf32>
    %c0_73 = arith.constant 0 : index
    %c0_74 = arith.constant 0 : index
    %147 = vector.load %arg24[%c0_73, %c0_74] : memref<8x128xf32, #tpu.memory_space<vmem>>, vector<8x128xf32>
    tpu.vector_store %arg24[%c0_73, %c0_74], %146 {strides = array<i32>} : memref<8x128xf32, #tpu.memory_space<vmem>>, vector<8x128xf32>,
    return
  }
  func.func @transform_0(%arg0: i32) -> (i32, i32) {
    %c0_i32 = arith.constant 0 : i32
    %c0_i32_0 = arith.constant 0 : i32
    %c0_i32_1 = arith.constant 0 : i32
    return %c0_i32, %c0_i32_0 : i32, i32
  }
  func.func @transform_1(%arg0: i32) -> (i32, i32) {
    %c0_i32 = arith.constant 0 : i32
    %c0_i32_0 = arith.constant 0 : i32
    %c0_i32_1 = arith.constant 0 : i32
    return %c0_i32, %c0_i32_0 : i32, i32
  }
  func.func @transform_2(%arg0: i32) -> (i32, i32) {
    %c0_i32 = arith.constant 0 : i32
    %c0_i32_0 = arith.constant 0 : i32
    %c0_i32_1 = arith.constant 0 : i32
    return %c0_i32, %c0_i32_0 : i32, i32
  }
  func.func @transform_3(%arg0: i32) -> (i32, i32) {
    %c0_i32 = arith.constant 0 : i32
    %c0_i32_0 = arith.constant 0 : i32
    %c0_i32_1 = arith.constant 0 : i32
    return %c0_i32, %c0_i32_0 : i32, i32
  }
  func.func @transform_4(%arg0: i32) -> (i32, i32) {
    %c0_i32 = arith.constant 0 : i32
    %c0_i32_0 = arith.constant 0 : i32
    %c0_i32_1 = arith.constant 0 : i32
    return %c0_i32, %c0_i32_0 : i32, i32
  }
  func.func @transform_5(%arg0: i32) -> (i32, i32) {
    %c0_i32 = arith.constant 0 : i32
    %c0_i32_0 = arith.constant 0 : i32
    %c0_i32_1 = arith.constant 0 : i32
    return %c0_i32, %c0_i32_0 : i32, i32
  }
  func.func @transform_6(%arg0: i32) -> (i32, i32) {
    %c0_i32 = arith.constant 0 : i32
    %c0_i32_0 = arith.constant 0 : i32
    %c0_i32_1 = arith.constant 0 : i32
    return %c0_i32, %c0_i32_0 : i32, i32
  }
  func.func @transform_7(%arg0: i32) -> (i32, i32) {
    %c0_i32 = arith.constant 0 : i32
    %c0_i32_0 = arith.constant 0 : i32
    %c0_i32_1 = arith.constant 0 : i32
    return %c0_i32, %c0_i32_0 : i32, i32
  }
  func.func @transform_8(%arg0: i32) -> (i32, i32) {
    %c0_i32 = arith.constant 0 : i32
    %c0_i32_0 = arith.constant 0 : i32
    %c0_i32_1 = arith.constant 0 : i32
    return %c0_i32, %c0_i32_0 : i32, i32
  }
  func.func @transform_9(%arg0: i32) -> (i32, i32) {
    %c0_i32 = arith.constant 0 : i32
    %c0_i32_0 = arith.constant 0 : i32
    %c0_i32_1 = arith.constant 0 : i32
    return %c0_i32, %c0_i32_0 : i32, i32
  }
  func.func @transform_10(%arg0: i32) -> (i32, i32) {
    %c0_i32 = arith.constant 0 : i32
    %c0_i32_0 = arith.constant 0 : i32
    %c0_i32_1 = arith.constant 0 : i32
    return %c0_i32, %c0_i32_0 : i32, i32
  }
  func.func @transform_11(%arg0: i32) -> (i32, i32) {
    %c0_i32 = arith.constant 0 : i32
    %c0_i32_0 = arith.constant 0 : i32
    %c0_i32_1 = arith.constant 0 : i32
    return %c0_i32, %c0_i32_0 : i32, i32
  }
  func.func @transform_12(%arg0: i32) -> (i32, i32) {
    %c0_i32 = arith.constant 0 : i32
    %c0_i32_0 = arith.constant 0 : i32
    %c0_i32_1 = arith.constant 0 : i32
    return %c0_i32, %c0_i32_0 : i32, i32
  }
  func.func @transform_13(%arg0: i32) -> (i32, i32) {
    %c0_i32 = arith.constant 0 : i32
    %c0_i32_0 = arith.constant 0 : i32
    %c0_i32_1 = arith.constant 0 : i32
    return %c0_i32, %c0_i32_0 : i32, i32
  }
  func.func @transform_14(%arg0: i32) -> (i32, i32) {
    %c0_i32 = arith.constant 0 : i32
    %c0_i32_0 = arith.constant 0 : i32
    %c0_i32_1 = arith.constant 0 : i32
    return %c0_i32, %c0_i32_0 : i32, i32
  }
  func.func @transform_15(%arg0: i32) -> (i32, i32) {
    %c0_i32 = arith.constant 0 : i32
    %c0_i32_0 = arith.constant 0 : i32
    %c0_i32_1 = arith.constant 0 : i32
    return %c0_i32, %c0_i32_0 : i32, i32
  }
  func.func @transform_16(%arg0: i32) -> (i32, i32) {
    %c0_i32 = arith.constant 0 : i32
    %c0_i32_0 = arith.constant 0 : i32
    %c0_i32_1 = arith.constant 0 : i32
    return %c0_i32, %c0_i32_0 : i32, i32
  }
  func.func @transform_17(%arg0: i32) -> (i32, i32) {
    %c0_i32 = arith.constant 0 : i32
    %c0_i32_0 = arith.constant 0 : i32
    %c0_i32_1 = arith.constant 0 : i32
    return %c0_i32, %c0_i32_0 : i32, i32
  }
  func.func @transform_18(%arg0: i32) -> (i32, i32) {
    %c0_i32 = arith.constant 0 : i32
    %c0_i32_0 = arith.constant 0 : i32
    %c0_i32_1 = arith.constant 0 : i32
    return %c0_i32, %c0_i32_0 : i32, i32
  }
  func.func @transform_19(%arg0: i32) -> (i32, i32) {
    %c0_i32 = arith.constant 0 : i32
    %c0_i32_0 = arith.constant 0 : i32
    %c0_i32_1 = arith.constant 0 : i32
    return %c0_i32, %c0_i32_0 : i32, i32
  }
  func.func @transform_20(%arg0: i32) -> (i32, i32) {
    %c0_i32 = arith.constant 0 : i32
    %c0_i32_0 = arith.constant 0 : i32
    %c0_i32_1 = arith.constant 0 : i32
    return %c0_i32, %c0_i32_0 : i32, i32
  }
  func.func @transform_21(%arg0: i32) -> (i32, i32) {
    %c0_i32 = arith.constant 0 : i32
    %c0_i32_0 = arith.constant 0 : i32
    %c0_i32_1 = arith.constant 0 : i32
    return %c0_i32, %c0_i32_0 : i32, i32
  }
  func.func @transform_22(%arg0: i32) -> (i32, i32) {
    %c0_i32 = arith.constant 0 : i32
    %c0_i32_0 = arith.constant 0 : i32
    %c0_i32_1 = arith.constant 0 : i32
    return %c0_i32, %c0_i32_0 : i32, i32
  }
  func.func @transform_23(%arg0: i32) -> (i32, i32) {
    %c0_i32 = arith.constant 0 : i32
    %c0_i32_0 = arith.constant 0 : i32
    %c0_i32_1 = arith.constant 0 : i32
    return %c0_i32, %c0_i32_0 : i32, i32
  }
}

</mosaic_0001>

<llo_original>
// kernel: wgan_div_forward.1
$region0: #{wgan_div_forward.1}
  #allocation0 [shape = 'u32[]', space=smem, size = 0x4, offset = 0x4, fixed_abs, tag = 'smem constant byte address 0x4 - core index']
  #allocation1 [shape = 'u32[144,128]{1,0:T(1,128)}', space=vmem, size = 0x12000, scoped, tag = 'internal scratch']
  #allocation2 [shape = 'f32[1,1]{1,0:T(1,128)S(1)}', space=vmem, size = 0x200, scoped, tag = 'scoped memory for wgan_div_forward.1']
  %s0 = inlined_call_operand.hbm [shape: f32[8,32], index: 0, kind: input, shape index: {}]
  %s1 = inlined_call_operand.vmem [shape: bf16[32,128], index: 1, kind: input, shape index: {}]
  %s2 = inlined_call_operand.vmem [shape: f32[1,128], index: 2, kind: input, shape index: {}]
  %s3 = inlined_call_operand.hbm [shape: bf16[128,256], index: 3, kind: input, shape index: {}]
  %s4 = inlined_call_operand.hbm [shape: f32[1,256], index: 4, kind: input, shape index: {}]
  %s5 = inlined_call_operand.hbm [shape: f32[1,256], index: 5, kind: input, shape index: {}]
  %s6 = inlined_call_operand.hbm [shape: f32[1,256], index: 6, kind: input, shape index: {}]
  %s7 = inlined_call_operand.hbm [shape: bf16[256,512], index: 7, kind: input, shape index: {}]
  %s8 = inlined_call_operand.hbm [shape: f32[1,512], index: 8, kind: input, shape index: {}]
  %s9 = inlined_call_operand.vmem [shape: f32[1,512], index: 9, kind: input, shape index: {}]
  %s10 = inlined_call_operand.vmem [shape: f32[1,512], index: 10, kind: input, shape index: {}]
  %s11 = inlined_call_operand.hbm [shape: bf16[512,1024], index: 11, kind: input, shape index: {}]
  %s12 = inlined_call_operand.vmem [shape: f32[1,1024], index: 12, kind: input, shape index: {}]
  %s13 = inlined_call_operand.vmem [shape: f32[1,1024], index: 13, kind: input, shape index: {}]
  %s14 = inlined_call_operand.vmem [shape: f32[1,1024], index: 14, kind: input, shape index: {}]
  %s15 = inlined_call_operand.hbm [shape: bf16[1024,128], index: 15, kind: input, shape index: {}]
  %s16 = inlined_call_operand.hbm [shape: f32[1,128], index: 16, kind: input, shape index: {}]
  %s17 = inlined_call_operand.hbm [shape: bf16[128,512], index: 17, kind: input, shape index: {}]
  %s18 = inlined_call_operand.hbm [shape: f32[1,512], index: 18, kind: input, shape index: {}]
  %s19 = inlined_call_operand.hbm [shape: bf16[512,256], index: 19, kind: input, shape index: {}]
  %s20 = inlined_call_operand.hbm [shape: f32[1,256], index: 20, kind: input, shape index: {}]
  %s21 = inlined_call_operand.hbm [shape: f32[1,256], index: 21, kind: input, shape index: {}]
  %s22 = inlined_call_operand.<no memory space> [shape: f32[1,1], index: 22, kind: input, shape index: {}]
  %s23 = inlined_call_operand.vmem [shape: f32[8,128], index: 23, kind: output, shape index: {}]
  %s24 = sld [smem:[#allocation0]]
  $region162: #{wgan_div_forward.1} parent=0
    _
  %s26 = ssub.s32 1, %s24
  %s27 = scalar_select 0, %s26, %s24
  %v28 = vstv %s22
  %29 = vst [vmem:[#allocation2] sm:$0x1] %v28
  $region1: #{wgan_div_forward.1} parent=0
    #allocation3 [shape = 'u8[4096]{0}', space=vmem, size = 0x1000, scoped, tag = 'input window, operand 0, single buffered']
    #allocation4 [shape = 's32[1]{0}', space=sflag, size = 0x4, scoped, tag = 'scoped memory for wgan_div_forward.1']
    #allocation5 [shape = 'u8[65536]{0}', space=vmem, size = 0x10000, scoped, tag = 'input window, operand 3, single buffered']
    #allocation6 [shape = 's32[1]{0}', space=sflag, size = 0x4, scoped, tag = 'scoped memory for wgan_div_forward.1']
    #allocation7 [shape = 'u8[1024]{0}', space=vmem, size = 0x400, scoped, tag = 'input window, operand 4, single buffered']
    #allocation8 [shape = 'u8[1024]{0}', space=vmem, size = 0x400, scoped, tag = 'input window, operand 5, single buffered']
    #allocation9 [shape = 's32[1]{0}', space=sflag, size = 0x4, scoped, tag = 'scoped memory for wgan_div_forward.1']
    #allocation10 [shape = 'u8[1024]{0}', space=vmem, size = 0x400, scoped, tag = 'input window, operand 6, single buffered']
    #allocation11 [shape = 'u8[262144]{0}', space=vmem, size = 0x40000, scoped, tag = 'input window, operand 7, single buffered']
    #allocation12 [shape = 's32[1]{0}', space=sflag, size = 0x4, scoped, tag = 'scoped memory for wgan_div_forward.1']
    #allocation13 [shape = 'u8[2048]{0}', space=vmem, size = 0x800, scoped, tag = 'input window, operand 8, single buffered']
    #allocation14 [shape = 'u8[1048576]{0}', space=vmem, size = 0x100000, scoped, tag = 'input window, operand 11, single buffered']
    #allocation15 [shape = 's32[1]{0}', space=sflag, size = 0x4, scoped, tag = 'scoped memory for wgan_div_forward.1']
    #allocation16 [shape = 'u8[262144]{0}', space=vmem, size = 0x40000, scoped, tag = 'input window, operand 15, single buffered']
    #allocation17 [shape = 'u8[512]{0}', space=vmem, size = 0x400, scoped, tag = 'input window, operand 16, single buffered']
    #allocation18 [shape = 's32[1]{0}', space=sflag, size = 0x4, scoped, tag = 'scoped memory for wgan_div_forward.1']
    #allocation19 [shape = 'u8[131072]{0}', space=vmem, size = 0x20000, scoped, tag = 'input window, operand 17, single buffered']
    #allocation20 [shape = 'u8[2048]{0}', space=vmem, size = 0x800, scoped, tag = 'input window, operand 18, single buffered']
    #allocation21 [shape = 's32[1]{0}', space=sflag, size = 0x4, scoped, tag = 'scoped memory for wgan_div_forward.1']
    #allocation22 [shape = 'u8[262144]{0}', space=vmem, size = 0x40000, scoped, tag = 'input window, operand 19, single buffered']
    #allocation23 [shape = 'u8[1024]{0}', space=vmem, size = 0x400, scoped, tag = 'input window, operand 20, single buffered']
    #allocation24 [shape = 's32[1]{0}', space=sflag, size = 0x4, scoped, tag = 'scoped memory for wgan_div_forward.1']
    #allocation25 [shape = 'u8[1024]{0}', space=vmem, size = 0x400, scoped, tag = 'input window, operand 21, single buffered']
    %30 = vsyncpa [#allocation4], 0
    %31 = vsyncpa [#allocation6], 0
    %32 = vsyncpa [#allocation9], 0
    %33 = vsyncpa [#allocation12], 0
    %34 = vsyncpa [#allocation15], 0
    %35 = vsyncpa [#allocation18], 0
    %36 = vsyncpa [#allocation21], 0
    %37 = vsyncpa [#allocation24], 0
    // Predicated region
    $region2: #{wgan_div_forward.1} parent=1 // pred_check
      _
    $region3: #{wgan_div_forward.1} parent=1 // pred_check_branch
      %39 = sbr.rel (0) target = $region5
    $region4: #{wgan_div_forward.1} parent=1 // pred_region
      %s41 = ssub.s32 128, 128
      %42 = vsyncadd [#allocation4], %s41
      %s44 = sshll.u32 [#allocation3], 4
      %s45 = int_to_ptr.vmem [resolvable:$true] %s44
      %47 = dma.hbm_to_vmem [thread:$0]  %s0, 128, %s45, [#allocation4]
    $region5: #{wgan_div_forward.1} parent=1 // pred_fallthru
      _
    // Predicated region
    $region6: #{wgan_div_forward.1} parent=1 // pred_check
      _
    $region7: #{wgan_div_forward.1} parent=1 // pred_check_branch
      %49 = sbr.rel (0) target = $region9
    $region8: #{wgan_div_forward.1} parent=1 // pred_region
      _
    $region9: #{wgan_div_forward.1} parent=1 // pred_fallthru
      _
    // Predicated region
    $region10: #{wgan_div_forward.1} parent=1 // pred_check
      _
    $region11: #{wgan_div_forward.1} parent=1 // pred_check_branch
      %51 = sbr.rel (0) target = $region13
    $region12: #{wgan_div_forward.1} parent=1 // pred_region
      _
    $region13: #{wgan_div_forward.1} parent=1 // pred_fallthru
      _
    // Predicated region
    $region14: #{wgan_div_forward.1} parent=1 // pred_check
      _
    $region15: #{wgan_div_forward.1} parent=1 // pred_check_branch
      %53 = sbr.rel (0) target = $region17
    $region16: #{wgan_div_forward.1} parent=1 // pred_region
      %s55 = ssub.s32 2048, 2048
      %56 = vsyncadd [#allocation6], %s55
      %s57 = sshll.u32 [#allocation5], 4
      %s58 = int_to_ptr.vmem [resolvable:$true] %s57
      %63 = dma.hbm_to_vmem [thread:$0]  %s3, 2048, %s58, [#allocation6], 128, 128, 8
    $region17: #{wgan_div_forward.1} parent=1 // pred_fallthru
      _
    // Predicated region
    $region18: #{wgan_div_forward.1} parent=1 // pred_check
      _
    $region19: #{wgan_div_forward.1} parent=1 // pred_check_branch
      %65 = sbr.rel (0) target = $region21
    $region20: #{wgan_div_forward.1} parent=1 // pred_region
      %s67 = ssub.s32 32, 32
      %68 = vsyncadd [#allocation6], %s67
      %s70 = sshll.u32 [#allocation7], 4
      %s71 = int_to_ptr.vmem [resolvable:$true] %s70
      %73 = dma.hbm_to_vmem [thread:$0]  %s4, 32, %s71, [#allocation6]
    $region21: #{wgan_div_forward.1} parent=1 // pred_fallthru
      _
    // Predicated region
    $region22: #{wgan_div_forward.1} parent=1 // pred_check
      _
    $region23: #{wgan_div_forward.1} parent=1 // pred_check_branch
      %75 = sbr.rel (0) target = $region25
    $region24: #{wgan_div_forward.1} parent=1 // pred_region
      %s77 = ssub.s32 32, 32
      %78 = vsyncadd [#allocation9], %s77
      %s80 = sshll.u32 [#allocation8], 4
      %s81 = int_to_ptr.vmem [resolvable:$true] %s80
      %83 = dma.hbm_to_vmem [thread:$0]  %s5, 32, %s81, [#allocation9]
    $region25: #{wgan_div_forward.1} parent=1 // pred_fallthru
      _
    // Predicated region
    $region26: #{wgan_div_forward.1} parent=1 // pred_check
      _
    $region27: #{wgan_div_forward.1} parent=1 // pred_check_branch
      %85 = sbr.rel (0) target = $region29
    $region28: #{wgan_div_forward.1} parent=1 // pred_region
      %s87 = ssub.s32 32, 32
      %88 = vsyncadd [#allocation9], %s87
      %s90 = sshll.u32 [#allocation10], 4
      %s91 = int_to_ptr.vmem [resolvable:$true] %s90
      %93 = dma.hbm_to_vmem [thread:$0]  %s6, 32, %s91, [#allocation9]
    $region29: #{wgan_div_forward.1} parent=1 // pred_fallthru
      _
    // Predicated region
    $region30: #{wgan_div_forward.1} parent=1 // pred_check
      _
    $region31: #{wgan_div_forward.1} parent=1 // pred_check_branch
      %95 = sbr.rel (0) target = $region33
    $region32: #{wgan_div_forward.1} parent=1 // pred_region
      %s97 = ssub.s32 8192, 8192
      %98 = vsyncadd [#allocation12], %s97
      %s99 = sshll.u32 [#allocation11], 4
      %s100 = int_to_ptr.vmem [resolvable:$true] %s99
      %105 = dma.hbm_to_vmem [thread:$0]  %s7, 8192, %s100, [#allocation12], 256, 256, 16
    $region33: #{wgan_div_forward.1} parent=1 // pred_fallthru
      _
    // Predicated region
    $region34: #{wgan_div_forward.1} parent=1 // pred_check
      _
    $region35: #{wgan_div_forward.1} parent=1 // pred_check_branch
      %107 = sbr.rel (0) target = $region37
    $region36: #{wgan_div_forward.1} parent=1 // pred_region
      %s109 = ssub.s32 64, 64
      %110 = vsyncadd [#allocation12], %s109
      %s112 = sshll.u32 [#allocation13], 4
      %s113 = int_to_ptr.vmem [resolvable:$true] %s112
      %115 = dma.hbm_to_vmem [thread:$0]  %s8, 64, %s113, [#allocation12]
    $region37: #{wgan_div_forward.1} parent=1 // pred_fallthru
      _
    // Predicated region
    $region38: #{wgan_div_forward.1} parent=1 // pred_check
      _
    $region39: #{wgan_div_forward.1} parent=1 // pred_check_branch
      %117 = sbr.rel (0) target = $region41
    $region40: #{wgan_div_forward.1} parent=1 // pred_region
      _
    $region41: #{wgan_div_forward.1} parent=1 // pred_fallthru
      _
    // Predicated region
    $region42: #{wgan_div_forward.1} parent=1 // pred_check
      _
    $region43: #{wgan_div_forward.1} parent=1 // pred_check_branch
      %119 = sbr.rel (0) target = $region45
    $region44: #{wgan_div_forward.1} parent=1 // pred_region
      _
    $region45: #{wgan_div_forward.1} parent=1 // pred_fallthru
      _
    // Predicated region
    $region46: #{wgan_div_forward.1} parent=1 // pred_check
      _
    $region47: #{wgan_div_forward.1} parent=1 // pred_check_branch
      %121 = sbr.rel (0) target = $region49
    $region48: #{wgan_div_forward.1} parent=1 // pred_region
      %s123 = ssub.s32 32768, 32768
      %124 = vsyncadd [#allocation15], %s123
      %s125 = sshll.u32 [#allocation14], 4
      %s126 = int_to_ptr.vmem [resolvable:$true] %s125
      %131 = dma.hbm_to_vmem [thread:$0]  %s11, 32768, %s126, [#allocation15], 512, 512, 32
    $region49: #{wgan_div_forward.1} parent=1 // pred_fallthru
      _
    // Predicated region
    $region50: #{wgan_div_forward.1} parent=1 // pred_check
      _
    $region51: #{wgan_div_forward.1} parent=1 // pred_check_branch
      %133 = sbr.rel (0) target = $region53
    $region52: #{wgan_div_forward.1} parent=1 // pred_region
      _
    $region53: #{wgan_div_forward.1} parent=1 // pred_fallthru
      _
    // Predicated region
    $region54: #{wgan_div_forward.1} parent=1 // pred_check
      _
    $region55: #{wgan_div_forward.1} parent=1 // pred_check_branch
      %135 = sbr.rel (0) target = $region57
    $region56: #{wgan_div_forward.1} parent=1 // pred_region
      _
    $region57: #{wgan_div_forward.1} parent=1 // pred_fallthru
      _
    // Predicated region
    $region58: #{wgan_div_forward.1} parent=1 // pred_check
      _
    $region59: #{wgan_div_forward.1} parent=1 // pred_check_branch
      %137 = sbr.rel (0) target = $region61
    $region60: #{wgan_div_forward.1} parent=1 // pred_region
      _
    $region61: #{wgan_div_forward.1} parent=1 // pred_fallthru
      _
    // Predicated region
    $region62: #{wgan_div_forward.1} parent=1 // pred_check
      _
    $region63: #{wgan_div_forward.1} parent=1 // pred_check_branch
      %139 = sbr.rel (0) target = $region65
    $region64: #{wgan_div_forward.1} parent=1 // pred_region
      %s141 = ssub.s32 8192, 8192
      %142 = vsyncadd [#allocation15], %s141
      %s143 = sshll.u32 [#allocation16], 4
      %s144 = int_to_ptr.vmem [resolvable:$true] %s143
      %149 = dma.hbm_to_vmem [thread:$0]  %s15, 8192, %s144, [#allocation15], 64, 64, 4
    $region65: #{wgan_div_forward.1} parent=1 // pred_fallthru
      _
    // Predicated region
    $region66: #{wgan_div_forward.1} parent=1 // pred_check
      _
    $region67: #{wgan_div_forward.1} parent=1 // pred_check_branch
      %151 = sbr.rel (0) target = $region69
    $region68: #{wgan_div_forward.1} parent=1 // pred_region
      %s153 = ssub.s32 16, 16
      %154 = vsyncadd [#allocation18], %s153
      %s156 = sshll.u32 [#allocation17], 4
      %s157 = int_to_ptr.vmem [resolvable:$true] %s156
      %159 = dma.hbm_to_vmem [thread:$0]  %s16, 16, %s157, [#allocation18]
    $region69: #{wgan_div_forward.1} parent=1 // pred_fallthru
      _
    // Predicated region
    $region70: #{wgan_div_forward.1} parent=1 // pred_check
      _
    $region71: #{wgan_div_forward.1} parent=1 // pred_check_branch
      %161 = sbr.rel (0) target = $region73
    $region72: #{wgan_div_forward.1} parent=1 // pred_region
      %s163 = ssub.s32 4096, 4096
      %164 = vsyncadd [#allocation18], %s163
      %s165 = sshll.u32 [#allocation19], 4
      %s166 = int_to_ptr.vmem [resolvable:$true] %s165
      %171 = dma.hbm_to_vmem [thread:$0]  %s17, 4096, %s166, [#allocation18], 256, 256, 16
    $region73: #{wgan_div_forward.1} parent=1 // pred_fallthru
      _
    // Predicated region
    $region74: #{wgan_div_forward.1} parent=1 // pred_check
      _
    $region75: #{wgan_div_forward.1} parent=1 // pred_check_branch
      %173 = sbr.rel (0) target = $region77
    $region76: #{wgan_div_forward.1} parent=1 // pred_region
      %s175 = ssub.s32 64, 64
      %176 = vsyncadd [#allocation21], %s175
      %s178 = sshll.u32 [#allocation20], 4
      %s179 = int_to_ptr.vmem [resolvable:$true] %s178
      %181 = dma.hbm_to_vmem [thread:$0]  %s18, 64, %s179, [#allocation21]
    $region77: #{wgan_div_forward.1} parent=1 // pred_fallthru
      _
    // Predicated region
    $region78: #{wgan_div_forward.1} parent=1 // pred_check
      _
    $region79: #{wgan_div_forward.1} parent=1 // pred_check_branch
      %183 = sbr.rel (0) target = $region81
    $region80: #{wgan_div_forward.1} parent=1 // pred_region
      %s185 = ssub.s32 8192, 8192
      %186 = vsyncadd [#allocation21], %s185
      %s187 = sshll.u32 [#allocation22], 4
      %s188 = int_to_ptr.vmem [resolvable:$true] %s187
      %193 = dma.hbm_to_vmem [thread:$0]  %s19, 8192, %s188, [#allocation21], 128, 128, 8
    $region81: #{wgan_div_forward.1} parent=1 // pred_fallthru
      _
    // Predicated region
    $region82: #{wgan_div_forward.1} parent=1 // pred_check
      _
    $region83: #{wgan_div_forward.1} parent=1 // pred_check_branch
      %195 = sbr.rel (0) target = $region85
    $region84: #{wgan_div_forward.1} parent=1 // pred_region
      %s197 = ssub.s32 32, 32
      %198 = vsyncadd [#allocation24], %s197
      %s200 = sshll.u32 [#allocation23], 4
      %s201 = int_to_ptr.vmem [resolvable:$true] %s200
      %203 = dma.hbm_to_vmem [thread:$0]  %s20, 32, %s201, [#allocation24]
    $region85: #{wgan_div_forward.1} parent=1 // pred_fallthru
      _
    // Predicated region
    $region86: #{wgan_div_forward.1} parent=1 // pred_check
      _
    $region87: #{wgan_div_forward.1} parent=1 // pred_check_branch
      %205 = sbr.rel (0) target = $region89
    $region88: #{wgan_div_forward.1} parent=1 // pred_region
      %s207 = ssub.s32 32, 32
      %208 = vsyncadd [#allocation24], %s207
      %s210 = sshll.u32 [#allocation25], 4
      %s211 = int_to_ptr.vmem [resolvable:$true] %s210
      %213 = dma.hbm_to_vmem [thread:$0]  %s21, 32, %s211, [#allocation24]
    $region89: #{wgan_div_forward.1} parent=1 // pred_fallthru
      _
    // Predicated region
    $region90: #{wgan_div_forward.1} parent=1 // pred_check
      _
    $region91: #{wgan_div_forward.1} parent=1 // pred_check_branch
      %215 = sbr.rel (0) target = $region93
    $region92: #{wgan_div_forward.1} parent=1 // pred_region
      _
    $region93: #{wgan_div_forward.1} parent=1 // pred_fallthru
      _
    // Predicated region
    $region94: #{wgan_div_forward.1} parent=1 // pred_check
      _
    $region95: #{wgan_div_forward.1} parent=1 // pred_check_branch
      %217 = sbr.rel (0) target = $region97
    $region96: #{wgan_div_forward.1} parent=1 // pred_region
      %218 = dma.done [#allocation4], 128
    $region97: #{wgan_div_forward.1} parent=1 // pred_fallthru
      _
    // Predicated region
    $region98: #{wgan_div_forward.1} parent=1 // pred_check
      _
    $region99: #{wgan_div_forward.1} parent=1 // pred_check_branch
      %220 = sbr.rel (0) target = $region101
    $region100: #{wgan_div_forward.1} parent=1 // pred_region
      %221 = dma.done [#allocation6], 2048
    $region101: #{wgan_div_forward.1} parent=1 // pred_fallthru
      _
    // Predicated region
    $region102: #{wgan_div_forward.1} parent=1 // pred_check
      _
    $region103: #{wgan_div_forward.1} parent=1 // pred_check_branch
      %223 = sbr.rel (0) target = $region105
    $region104: #{wgan_div_forward.1} parent=1 // pred_region
      %224 = dma.done [#allocation6], 32
    $region105: #{wgan_div_forward.1} parent=1 // pred_fallthru
      _
    // Predicated region
    $region106: #{wgan_div_forward.1} parent=1 // pred_check
      _
    $region107: #{wgan_div_forward.1} parent=1 // pred_check_branch
      %226 = sbr.rel (0) target = $region109
    $region108: #{wgan_div_forward.1} parent=1 // pred_region
      %227 = dma.done [#allocation9], 32
    $region109: #{wgan_div_forward.1} parent=1 // pred_fallthru
      _
    // Predicated region
    $region110: #{wgan_div_forward.1} parent=1 // pred_check
      _
    $region111: #{wgan_div_forward.1} parent=1 // pred_check_branch
      %229 = sbr.rel (0) target = $region113
    $region112: #{wgan_div_forward.1} parent=1 // pred_region
      %230 = dma.done [#allocation9], 32
    $region113: #{wgan_div_forward.1} parent=1 // pred_fallthru
      _
    // Predicated region
    $region114: #{wgan_div_forward.1} parent=1 // pred_check
      _
    $region115: #{wgan_div_forward.1} parent=1 // pred_check_branch
      %232 = sbr.rel (0) target = $region117
    $region116: #{wgan_div_forward.1} parent=1 // pred_region
      %233 = dma.done [#allocation12], 8192
    $region117: #{wgan_div_forward.1} parent=1 // pred_fallthru
      _
    // Predicated region
    $region118: #{wgan_div_forward.1} parent=1 // pred_check
      _
    $region119: #{wgan_div_forward.1} parent=1 // pred_check_branch
      %235 = sbr.rel (0) target = $region121
    $region120: #{wgan_div_forward.1} parent=1 // pred_region
      %236 = dma.done [#allocation12], 64
    $region121: #{wgan_div_forward.1} parent=1 // pred_fallthru
      _
    // Predicated region
    $region122: #{wgan_div_forward.1} parent=1 // pred_check
      _
    $region123: #{wgan_div_forward.1} parent=1 // pred_check_branch
      %238 = sbr.rel (0) target = $region125
    $region124: #{wgan_div_forward.1} parent=1 // pred_region
      %239 = dma.done [#allocation15], 32768
    $region125: #{wgan_div_forward.1} parent=1 // pred_fallthru
      _
    // Predicated region
    $region126: #{wgan_div_forward.1} parent=1 // pred_check
      _
    $region127: #{wgan_div_forward.1} parent=1 // pred_check_branch
      %241 = sbr.rel (0) target = $region129
    $region128: #{wgan_div_forward.1} parent=1 // pred_region
      %242 = dma.done [#allocation15], 8192
    $region129: #{wgan_div_forward.1} parent=1 // pred_fallthru
      _
    // Predicated region
    $region130: #{wgan_div_forward.1} parent=1 // pred_check
      _
    $region131: #{wgan_div_forward.1} parent=1 // pred_check_branch
      %244 = sbr.rel (0) target = $region133
    $region132: #{wgan_div_forward.1} parent=1 // pred_region
      %245 = dma.done [#allocation18], 16
    $region133: #{wgan_div_forward.1} parent=1 // pred_fallthru
      _
    // Predicated region
    $region134: #{wgan_div_forward.1} parent=1 // pred_check
      _
    $region135: #{wgan_div_forward.1} parent=1 // pred_check_branch
      %247 = sbr.rel (0) target = $region137
    $region136: #{wgan_div_forward.1} parent=1 // pred_region
      %248 = dma.done [#allocation18], 4096
    $region137: #{wgan_div_forward.1} parent=1 // pred_fallthru
      _
    // Predicated region
    $region138: #{wgan_div_forward.1} parent=1 // pred_check
      _
    $region139: #{wgan_div_forward.1} parent=1 // pred_check_branch
      %250 = sbr.rel (0) target = $region141
    $region140: #{wgan_div_forward.1} parent=1 // pred_region
      %251 = dma.done [#allocation21], 64
    $region141: #{wgan_div_forward.1} parent=1 // pred_fallthru
      _
    // Predicated region
    $region142: #{wgan_div_forward.1} parent=1 // pred_check
      _
    $region143: #{wgan_div_forward.1} parent=1 // pred_check_branch
      %253 = sbr.rel (0) target = $region145
    $region144: #{wgan_div_forward.1} parent=1 // pred_region
      %254 = dma.done [#allocation21], 8192
    $region145: #{wgan_div_forward.1} parent=1 // pred_fallthru
      _
    // Predicated region
    $region146: #{wgan_div_forward.1} parent=1 // pred_check
      _
    $region147: #{wgan_div_forward.1} parent=1 // pred_check_branch
      %256 = sbr.rel (0) target = $region149
    $region148: #{wgan_div_forward.1} parent=1 // pred_region
      %257 = dma.done [#allocation24], 32
    $region149: #{wgan_div_forward.1} parent=1 // pred_fallthru
      _
    // Predicated region
    $region150: #{wgan_div_forward.1} parent=1 // pred_check
      _
    $region151: #{wgan_div_forward.1} parent=1 // pred_check_branch
      %259 = sbr.rel (0) target = $region153
    $region152: #{wgan_div_forward.1} parent=1 // pred_region
      %260 = dma.done [#allocation24], 32
    $region153: #{wgan_div_forward.1} parent=1 // pred_fallthru
      _
    %v262 = vld [vmem:[#allocation3] sm:$0xff]
    %v263 = vld [vmem:[%s1] sm:$0xf]
    %v264 = vld [vmem:[%s1 + $0x4] sm:$0xf]
    %v265 = vld [vmem:[%s1 + $0x8] sm:$0xf]
    %v266 = vld [vmem:[%s1 + $0xc] sm:$0xf]
    %v267 = vpack.c.bf16 %v262, %v262
    %v268 = vld [vmem:[%s2] sm:$0x1]
    %v270 = vlaneseq
    %v271 = vshrl.u32 %v270, 7
    %v272 = vsub.s32 0, %v271
    %v273 = vrot.slane %v268, %v272
    %v279 = vunpack.c.l.b16 %v263
    %v280 = vunpack.c.l.b16 %v264
    %v281 = vunpack.c.l.b16 %v265
    %v282 = vunpack.c.l.b16 %v266
    %v283 = vpack.c.b16 %v280, %v279
    %v284 = vpack.c.b16 %v282, %v281
    %vm287 = vcmask 261120
    %v289 = vsel %vm287, %v267, 0
    %291 = vmatprep.subr.bf16.mxu0 0
    %292 = vmatpush1.bf16.msra.mxu0 %v283
    %293 = vmatprep.subr.bf16.mxu0 0
    %294 = vmatpush1.bf16.msra.mxu0 %v284
    %295 = vmatprep.subr.bf16.mxu0 0
    %296 = vmatpush1.bf16.msra.mxu0 0
    %297 = vmatprep.subr.bf16.mxu0 0
    %298 = vmatpush1.bf16.msra.mxu0 0
    %299 = vmatprep.subr.bf16.mxu0 0
    %300 = vmatpush1.bf16.msra.mxu0 0
    %301 = vmatprep.subr.bf16.mxu0 0
    %302 = vmatpush1.bf16.msra.mxu0 0
    %303 = vmatprep.subr.bf16.mxu0 0
    %304 = vmatpush1.bf16.msra.mxu0 0
    %305 = vmatprep.subr.bf16.mxu0 0
    %306 = vmatpush1.bf16.msra.mxu0 0
    %307 = vmatprep.subr.bf16.mxu0 0
    %308 = vmatpush1.bf16.msra.mxu0 0
    %309 = vmatprep.subr.bf16.mxu0 0
    %310 = vmatpush1.bf16.msra.mxu0 0
    %311 = vmatprep.subr.bf16.mxu0 0
    %312 = vmatpush1.bf16.msra.mxu0 0
    %313 = vmatprep.subr.bf16.mxu0 0
    %314 = vmatpush1.bf16.msra.mxu0 0
    %315 = vmatprep.subr.bf16.mxu0 0
    %316 = vmatpush1.bf16.msra.mxu0 0
    %317 = vmatprep.subr.bf16.mxu0 0
    %318 = vmatpush1.bf16.msra.mxu0 0
    %319 = vmatprep.subr.bf16.mxu0 0
    %320 = vmatpush1.bf16.msra.mxu0 0
    %321 = vmatprep.subr.bf16.mxu0 0
    %322 = vmatpush1.bf16.msra.mxu0 0
    %323 = vmatprep.mubr.bf16.mxu0 0
    %324 = vmatmul.mubr.bf16.gmra.mrb[0].mxu0 %v289
    %v325 = vpop.f32.mrb[0].mxu0
    %v326 = vadd.f32 %v273, %v325
    %v327 = vpop.f32.mrb[0].mxu0
    %v328 = vpop.f32.mrb[0].mxu0
    %v329 = vpop.f32.mrb[0].mxu0
    %330 = vdwg.mxu0
    %v331 = vmul.f32 %v326, 0.2
    %v332 = vmax.f32 %v326, %v331
    %v333 = vld [vmem:[#allocation5] sm:$0xff]
    %v334 = vld [vmem:[#allocation5 + $0x8] sm:$0xff]
    %v335 = vld [vmem:[#allocation5 + $0x10] sm:$0xff]
    %v336 = vld [vmem:[#allocation5 + $0x18] sm:$0xff]
    %v337 = vld [vmem:[#allocation5 + $0x20] sm:$0xff]
    %v338 = vld [vmem:[#allocation5 + $0x28] sm:$0xff]
    %v339 = vld [vmem:[#allocation5 + $0x30] sm:$0xff]
    %v340 = vld [vmem:[#allocation5 + $0x38] sm:$0xff]
    %v341 = vld [vmem:[#allocation5 + $0x40] sm:$0xff]
    %v342 = vld [vmem:[#allocation5 + $0x48] sm:$0xff]
    %v343 = vld [vmem:[#allocation5 + $0x50] sm:$0xff]
    %v344 = vld [vmem:[#allocation5 + $0x58] sm:$0xff]
    %v345 = vld [vmem:[#allocation5 + $0x60] sm:$0xff]
    %v346 = vld [vmem:[#allocation5 + $0x68] sm:$0xff]
    %v347 = vld [vmem:[#allocation5 + $0x70] sm:$0xff]
    %v348 = vld [vmem:[#allocation5 + $0x78] sm:$0xff]
    %v349 = vpack.c.bf16 %v332, %v332
    %v350 = vld [vmem:[#allocation7] sm:$0x3]
    %v352 = vlaneseq
    %v353 = vshrl.u32 %v352, 7
    %v354 = vsub.s32 0, %v353
    %v355 = vrot.slane %v350, %v354
    %v356 = vlaneseq
    %v357 = vshrl.u32 %v356, 7
    %v358 = vsub.s32 1, %v357
    %v359 = vrot.slane %v350, %v358
    %v378 = vunpack.c.l.b16 %v333
    %v379 = vunpack.c.h.b16 %v333
    %v380 = vunpack.c.l.b16 %v334
    %v381 = vunpack.c.h.b16 %v334
    %v382 = vunpack.c.l.b16 %v335
    %v383 = vunpack.c.h.b16 %v335
    %v384 = vunpack.c.l.b16 %v336
    %v385 = vunpack.c.h.b16 %v336
    %v386 = vunpack.c.l.b16 %v337
    %v387 = vunpack.c.h.b16 %v337
    %v388 = vunpack.c.l.b16 %v338
    %v389 = vunpack.c.h.b16 %v338
    %v390 = vunpack.c.l.b16 %v339
    %v391 = vunpack.c.h.b16 %v339
    %v392 = vunpack.c.l.b16 %v340
    %v393 = vunpack.c.h.b16 %v340
    %v394 = vunpack.c.l.b16 %v341
    %v395 = vunpack.c.h.b16 %v341
    %v396 = vunpack.c.l.b16 %v342
    %v397 = vunpack.c.h.b16 %v342
    %v398 = vunpack.c.l.b16 %v343
    %v399 = vunpack.c.h.b16 %v343
    %v400 = vunpack.c.l.b16 %v344
    %v401 = vunpack.c.h.b16 %v344
    %v402 = vunpack.c.l.b16 %v345
    %v403 = vunpack.c.h.b16 %v345
    %v404 = vunpack.c.l.b16 %v346
    %v405 = vunpack.c.h.b16 %v346
    %v406 = vunpack.c.l.b16 %v347
    %v407 = vunpack.c.h.b16 %v347
    %v408 = vunpack.c.l.b16 %v348
    %v409 = vunpack.c.h.b16 %v348
    %v410 = vpack.c.b16 %v380, %v378
    %v411 = vpack.c.b16 %v381, %v379
    %v412 = vpack.c.b16 %v384, %v382
    %v413 = vpack.c.b16 %v385, %v383
    %v414 = vpack.c.b16 %v388, %v386
    %v415 = vpack.c.b16 %v389, %v387
    %v416 = vpack.c.b16 %v392, %v390
    %v417 = vpack.c.b16 %v393, %v391
    %v418 = vpack.c.b16 %v396, %v394
    %v419 = vpack.c.b16 %v397, %v395
    %v420 = vpack.c.b16 %v400, %v398
    %v421 = vpack.c.b16 %v401, %v399
    %v422 = vpack.c.b16 %v404, %v402
    %v423 = vpack.c.b16 %v405, %v403
    %v424 = vpack.c.b16 %v408, %v406
    %v425 = vpack.c.b16 %v409, %v407
    %442 = vmatprep.subr.bf16.mxu0 %v411
    %443 = vmatpush1.bf16.msra.mxu0 %v410
    %444 = vmatprep.subr.bf16.mxu0 %v413
    %445 = vmatpush1.bf16.msra.mxu0 %v412
    %446 = vmatprep.subr.bf16.mxu0 %v415
    %447 = vmatpush1.bf16.msra.mxu0 %v414
    %448 = vmatprep.subr.bf16.mxu0 %v417
    %449 = vmatpush1.bf16.msra.mxu0 %v416
    %450 = vmatprep.subr.bf16.mxu0 %v419
    %451 = vmatpush1.bf16.msra.mxu0 %v418
    %452 = vmatprep.subr.bf16.mxu0 %v421
    %453 = vmatpush1.bf16.msra.mxu0 %v420
    %454 = vmatprep.subr.bf16.mxu0 %v423
    %455 = vmatpush1.bf16.msra.mxu0 %v422
    %456 = vmatprep.subr.bf16.mxu0 %v425
    %457 = vmatpush1.bf16.msra.mxu0 %v424
    %458 = vmatprep.subr.bf16.mxu0 0
    %459 = vmatpush1.bf16.msra.mxu0 0
    %460 = vmatprep.subr.bf16.mxu0 0
    %461 = vmatpush1.bf16.msra.mxu0 0
    %462 = vmatprep.subr.bf16.mxu0 0
    %463 = vmatpush1.bf16.msra.mxu0 0
    %464 = vmatprep.subr.bf16.mxu0 0
    %465 = vmatpush1.bf16.msra.mxu0 0
    %466 = vmatprep.subr.bf16.mxu0 0
    %467 = vmatpush1.bf16.msra.mxu0 0
    %468 = vmatprep.subr.bf16.mxu0 0
    %469 = vmatpush1.bf16.msra.mxu0 0
    %470 = vmatprep.subr.bf16.mxu0 0
    %471 = vmatpush1.bf16.msra.mxu0 0
    %472 = vmatprep.subr.bf16.mxu0 0
    %473 = vmatpush1.bf16.msra.mxu0 0
    %474 = vmatprep.mubr.bf16.mxu0 0
    %475 = vmatmul.mubr.bf16.gmra.mrb[0].mxu0 %v349
    %v476 = vpop.f32.mrb[0].mxu0
    %v477 = vadd.f32 %v355, %v476
    %v478 = vpop.f32.mrb[0].mxu0
    %v479 = vadd.f32 %v359, %v478
    %v480 = vpop.f32.mrb[0].mxu0
    %v481 = vpop.f32.mrb[0].mxu0
    %482 = vdwg.mxu0
    %v483 = vld [vmem:[#allocation8] sm:$0x3]
    %v484 = vld [vmem:[#allocation10] sm:$0x3]
    %v485 = vrot.slane %v477, 4
    %v486 = vadd.f32 %v477, %v485
    %v487 = vrot.slane %v486, 2
    %v488 = vadd.f32 %v486, %v487
    %v489 = vrot.slane %v488, 1
    %v490 = vadd.f32 %v488, %v489
    %v491 = vrot.slane %v479, 4
    %v492 = vadd.f32 %v479, %v491
    %v493 = vrot.slane %v492, 2
    %v494 = vadd.f32 %v492, %v493
    %v495 = vrot.slane %v494, 1
    %v496 = vadd.f32 %v494, %v495
    %v497 = vmul.f32 %v477, %v477
    %v498 = vmul.f32 %v479, %v479
    %v499 = vrot.slane %v497, 4
    %v500 = vadd.f32 %v497, %v499
    %v501 = vrot.slane %v500, 2
    %v502 = vadd.f32 %v500, %v501
    %v503 = vrot.slane %v502, 1
    %v504 = vadd.f32 %v502, %v503
    %v505 = vrot.slane %v498, 4
    %v506 = vadd.f32 %v498, %v505
    %v507 = vrot.slane %v506, 2
    %v508 = vadd.f32 %v506, %v507
    %v509 = vrot.slane %v508, 1
    %v510 = vadd.f32 %v508, %v509
    %v511 = vmul.f32 %v490, 0.125
    %v512 = vmul.f32 %v496, 0.125
    %v513 = vmul.f32 %v504, 0.125
    %v514 = vmul.f32 %v510, 0.125
    %v515 = vmul.f32 %v511, %v511
    %v516 = vmul.f32 %v512, %v512
    %v517 = vsub.f32 %v513, %v515
    %v518 = vsub.f32 %v514, %v516
    %v519 = vsub.f32 %v477, %v511
    %v520 = vsub.f32 %v479, %v512
    %v521 = vadd.f32 %v517, 0.8
    %v522 = vadd.f32 %v518, 0.8
    %v523 = vrsqrt.pop %v521
    %v524 = vrsqrt.pop %v522
    %v525 = vmul.f32 %v519, %v523
    %v526 = vmul.f32 %v520, %v524
    %v528 = vlaneseq
    %v529 = vshrl.u32 %v528, 7
    %v530 = vsub.s32 0, %v529
    %v531 = vrot.slane %v483, %v530
    %v532 = vlaneseq
    %v533 = vshrl.u32 %v532, 7
    %v534 = vsub.s32 1, %v533
    %v535 = vrot.slane %v483, %v534
    %v538 = vmul.f32 %v525, %v531
    %v539 = vmul.f32 %v526, %v535
    %v541 = vlaneseq
    %v542 = vshrl.u32 %v541, 7
    %v543 = vsub.s32 0, %v542
    %v544 = vrot.slane %v484, %v543
    %v545 = vlaneseq
    %v546 = vshrl.u32 %v545, 7
    %v547 = vsub.s32 1, %v546
    %v548 = vrot.slane %v484, %v547
    %v551 = vadd.f32 %v538, %v544
    %v552 = vadd.f32 %v539, %v548
    %v553 = vmul.f32 %v551, 0.2
    %v554 = vmul.f32 %v552, 0.2
    %v555 = vmax.f32 %v551, %v553
    %v556 = vmax.f32 %v552, %v554
    %v557 = vld [vmem:[#allocation11] sm:$0xff]
    %v558 = vld [vmem:[#allocation11 + $0x8] sm:$0xff]
    %v559 = vld [vmem:[#allocation11 + $0x10] sm:$0xff]
    %v560 = vld [vmem:[#allocation11 + $0x18] sm:$0xff]
    %v561 = vld [vmem:[#allocation11 + $0x20] sm:$0xff]
    %v562 = vld [vmem:[#allocation11 + $0x28] sm:$0xff]
    %v563 = vld [vmem:[#allocation11 + $0x30] sm:$0xff]
    %v564 = vld [vmem:[#allocation11 + $0x38] sm:$0xff]
    %v565 = vld [vmem:[#allocation11 + $0x40] sm:$0xff]
    %v566 = vld [vmem:[#allocation11 + $0x48] sm:$0xff]
    %v567 = vld [vmem:[#allocation11 + $0x50] sm:$0xff]
    %v568 = vld [vmem:[#allocation11 + $0x58] sm:$0xff]
    %v569 = vld [vmem:[#allocation11 + $0x60] sm:$0xff]
    %v570 = vld [vmem:[#allocation11 + $0x68] sm:$0xff]
    %v571 = vld [vmem:[#allocation11 + $0x70] sm:$0xff]
    %v572 = vld [vmem:[#allocation11 + $0x78] sm:$0xff]
    %v573 = vld [vmem:[#allocation11 + $0x80] sm:$0xff]
    %v574 = vld [vmem:[#allocation11 + $0x88] sm:$0xff]
    %v575 = vld [vmem:[#allocation11 + $0x90] sm:$0xff]
    %v576 = vld [vmem:[#allocation11 + $0x98] sm:$0xff]
    %v577 = vld [vmem:[#allocation11 + $0xa0] sm:$0xff]
    %v578 = vld [vmem:[#allocation11 + $0xa8] sm:$0xff]
    %v579 = vld [vmem:[#allocation11 + $0xb0] sm:$0xff]
    %v580 = vld [vmem:[#allocation11 + $0xb8] sm:$0xff]
    %v581 = vld [vmem:[#allocation11 + $0xc0] sm:$0xff]
    %v582 = vld [vmem:[#allocation11 + $0xc8] sm:$0xff]
    %v583 = vld [vmem:[#allocation11 + $0xd0] sm:$0xff]
    %v584 = vld [vmem:[#allocation11 + $0xd8] sm:$0xff]
    %v585 = vld [vmem:[#allocation11 + $0xe0] sm:$0xff]
    %v586 = vld [vmem:[#allocation11 + $0xe8] sm:$0xff]
    %v587 = vld [vmem:[#allocation11 + $0xf0] sm:$0xff]
    %v588 = vld [vmem:[#allocation11 + $0xf8] sm:$0xff]
    %v589 = vld [vmem:[#allocation11 + $0x100] sm:$0xff]
    %v590 = vld [vmem:[#allocation11 + $0x108] sm:$0xff]
    %v591 = vld [vmem:[#allocation11 + $0x110] sm:$0xff]
    %v592 = vld [vmem:[#allocation11 + $0x118] sm:$0xff]
    %v593 = vld [vmem:[#allocation11 + $0x120] sm:$0xff]
    %v594 = vld [vmem:[#allocation11 + $0x128] sm:$0xff]
    %v595 = vld [vmem:[#allocation11 + $0x130] sm:$0xff]
    %v596 = vld [vmem:[#allocation11 + $0x138] sm:$0xff]
    %v597 = vld [vmem:[#allocation11 + $0x140] sm:$0xff]
    %v598 = vld [vmem:[#allocation11 + $0x148] sm:$0xff]
    %v599 = vld [vmem:[#allocation11 + $0x150] sm:$0xff]
    %v600 = vld [vmem:[#allocation11 + $0x158] sm:$0xff]
    %v601 = vld [vmem:[#allocation11 + $0x160] sm:$0xff]
    %v602 = vld [vmem:[#allocation11 + $0x168] sm:$0xff]
    %v603 = vld [vmem:[#allocation11 + $0x170] sm:$0xff]
    %v604 = vld [vmem:[#allocation11 + $0x178] sm:$0xff]
    %v605 = vld [vmem:[#allocation11 + $0x180] sm:$0xff]
    %v606 = vld [vmem:[#allocation11 + $0x188] sm:$0xff]
    %v607 = vld [vmem:[#allocation11 + $0x190] sm:$0xff]
    %v608 = vld [vmem:[#allocation11 + $0x198] sm:$0xff]
    %v609 = vld [vmem:[#allocation11 + $0x1a0] sm:$0xff]
    %v610 = vld [vmem:[#allocation11 + $0x1a8] sm:$0xff]
    %v611 = vld [vmem:[#allocation11 + $0x1b0] sm:$0xff]
    %v612 = vld [vmem:[#allocation11 + $0x1b8] sm:$0xff]
    %v613 = vld [vmem:[#allocation11 + $0x1c0] sm:$0xff]
    %v614 = vld [vmem:[#allocation11 + $0x1c8] sm:$0xff]
    %v615 = vld [vmem:[#allocation11 + $0x1d0] sm:$0xff]
    %v616 = vld [vmem:[#allocation11 + $0x1d8] sm:$0xff]
    %v617 = vld [vmem:[#allocation11 + $0x1e0] sm:$0xff]
    %v618 = vld [vmem:[#allocation11 + $0x1e8] sm:$0xff]
    %v619 = vld [vmem:[#allocation11 + $0x1f0] sm:$0xff]
    %v620 = vld [vmem:[#allocation11 + $0x1f8] sm:$0xff]
    %v621 = vpack.c.bf16 %v555, %v555
    %v622 = vpack.c.bf16 %v556, %v556
    %v623 = vld [vmem:[#allocation13] sm:$0xf]
    %v625 = vlaneseq
    %v626 = vshrl.u32 %v625, 7
    %v627 = vsub.s32 0, %v626
    %v628 = vrot.slane %v623, %v627
    %v629 = vlaneseq
    %v630 = vshrl.u32 %v629, 7
    %v631 = vsub.s32 1, %v630
    %v632 = vrot.slane %v623, %v631
    %v633 = vlaneseq
    %v634 = vshrl.u32 %v633, 7
    %v635 = vsub.s32 2, %v634
    %v636 = vrot.slane %v623, %v635
    %v637 = vlaneseq
    %v638 = vshrl.u32 %v637, 7
    %v639 = vsub.s32 3, %v638
    %v640 = vrot.slane %v623, %v639
    %v709 = vunpack.c.l.b16 %v557
    %v710 = vunpack.c.h.b16 %v557
    %v711 = vunpack.c.l.b16 %v558
    %v712 = vunpack.c.h.b16 %v558
    %v713 = vunpack.c.l.b16 %v559
    %v714 = vunpack.c.h.b16 %v559
    %v715 = vunpack.c.l.b16 %v560
    %v716 = vunpack.c.h.b16 %v560
    %v717 = vunpack.c.l.b16 %v561
    %v718 = vunpack.c.h.b16 %v561
    %v719 = vunpack.c.l.b16 %v562
    %v720 = vunpack.c.h.b16 %v562
    %v721 = vunpack.c.l.b16 %v563
    %v722 = vunpack.c.h.b16 %v563
    %v723 = vunpack.c.l.b16 %v564
    %v724 = vunpack.c.h.b16 %v564
    %v725 = vunpack.c.l.b16 %v565
    %v726 = vunpack.c.h.b16 %v565
    %v727 = vunpack.c.l.b16 %v566
    %v728 = vunpack.c.h.b16 %v566
    %v729 = vunpack.c.l.b16 %v567
    %v730 = vunpack.c.h.b16 %v567
    %v731 = vunpack.c.l.b16 %v568
    %v732 = vunpack.c.h.b16 %v568
    %v733 = vunpack.c.l.b16 %v569
    %v734 = vunpack.c.h.b16 %v569
    %v735 = vunpack.c.l.b16 %v570
    %v736 = vunpack.c.h.b16 %v570
    %v737 = vunpack.c.l.b16 %v571
    %v738 = vunpack.c.h.b16 %v571
    %v739 = vunpack.c.l.b16 %v572
    %v740 = vunpack.c.h.b16 %v572
    %v741 = vunpack.c.l.b16 %v573
    %v742 = vunpack.c.h.b16 %v573
    %v743 = vunpack.c.l.b16 %v574
    %v744 = vunpack.c.h.b16 %v574
    %v745 = vunpack.c.l.b16 %v575
    %v746 = vunpack.c.h.b16 %v575
    %v747 = vunpack.c.l.b16 %v576
    %v748 = vunpack.c.h.b16 %v576
    %v749 = vunpack.c.l.b16 %v577
    %v750 = vunpack.c.h.b16 %v577
    %v751 = vunpack.c.l.b16 %v578
    %v752 = vunpack.c.h.b16 %v578
    %v753 = vunpack.c.l.b16 %v579
    %v754 = vunpack.c.h.b16 %v579
    %v755 = vunpack.c.l.b16 %v580
    %v756 = vunpack.c.h.b16 %v580
    %v757 = vunpack.c.l.b16 %v581
    %v758 = vunpack.c.h.b16 %v581
    %v759 = vunpack.c.l.b16 %v582
    %v760 = vunpack.c.h.b16 %v582
    %v761 = vunpack.c.l.b16 %v583
    %v762 = vunpack.c.h.b16 %v583
    %v763 = vunpack.c.l.b16 %v584
    %v764 = vunpack.c.h.b16 %v584
    %v765 = vunpack.c.l.b16 %v585
    %v766 = vunpack.c.h.b16 %v585
    %v767 = vunpack.c.l.b16 %v586
    %v768 = vunpack.c.h.b16 %v586
    %v769 = vunpack.c.l.b16 %v587
    %v770 = vunpack.c.h.b16 %v587
    %v771 = vunpack.c.l.b16 %v588
    %v772 = vunpack.c.h.b16 %v588
    %v773 = vunpack.c.l.b16 %v589
    %v774 = vunpack.c.h.b16 %v589
    %v775 = vunpack.c.l.b16 %v590
    %v776 = vunpack.c.h.b16 %v590
    %v777 = vunpack.c.l.b16 %v591
    %v778 = vunpack.c.h.b16 %v591
    %v779 = vunpack.c.l.b16 %v592
    %v780 = vunpack.c.h.b16 %v592
    %v781 = vunpack.c.l.b16 %v593
    %v782 = vunpack.c.h.b16 %v593
    %v783 = vunpack.c.l.b16 %v594
    %v784 = vunpack.c.h.b16 %v594
    %v785 = vunpack.c.l.b16 %v595
    %v786 = vunpack.c.h.b16 %v595
    %v787 = vunpack.c.l.b16 %v596
    %v788 = vunpack.c.h.b16 %v596
    %v789 = vunpack.c.l.b16 %v597
    %v790 = vunpack.c.h.b16 %v597
    %v791 = vunpack.c.l.b16 %v598
    %v792 = vunpack.c.h.b16 %v598
    %v793 = vunpack.c.l.b16 %v599
    %v794 = vunpack.c.h.b16 %v599
    %v795 = vunpack.c.l.b16 %v600
    %v796 = vunpack.c.h.b16 %v600
    %v797 = vunpack.c.l.b16 %v601
    %v798 = vunpack.c.h.b16 %v601
    %v799 = vunpack.c.l.b16 %v602
    %v800 = vunpack.c.h.b16 %v602
    %v801 = vunpack.c.l.b16 %v603
    %v802 = vunpack.c.h.b16 %v603
    %v803 = vunpack.c.l.b16 %v604
    %v804 = vunpack.c.h.b16 %v604
    %v805 = vunpack.c.l.b16 %v605
    %v806 = vunpack.c.h.b16 %v605
    %v807 = vunpack.c.l.b16 %v606
    %v808 = vunpack.c.h.b16 %v606
    %v809 = vunpack.c.l.b16 %v607
    %v810 = vunpack.c.h.b16 %v607
    %v811 = vunpack.c.l.b16 %v608
    %v812 = vunpack.c.h.b16 %v608
    %v813 = vunpack.c.l.b16 %v609
    %v814 = vunpack.c.h.b16 %v609
    %v815 = vunpack.c.l.b16 %v610
    %v816 = vunpack.c.h.b16 %v610
    %v817 = vunpack.c.l.b16 %v611
    %v818 = vunpack.c.h.b16 %v611
    %v819 = vunpack.c.l.b16 %v612
    %v820 = vunpack.c.h.b16 %v612
    %v821 = vunpack.c.l.b16 %v613
    %v822 = vunpack.c.h.b16 %v613
    %v823 = vunpack.c.l.b16 %v614
    %v824 = vunpack.c.h.b16 %v614
    %v825 = vunpack.c.l.b16 %v615
    %v826 = vunpack.c.h.b16 %v615
    %v827 = vunpack.c.l.b16 %v616
    %v828 = vunpack.c.h.b16 %v616
    %v829 = vunpack.c.l.b16 %v617
    %v830 = vunpack.c.h.b16 %v617
    %v831 = vunpack.c.l.b16 %v618
    %v832 = vunpack.c.h.b16 %v618
    %v833 = vunpack.c.l.b16 %v619
    %v834 = vunpack.c.h.b16 %v619
    %v835 = vunpack.c.l.b16 %v620
    %v836 = vunpack.c.h.b16 %v620
    %v837 = vpack.c.b16 %v713, %v709
    %v838 = vpack.c.b16 %v714, %v710
    %v839 = vpack.c.b16 %v715, %v711
    %v840 = vpack.c.b16 %v716, %v712
    %v841 = vpack.c.b16 %v721, %v717
    %v842 = vpack.c.b16 %v722, %v718
    %v843 = vpack.c.b16 %v723, %v719
    %v844 = vpack.c.b16 %v724, %v720
    %v845 = vpack.c.b16 %v729, %v725
    %v846 = vpack.c.b16 %v730, %v726
    %v847 = vpack.c.b16 %v731, %v727
    %v848 = vpack.c.b16 %v732, %v728
    %v849 = vpack.c.b16 %v737, %v733
    %v850 = vpack.c.b16 %v738, %v734
    %v851 = vpack.c.b16 %v739, %v735
    %v852 = vpack.c.b16 %v740, %v736
    %v853 = vpack.c.b16 %v745, %v741
    %v854 = vpack.c.b16 %v746, %v742
    %v855 = vpack.c.b16 %v747, %v743
    %v856 = vpack.c.b16 %v748, %v744
    %v857 = vpack.c.b16 %v753, %v749
    %v858 = vpack.c.b16 %v754, %v750
    %v859 = vpack.c.b16 %v755, %v751
    %v860 = vpack.c.b16 %v756, %v752
    %v861 = vpack.c.b16 %v761, %v757
    %v862 = vpack.c.b16 %v762, %v758
    %v863 = vpack.c.b16 %v763, %v759
    %v864 = vpack.c.b16 %v764, %v760
    %v865 = vpack.c.b16 %v769, %v765
    %v866 = vpack.c.b16 %v770, %v766
    %v867 = vpack.c.b16 %v771, %v767
    %v868 = vpack.c.b16 %v772, %v768
    %v869 = vpack.c.b16 %v777, %v773
    %v870 = vpack.c.b16 %v778, %v774
    %v871 = vpack.c.b16 %v779, %v775
    %v872 = vpack.c.b16 %v780, %v776
    %v873 = vpack.c.b16 %v785, %v781
    %v874 = vpack.c.b16 %v786, %v782
    %v875 = vpack.c.b16 %v787, %v783
    %v876 = vpack.c.b16 %v788, %v784
    %v877 = vpack.c.b16 %v793, %v789
    %v878 = vpack.c.b16 %v794, %v790
    %v879 = vpack.c.b16 %v795, %v791
    %v880 = vpack.c.b16 %v796, %v792
    %v881 = vpack.c.b16 %v801, %v797
    %v882 = vpack.c.b16 %v802, %v798
    %v883 = vpack.c.b16 %v803, %v799
    %v884 = vpack.c.b16 %v804, %v800
    %v885 = vpack.c.b16 %v809, %v805
    %v886 = vpack.c.b16 %v810, %v806
    %v887 = vpack.c.b16 %v811, %v807
    %v888 = vpack.c.b16 %v812, %v808
    %v889 = vpack.c.b16 %v817, %v813
    %v890 = vpack.c.b16 %v818, %v814
    %v891 = vpack.c.b16 %v819, %v815
    %v892 = vpack.c.b16 %v820, %v816
    %v893 = vpack.c.b16 %v825, %v821
    %v894 = vpack.c.b16 %v826, %v822
    %v895 = vpack.c.b16 %v827, %v823
    %v896 = vpack.c.b16 %v828, %v824
    %v897 = vpack.c.b16 %v833, %v829
    %v898 = vpack.c.b16 %v834, %v830
    %v899 = vpack.c.b16 %v835, %v831
    %v900 = vpack.c.b16 %v836, %v832
    %965 = vmatprep.subr.bf16.mxu0 %v838
    %966 = vmatpush1.bf16.msra.mxu0 %v837
    %967 = vmatprep.subr.bf16.mxu0 %v842
    %968 = vmatpush1.bf16.msra.mxu0 %v841
    %969 = vmatprep.subr.bf16.mxu0 %v846
    %970 = vmatpush1.bf16.msra.mxu0 %v845
    %971 = vmatprep.subr.bf16.mxu0 %v850
    %972 = vmatpush1.bf16.msra.mxu0 %v849
    %973 = vmatprep.subr.bf16.mxu0 %v854
    %974 = vmatpush1.bf16.msra.mxu0 %v853
    %975 = vmatprep.subr.bf16.mxu0 %v858
    %976 = vmatpush1.bf16.msra.mxu0 %v857
    %977 = vmatprep.subr.bf16.mxu0 %v862
    %978 = vmatpush1.bf16.msra.mxu0 %v861
    %979 = vmatprep.subr.bf16.mxu0 %v866
    %980 = vmatpush1.bf16.msra.mxu0 %v865
    %981 = vmatprep.subr.bf16.mxu0 %v870
    %982 = vmatpush1.bf16.msra.mxu0 %v869
    %983 = vmatprep.subr.bf16.mxu0 %v874
    %984 = vmatpush1.bf16.msra.mxu0 %v873
    %985 = vmatprep.subr.bf16.mxu0 %v878
    %986 = vmatpush1.bf16.msra.mxu0 %v877
    %987 = vmatprep.subr.bf16.mxu0 %v882
    %988 = vmatpush1.bf16.msra.mxu0 %v881
    %989 = vmatprep.subr.bf16.mxu0 %v886
    %990 = vmatpush1.bf16.msra.mxu0 %v885
    %991 = vmatprep.subr.bf16.mxu0 %v890
    %992 = vmatpush1.bf16.msra.mxu0 %v889
    %993 = vmatprep.subr.bf16.mxu0 %v894
    %994 = vmatpush1.bf16.msra.mxu0 %v893
    %995 = vmatprep.subr.bf16.mxu0 %v898
    %996 = vmatpush1.bf16.msra.mxu0 %v897
    %997 = vmatprep.mubr.bf16.mxu0 %v622
    %998 = vmatmul.mubr.bf16.gmra.mrb[0].mxu0 %v621
    %v999 = vpop.f32.mrb[0].mxu0
    %v1000 = vadd.f32 %v628, %v999
    %v1001 = vpop.f32.mrb[0].mxu0
    %v1002 = vadd.f32 %v632, %v1001
    %v1003 = vpop.f32.mrb[0].mxu0
    %v1004 = vpop.f32.mrb[0].mxu0
    %1005 = vdwg.mxu0
    %1006 = vmatprep.subr.bf16.mxu0 %v840
    %1007 = vmatpush1.bf16.msra.mxu0 %v839
    %1008 = vmatprep.subr.bf16.mxu0 %v844
    %1009 = vmatpush1.bf16.msra.mxu0 %v843
    %1010 = vmatprep.subr.bf16.mxu0 %v848
    %1011 = vmatpush1.bf16.msra.mxu0 %v847
    %1012 = vmatprep.subr.bf16.mxu0 %v852
    %1013 = vmatpush1.bf16.msra.mxu0 %v851
    %1014 = vmatprep.subr.bf16.mxu0 %v856
    %1015 = vmatpush1.bf16.msra.mxu0 %v855
    %1016 = vmatprep.subr.bf16.mxu0 %v860
    %1017 = vmatpush1.bf16.msra.mxu0 %v859
    %1018 = vmatprep.subr.bf16.mxu0 %v864
    %1019 = vmatpush1.bf16.msra.mxu0 %v863
    %1020 = vmatprep.subr.bf16.mxu0 %v868
    %1021 = vmatpush1.bf16.msra.mxu0 %v867
    %1022 = vmatprep.subr.bf16.mxu0 %v872
    %1023 = vmatpush1.bf16.msra.mxu0 %v871
    %1024 = vmatprep.subr.bf16.mxu0 %v876
    %1025 = vmatpush1.bf16.msra.mxu0 %v875
    %1026 = vmatprep.subr.bf16.mxu0 %v880
    %1027 = vmatpush1.bf16.msra.mxu0 %v879
    %1028 = vmatprep.subr.bf16.mxu0 %v884
    %1029 = vmatpush1.bf16.msra.mxu0 %v883
    %1030 = vmatprep.subr.bf16.mxu0 %v888
    %1031 = vmatpush1.bf16.msra.mxu0 %v887
    %1032 = vmatprep.subr.bf16.mxu0 %v892
    %1033 = vmatpush1.bf16.msra.mxu0 %v891
    %1034 = vmatprep.subr.bf16.mxu0 %v896
    %1035 = vmatpush1.bf16.msra.mxu0 %v895
    %1036 = vmatprep.subr.bf16.mxu0 %v900
    %1037 = vmatpush1.bf16.msra.mxu0 %v899
    %1038 = vmatprep.mubr.bf16.mxu0 %v622
    %1039 = vmatmul.mubr.bf16.gmra.mrb[0].mxu0 %v621
    %v1040 = vpop.f32.mrb[0].mxu0
    %v1041 = vadd.f32 %v636, %v1040
    %v1042 = vpop.f32.mrb[0].mxu0
    %v1043 = vadd.f32 %v640, %v1042
    %v1044 = vpop.f32.mrb[0].mxu0
    %v1045 = vpop.f32.mrb[0].mxu0
    %1046 = vdwg.mxu0
    %v1047 = vld [vmem:[%s9] sm:$0xf]
    %v1048 = vld [vmem:[%s10] sm:$0xf]
    %v1049 = vrot.slane %v1000, 4
    %v1050 = vadd.f32 %v1000, %v1049
    %v1051 = vrot.slane %v1050, 2
    %v1052 = vadd.f32 %v1050, %v1051
    %v1053 = vrot.slane %v1052, 1
    %v1054 = vadd.f32 %v1052, %v1053
    %v1055 = vrot.slane %v1002, 4
    %v1056 = vadd.f32 %v1002, %v1055
    %v1057 = vrot.slane %v1056, 2
    %v1058 = vadd.f32 %v1056, %v1057
    %v1059 = vrot.slane %v1058, 1
    %v1060 = vadd.f32 %v1058, %v1059
    %v1061 = vrot.slane %v1041, 4
    %v1062 = vadd.f32 %v1041, %v1061
    %v1063 = vrot.slane %v1062, 2
    %v1064 = vadd.f32 %v1062, %v1063
    %v1065 = vrot.slane %v1064, 1
    %v1066 = vadd.f32 %v1064, %v1065
    %v1067 = vrot.slane %v1043, 4
    %v1068 = vadd.f32 %v1043, %v1067
    %v1069 = vrot.slane %v1068, 2
    %v1070 = vadd.f32 %v1068, %v1069
    %v1071 = vrot.slane %v1070, 1
    %v1072 = vadd.f32 %v1070, %v1071
    %v1073 = vmul.f32 %v1000, %v1000
    %v1074 = vmul.f32 %v1002, %v1002
    %v1075 = vmul.f32 %v1041, %v1041
    %v1076 = vmul.f32 %v1043, %v1043
    %v1077 = vrot.slane %v1073, 4
    %v1078 = vadd.f32 %v1073, %v1077
    %v1079 = vrot.slane %v1078, 2
    %v1080 = vadd.f32 %v1078, %v1079
    %v1081 = vrot.slane %v1080, 1
    %v1082 = vadd.f32 %v1080, %v1081
    %v1083 = vrot.slane %v1074, 4
    %v1084 = vadd.f32 %v1074, %v1083
    %v1085 = vrot.slane %v1084, 2
    %v1086 = vadd.f32 %v1084, %v1085
    %v1087 = vrot.slane %v1086, 1
    %v1088 = vadd.f32 %v1086, %v1087
    %v1089 = vrot.slane %v1075, 4
    %v1090 = vadd.f32 %v1075, %v1089
    %v1091 = vrot.slane %v1090, 2
    %v1092 = vadd.f32 %v1090, %v1091
    %v1093 = vrot.slane %v1092, 1
    %v1094 = vadd.f32 %v1092, %v1093
    %v1095 = vrot.slane %v1076, 4
    %v1096 = vadd.f32 %v1076, %v1095
    %v1097 = vrot.slane %v1096, 2
    %v1098 = vadd.f32 %v1096, %v1097
    %v1099 = vrot.slane %v1098, 1
    %v1100 = vadd.f32 %v1098, %v1099
    %v1101 = vmul.f32 %v1054, 0.125
    %v1102 = vmul.f32 %v1060, 0.125
    %v1103 = vmul.f32 %v1066, 0.125
    %v1104 = vmul.f32 %v1072, 0.125
    %v1105 = vmul.f32 %v1082, 0.125
    %v1106 = vmul.f32 %v1088, 0.125
    %v1107 = vmul.f32 %v1094, 0.125
    %v1108 = vmul.f32 %v1100, 0.125
    %v1109 = vmul.f32 %v1101, %v1101
    %v1110 = vmul.f32 %v1102, %v1102
    %v1111 = vmul.f32 %v1103, %v1103
    %v1112 = vmul.f32 %v1104, %v1104
    %v1113 = vsub.f32 %v1105, %v1109
    %v1114 = vsub.f32 %v1106, %v1110
    %v1115 = vsub.f32 %v1107, %v1111
    %v1116 = vsub.f32 %v1108, %v1112
    %v1117 = vsub.f32 %v1000, %v1101
    %v1118 = vsub.f32 %v1002, %v1102
    %v1119 = vsub.f32 %v1041, %v1103
    %v1120 = vsub.f32 %v1043, %v1104
    %v1121 = vadd.f32 %v1113, 0.8
    %v1122 = vadd.f32 %v1114, 0.8
    %v1123 = vadd.f32 %v1115, 0.8
    %v1124 = vadd.f32 %v1116, 0.8
    %v1125 = vrsqrt.pop %v1121
    %v1126 = vrsqrt.pop %v1122
    %v1127 = vrsqrt.pop %v1123
    %v1128 = vrsqrt.pop %v1124
    %v1129 = vmul.f32 %v1117, %v1125
    %v1130 = vmul.f32 %v1118, %v1126
    %v1131 = vmul.f32 %v1119, %v1127
    %v1132 = vmul.f32 %v1120, %v1128
    %v1134 = vlaneseq
    %v1135 = vshrl.u32 %v1134, 7
    %v1136 = vsub.s32 0, %v1135
    %v1137 = vrot.slane %v1047, %v1136
    %v1138 = vlaneseq
    %v1139 = vshrl.u32 %v1138, 7
    %v1140 = vsub.s32 1, %v1139
    %v1141 = vrot.slane %v1047, %v1140
    %v1142 = vlaneseq
    %v1143 = vshrl.u32 %v1142, 7
    %v1144 = vsub.s32 2, %v1143
    %v1145 = vrot.slane %v1047, %v1144
    %v1146 = vlaneseq
    %v1147 = vshrl.u32 %v1146, 7
    %v1148 = vsub.s32 3, %v1147
    %v1149 = vrot.slane %v1047, %v1148
    %v1154 = vmul.f32 %v1129, %v1137
    %v1155 = vmul.f32 %v1130, %v1141
    %v1156 = vmul.f32 %v1131, %v1145
    %v1157 = vmul.f32 %v1132, %v1149
    %v1159 = vlaneseq
    %v1160 = vshrl.u32 %v1159, 7
    %v1161 = vsub.s32 0, %v1160
    %v1162 = vrot.slane %v1048, %v1161
    %v1163 = vlaneseq
    %v1164 = vshrl.u32 %v1163, 7
    %v1165 = vsub.s32 1, %v1164
    %v1166 = vrot.slane %v1048, %v1165
    %v1167 = vlaneseq
    %v1168 = vshrl.u32 %v1167, 7
    %v1169 = vsub.s32 2, %v1168
    %v1170 = vrot.slane %v1048, %v1169
    %v1171 = vlaneseq
    %v1172 = vshrl.u32 %v1171, 7
    %v1173 = vsub.s32 3, %v1172
    %v1174 = vrot.slane %v1048, %v1173
    %v1179 = vadd.f32 %v1154, %v1162
    %v1180 = vadd.f32 %v1155, %v1166
    %v1181 = vadd.f32 %v1156, %v1170
    %v1182 = vadd.f32 %v1157, %v1174
    %v1183 = vmul.f32 %v1179, 0.2
    %v1184 = vmul.f32 %v1180, 0.2
    %v1185 = vmul.f32 %v1181, 0.2
    %v1186 = vmul.f32 %v1182, 0.2
    %v1187 = vmax.f32 %v1179, %v1183
    %v1188 = vmax.f32 %v1180, %v1184
    %v1189 = vmax.f32 %v1181, %v1185
    %v1190 = vmax.f32 %v1182, %v1186
    %v1191 = vld [vmem:[#allocation14] sm:$0xff]
    %v1192 = vld [vmem:[#allocation14 + $0x8] sm:$0xff]
    %v1193 = vld [vmem:[#allocation14 + $0x10] sm:$0xff]
    %v1194 = vld [vmem:[#allocation14 + $0x18] sm:$0xff]
    %v1195 = vld [vmem:[#allocation14 + $0x20] sm:$0xff]
    %v1196 = vld [vmem:[#allocation14 + $0x28] sm:$0xff]
    %v1197 = vld [vmem:[#allocation14 + $0x30] sm:$0xff]
    %v1198 = vld [vmem:[#allocation14 + $0x38] sm:$0xff]
    %v1199 = vld [vmem:[#allocation14 + $0x40] sm:$0xff]
    %v1200 = vld [vmem:[#allocation14 + $0x48] sm:$0xff]
    %v1201 = vld [vmem:[#allocation14 + $0x50] sm:$0xff]
    %v1202 = vld [vmem:[#allocation14 + $0x58] sm:$0xff]
    %v1203 = vld [vmem:[#allocation14 + $0x60] sm:$0xff]
    %v1204 = vld [vmem:[#allocation14 + $0x68] sm:$0xff]
    %v1205 = vld [vmem:[#allocation14 + $0x70] sm:$0xff]
    %v1206 = vld [vmem:[#allocation14 + $0x78] sm:$0xff]
    %v1207 = vld [vmem:[#allocation14 + $0x80] sm:$0xff]
    %v1208 = vld [vmem:[#allocation14 + $0x88] sm:$0xff]
    %v1209 = vld [vmem:[#allocation14 + $0x90] sm:$0xff]
    %v1210 = vld [vmem:[#allocation14 + $0x98] sm:$0xff]
    %v1211 = vld [vmem:[#allocation14 + $0xa0] sm:$0xff]
    %v1212 = vld [vmem:[#allocation14 + $0xa8] sm:$0xff]
    %v1213 = vld [vmem:[#allocation14 + $0xb0] sm:$0xff]
    %v1214 = vld [vmem:[#allocation14 + $0xb8] sm:$0xff]
    %v1215 = vld [vmem:[#allocation14 + $0xc0] sm:$0xff]
    %v1216 = vld [vmem:[#allocation14 + $0xc8] sm:$0xff]
    %v1217 = vld [vmem:[#allocation14 + $0xd0] sm:$0xff]
    %v1218 = vld [vmem:[#allocation14 + $0xd8] sm:$0xff]
    %v1219 = vld [vmem:[#allocation14 + $0xe0] sm:$0xff]
    %v1220 = vld [vmem:[#allocation14 + $0xe8] sm:$0xff]
    %v1221 = vld [vmem:[#allocation14 + $0xf0] sm:$0xff]
    %v1222 = vld [vmem:[#allocation14 + $0xf8] sm:$0xff]
    %v1223 = vld [vmem:[#allocation14 + $0x100] sm:$0xff]
    %v1224 = vld [vmem:[#allocation14 + $0x108] sm:$0xff]
    %v1225 = vld [vmem:[#allocation14 + $0x110] sm:$0xff]
    %v1226 = vld [vmem:[#allocation14 + $0x118] sm:$0xff]
    %v1227 = vld [vmem:[#allocation14 + $0x120] sm:$0xff]
    %v1228 = vld [vmem:[#allocation14 + $0x128] sm:$0xff]
    %v1229 = vld [vmem:[#allocation14 + $0x130] sm:$0xff]
    %v1230 = vld [vmem:[#allocation14 + $0x138] sm:$0xff]
    %v1231 = vld [vmem:[#allocation14 + $0x140] sm:$0xff]
    %v1232 = vld [vmem:[#allocation14 + $0x148] sm:$0xff]
    %v1233 = vld [vmem:[#allocation14 + $0x150] sm:$0xff]
    %v1234 = vld [vmem:[#allocation14 + $0x158] sm:$0xff]
    %v1235 = vld [vmem:[#allocation14 + $0x160] sm:$0xff]
    %v1236 = vld [vmem:[#allocation14 + $0x168] sm:$0xff]
    %v1237 = vld [vmem:[#allocation14 + $0x170] sm:$0xff]
    %v1238 = vld [vmem:[#allocation14 + $0x178] sm:$0xff]
    %v1239 = vld [vmem:[#allocation14 + $0x180] sm:$0xff]
    %v1240 = vld [vmem:[#allocation14 + $0x188] sm:$0xff]
    %v1241 = vld [vmem:[#allocation14 + $0x190] sm:$0xff]
    %v1242 = vld [vmem:[#allocation14 + $0x198] sm:$0xff]
    %v1243 = vld [vmem:[#allocation14 + $0x1a0] sm:$0xff]
    %v1244 = vld [vmem:[#allocation14 + $0x1a8] sm:$0xff]
    %v1245 = vld [vmem:[#allocation14 + $0x1b0] sm:$0xff]
    %v1246 = vld [vmem:[#allocation14 + $0x1b8] sm:$0xff]
    %v1247 = vld [vmem:[#allocation14 + $0x1c0] sm:$0xff]
    %v1248 = vld [vmem:[#allocation14 + $0x1c8] sm:$0xff]
    %v1249 = vld [vmem:[#allocation14 + $0x1d0] sm:$0xff]
    %v1250 = vld [vmem:[#allocation14 + $0x1d8] sm:$0xff]
    %v1251 = vld [vmem:[#allocation14 + $0x1e0] sm:$0xff]
    %v1252 = vld [vmem:[#allocation14 + $0x1e8] sm:$0xff]
    %v1253 = vld [vmem:[#allocation14 + $0x1f0] sm:$0xff]
    %v1254 = vld [vmem:[#allocation14 + $0x1f8] sm:$0xff]
    %v1255 = vld [vmem:[#allocation14 + $0x200] sm:$0xff]
    %v1256 = vld [vmem:[#allocation14 + $0x208] sm:$0xff]
    %v1257 = vld [vmem:[#allocation14 + $0x210] sm:$0xff]
    %v1258 = vld [vmem:[#allocation14 + $0x218] sm:$0xff]
    %v1259 = vld [vmem:[#allocation14 + $0x220] sm:$0xff]
    %v1260 = vld [vmem:[#allocation14 + $0x228] sm:$0xff]
    %v1261 = vld [vmem:[#allocation14 + $0x230] sm:$0xff]
    %v1262 = vld [vmem:[#allocation14 + $0x238] sm:$0xff]
    %v1263 = vld [vmem:[#allocation14 + $0x240] sm:$0xff]
    %v1264 = vld [vmem:[#allocation14 + $0x248] sm:$0xff]
    %v1265 = vld [vmem:[#allocation14 + $0x250] sm:$0xff]
    %v1266 = vld [vmem:[#allocation14 + $0x258] sm:$0xff]
    %v1267 = vld [vmem:[#allocation14 + $0x260] sm:$0xff]
    %v1268 = vld [vmem:[#allocation14 + $0x268] sm:$0xff]
    %v1269 = vld [vmem:[#allocation14 + $0x270] sm:$0xff]
    %v1270 = vld [vmem:[#allocation14 + $0x278] sm:$0xff]
    %v1271 = vld [vmem:[#allocation14 + $0x280] sm:$0xff]
    %v1272 = vld [vmem:[#allocation14 + $0x288] sm:$0xff]
    %v1273 = vld [vmem:[#allocation14 + $0x290] sm:$0xff]
    %v1274 = vld [vmem:[#allocation14 + $0x298] sm:$0xff]
    %v1275 = vld [vmem:[#allocation14 + $0x2a0] sm:$0xff]
    %v1276 = vld [vmem:[#allocation14 + $0x2a8] sm:$0xff]
    %v1277 = vld [vmem:[#allocation14 + $0x2b0] sm:$0xff]
    %v1278 = vld [vmem:[#allocation14 + $0x2b8] sm:$0xff]
    %v1279 = vld [vmem:[#allocation14 + $0x2c0] sm:$0xff]
    %v1280 = vld [vmem:[#allocation14 + $0x2c8] sm:$0xff]
    %v1281 = vld [vmem:[#allocation14 + $0x2d0] sm:$0xff]
    %v1282 = vld [vmem:[#allocation14 + $0x2d8] sm:$0xff]
    %v1283 = vld [vmem:[#allocation14 + $0x2e0] sm:$0xff]
    %v1284 = vld [vmem:[#allocation14 + $0x2e8] sm:$0xff]
    %v1285 = vld [vmem:[#allocation14 + $0x2f0] sm:$0xff]
    %v1286 = vld [vmem:[#allocation14 + $0x2f8] sm:$0xff]
    %v1287 = vld [vmem:[#allocation14 + $0x300] sm:$0xff]
    %v1288 = vld [vmem:[#allocation14 + $0x308] sm:$0xff]
    %v1289 = vld [vmem:[#allocation14 + $0x310] sm:$0xff]
    %v1290 = vld [vmem:[#allocation14 + $0x318] sm:$0xff]
    %v1291 = vld [vmem:[#allocation14 + $0x320] sm:$0xff]
    %v1292 = vld [vmem:[#allocation14 + $0x328] sm:$0xff]
    %v1293 = vld [vmem:[#allocation14 + $0x330] sm:$0xff]
    %v1294 = vld [vmem:[#allocation14 + $0x338] sm:$0xff]
    %v1295 = vld [vmem:[#allocation14 + $0x340] sm:$0xff]
    %v1296 = vld [vmem:[#allocation14 + $0x348] sm:$0xff]
    %v1297 = vld [vmem:[#allocation14 + $0x350] sm:$0xff]
    %v1298 = vld [vmem:[#allocation14 + $0x358] sm:$0xff]
    %v1299 = vld [vmem:[#allocation14 + $0x360] sm:$0xff]
    %v1300 = vld [vmem:[#allocation14 + $0x368] sm:$0xff]
    %v1301 = vld [vmem:[#allocation14 + $0x370] sm:$0xff]
    %v1302 = vld [vmem:[#allocation14 + $0x378] sm:$0xff]
    %v1303 = vld [vmem:[#allocation14 + $0x380] sm:$0xff]
    %v1304 = vld [vmem:[#allocation14 + $0x388] sm:$0xff]
    %v1305 = vld [vmem:[#allocation14 + $0x390] sm:$0xff]
    %v1306 = vld [vmem:[#allocation14 + $0x398] sm:$0xff]
    %v1307 = vld [vmem:[#allocation14 + $0x3a0] sm:$0xff]
    %v1308 = vld [vmem:[#allocation14 + $0x3a8] sm:$0xff]
    %v1309 = vld [vmem:[#allocation14 + $0x3b0] sm:$0xff]
    %v1310 = vld [vmem:[#allocation14 + $0x3b8] sm:$0xff]
    %v1311 = vld [vmem:[#allocation14 + $0x3c0] sm:$0xff]
    %v1312 = vld [vmem:[#allocation14 + $0x3c8] sm:$0xff]
    %v1313 = vld [vmem:[#allocation14 + $0x3d0] sm:$0xff]
    %v1314 = vld [vmem:[#allocation14 + $0x3d8] sm:$0xff]
    %v1315 = vld [vmem:[#allocation14 + $0x3e0] sm:$0xff]
    %v1316 = vld [vmem:[#allocation14 + $0x3e8] sm:$0xff]
    %v1317 = vld [vmem:[#allocation14 + $0x3f0] sm:$0xff]
    %v1318 = vld [vmem:[#allocation14 + $0x3f8] sm:$0xff]
    %v1319 = vld [vmem:[#allocation14 + $0x400] sm:$0xff]
    %v1320 = vld [vmem:[#allocation14 + $0x408] sm:$0xff]
    %v1321 = vld [vmem:[#allocation14 + $0x410] sm:$0xff]
    %v1322 = vld [vmem:[#allocation14 + $0x418] sm:$0xff]
    %v1323 = vld [vmem:[#allocation14 + $0x420] sm:$0xff]
    %v1324 = vld [vmem:[#allocation14 + $0x428] sm:$0xff]
    %v1325 = vld [vmem:[#allocation14 + $0x430] sm:$0xff]
    %v1326 = vld [vmem:[#allocation14 + $0x438] sm:$0xff]
    %v1327 = vld [vmem:[#allocation14 + $0x440] sm:$0xff]
    %v1328 = vld [vmem:[#allocation14 + $0x448] sm:$0xff]
    %v1329 = vld [vmem:[#allocation14 + $0x450] sm:$0xff]
    %v1330 = vld [vmem:[#allocation14 + $0x458] sm:$0xff]
    %v1331 = vld [vmem:[#allocation14 + $0x460] sm:$0xff]
    %v1332 = vld [vmem:[#allocation14 + $0x468] sm:$0xff]
    %v1333 = vld [vmem:[#allocation14 + $0x470] sm:$0xff]
    %v1334 = vld [vmem:[#allocation14 + $0x478] sm:$0xff]
    %v1335 = vld [vmem:[#allocation14 + $0x480] sm:$0xff]
    %v1336 = vld [vmem:[#allocation14 + $0x488] sm:$0xff]
    %v1337 = vld [vmem:[#allocation14 + $0x490] sm:$0xff]
    %v1338 = vld [vmem:[#allocation14 + $0x498] sm:$0xff]
    %v1339 = vld [vmem:[#allocation14 + $0x4a0] sm:$0xff]
    %v1340 = vld [vmem:[#allocation14 + $0x4a8] sm:$0xff]
    %v1341 = vld [vmem:[#allocation14 + $0x4b0] sm:$0xff]
    %v1342 = vld [vmem:[#allocation14 + $0x4b8] sm:$0xff]
    %v1343 = vld [vmem:[#allocation14 + $0x4c0] sm:$0xff]
    %v1344 = vld [vmem:[#allocation14 + $0x4c8] sm:$0xff]
    %v1345 = vld [vmem:[#allocation14 + $0x4d0] sm:$0xff]
    %v1346 = vld [vmem:[#allocation14 + $0x4d8] sm:$0xff]
    %v1347 = vld [vmem:[#allocation14 + $0x4e0] sm:$0xff]
    %v1348 = vld [vmem:[#allocation14 + $0x4e8] sm:$0xff]
    %v1349 = vld [vmem:[#allocation14 + $0x4f0] sm:$0xff]
    %v1350 = vld [vmem:[#allocation14 + $0x4f8] sm:$0xff]
    %v1351 = vld [vmem:[#allocation14 + $0x500] sm:$0xff]
    %v1352 = vld [vmem:[#allocation14 + $0x508] sm:$0xff]
    %v1353 = vld [vmem:[#allocation14 + $0x510] sm:$0xff]
    %v1354 = vld [vmem:[#allocation14 + $0x518] sm:$0xff]
    %v1355 = vld [vmem:[#allocation14 + $0x520] sm:$0xff]
    %v1356 = vld [vmem:[#allocation14 + $0x528] sm:$0xff]
    %v1357 = vld [vmem:[#allocation14 + $0x530] sm:$0xff]
    %v1358 = vld [vmem:[#allocation14 + $0x538] sm:$0xff]
    %v1359 = vld [vmem:[#allocation14 + $0x540] sm:$0xff]
    %v1360 = vld [vmem:[#allocation14 + $0x548] sm:$0xff]
    %v1361 = vld [vmem:[#allocation14 + $0x550] sm:$0xff]
    %v1362 = vld [vmem:[#allocation14 + $0x558] sm:$0xff]
    %v1363 = vld [vmem:[#allocation14 + $0x560] sm:$0xff]
    %v1364 = vld [vmem:[#allocation14 + $0x568] sm:$0xff]
    %v1365 = vld [vmem:[#allocation14 + $0x570] sm:$0xff]
    %v1366 = vld [vmem:[#allocation14 + $0x578] sm:$0xff]
    %v1367 = vld [vmem:[#allocation14 + $0x580] sm:$0xff]
    %v1368 = vld [vmem:[#allocation14 + $0x588] sm:$0xff]
    %v1369 = vld [vmem:[#allocation14 + $0x590] sm:$0xff]
    %v1370 = vld [vmem:[#allocation14 + $0x598] sm:$0xff]
    %v1371 = vld [vmem:[#allocation14 + $0x5a0] sm:$0xff]
    %v1372 = vld [vmem:[#allocation14 + $0x5a8] sm:$0xff]
    %v1373 = vld [vmem:[#allocation14 + $0x5b0] sm:$0xff]
    %v1374 = vld [vmem:[#allocation14 + $0x5b8] sm:$0xff]
    %v1375 = vld [vmem:[#allocation14 + $0x5c0] sm:$0xff]
    %v1376 = vld [vmem:[#allocation14 + $0x5c8] sm:$0xff]
    %v1377 = vld [vmem:[#allocation14 + $0x5d0] sm:$0xff]
    %v1378 = vld [vmem:[#allocation14 + $0x5d8] sm:$0xff]
    %v1379 = vld [vmem:[#allocation14 + $0x5e0] sm:$0xff]
    %v1380 = vld [vmem:[#allocation14 + $0x5e8] sm:$0xff]
    %v1381 = vld [vmem:[#allocation14 + $0x5f0] sm:$0xff]
    %v1382 = vld [vmem:[#allocation14 + $0x5f8] sm:$0xff]
    %v1383 = vld [vmem:[#allocation14 + $0x600] sm:$0xff]
    %v1384 = vld [vmem:[#allocation14 + $0x608] sm:$0xff]
    %v1385 = vld [vmem:[#allocation14 + $0x610] sm:$0xff]
    %v1386 = vld [vmem:[#allocation14 + $0x618] sm:$0xff]
    %v1387 = vld [vmem:[#allocation14 + $0x620] sm:$0xff]
    %v1388 = vld [vmem:[#allocation14 + $0x628] sm:$0xff]
    %v1389 = vld [vmem:[#allocation14 + $0x630] sm:$0xff]
    %v1390 = vld [vmem:[#allocation14 + $0x638] sm:$0xff]
    %v1391 = vld [vmem:[#allocation14 + $0x640] sm:$0xff]
    %v1392 = vld [vmem:[#allocation14 + $0x648] sm:$0xff]
    %v1393 = vld [vmem:[#allocation14 + $0x650] sm:$0xff]
    %v1394 = vld [vmem:[#allocation14 + $0x658] sm:$0xff]
    %v1395 = vld [vmem:[#allocation14 + $0x660] sm:$0xff]
    %v1396 = vld [vmem:[#allocation14 + $0x668] sm:$0xff]
    %v1397 = vld [vmem:[#allocation14 + $0x670] sm:$0xff]
    %v1398 = vld [vmem:[#allocation14 + $0x678] sm:$0xff]
    %v1399 = vld [vmem:[#allocation14 + $0x680] sm:$0xff]
    %v1400 = vld [vmem:[#allocation14 + $0x688] sm:$0xff]
    %v1401 = vld [vmem:[#allocation14 + $0x690] sm:$0xff]
    %v1402 = vld [vmem:[#allocation14 + $0x698] sm:$0xff]
    %v1403 = vld [vmem:[#allocation14 + $0x6a0] sm:$0xff]
    %v1404 = vld [vmem:[#allocation14 + $0x6a8] sm:$0xff]
    %v1405 = vld [vmem:[#allocation14 + $0x6b0] sm:$0xff]
    %v1406 = vld [vmem:[#allocation14 + $0x6b8] sm:$0xff]
    %v1407 = vld [vmem:[#allocation14 + $0x6c0] sm:$0xff]
    %v1408 = vld [vmem:[#allocation14 + $0x6c8] sm:$0xff]
    %v1409 = vld [vmem:[#allocation14 + $0x6d0] sm:$0xff]
    %v1410 = vld [vmem:[#allocation14 + $0x6d8] sm:$0xff]
    %v1411 = vld [vmem:[#allocation14 + $0x6e0] sm:$0xff]
    %v1412 = vld [vmem:[#allocation14 + $0x6e8] sm:$0xff]
    %v1413 = vld [vmem:[#allocation14 + $0x6f0] sm:$0xff]
    %v1414 = vld [vmem:[#allocation14 + $0x6f8] sm:$0xff]
    %v1415 = vld [vmem:[#allocation14 + $0x700] sm:$0xff]
    %v1416 = vld [vmem:[#allocation14 + $0x708] sm:$0xff]
    %v1417 = vld [vmem:[#allocation14 + $0x710] sm:$0xff]
    %v1418 = vld [vmem:[#allocation14 + $0x718] sm:$0xff]
    %v1419 = vld [vmem:[#allocation14 + $0x720] sm:$0xff]
    %v1420 = vld [vmem:[#allocation14 + $0x728] sm:$0xff]
    %v1421 = vld [vmem:[#allocation14 + $0x730] sm:$0xff]
    %v1422 = vld [vmem:[#allocation14 + $0x738] sm:$0xff]
    %v1423 = vld [vmem:[#allocation14 + $0x740] sm:$0xff]
    %v1424 = vld [vmem:[#allocation14 + $0x748] sm:$0xff]
    %v1425 = vld [vmem:[#allocation14 + $0x750] sm:$0xff]
    %v1426 = vld [vmem:[#allocation14 + $0x758] sm:$0xff]
    %v1427 = vld [vmem:[#allocation14 + $0x760] sm:$0xff]
    %v1428 = vld [vmem:[#allocation14 + $0x768] sm:$0xff]
    %v1429 = vld [vmem:[#allocation14 + $0x770] sm:$0xff]
    %v1430 = vld [vmem:[#allocation14 + $0x778] sm:$0xff]
    %v1431 = vld [vmem:[#allocation14 + $0x780] sm:$0xff]
    %v1432 = vld [vmem:[#allocation14 + $0x788] sm:$0xff]
    %v1433 = vld [vmem:[#allocation14 + $0x790] sm:$0xff]
    %v1434 = vld [vmem:[#allocation14 + $0x798] sm:$0xff]
    %v1435 = vld [vmem:[#allocation14 + $0x7a0] sm:$0xff]
    %v1436 = vld [vmem:[#allocation14 + $0x7a8] sm:$0xff]
    %v1437 = vld [vmem:[#allocation14 + $0x7b0] sm:$0xff]
    %v1438 = vld [vmem:[#allocation14 + $0x7b8] sm:$0xff]
    %v1439 = vld [vmem:[#allocation14 + $0x7c0] sm:$0xff]
    %v1440 = vld [vmem:[#allocation14 + $0x7c8] sm:$0xff]
    %v1441 = vld [vmem:[#allocation14 + $0x7d0] sm:$0xff]
    %v1442 = vld [vmem:[#allocation14 + $0x7d8] sm:$0xff]
    %v1443 = vld [vmem:[#allocation14 + $0x7e0] sm:$0xff]
    %v1444 = vld [vmem:[#allocation14 + $0x7e8] sm:$0xff]
    %v1445 = vld [vmem:[#allocation14 + $0x7f0] sm:$0xff]
    %v1446 = vld [vmem:[#allocation14 + $0x7f8] sm:$0xff]
    %v1447 = vpack.c.bf16 %v1187, %v1187
    %v1448 = vpack.c.bf16 %v1188, %v1188
    %v1449 = vpack.c.bf16 %v1189, %v1189
    %v1450 = vpack.c.bf16 %v1190, %v1190
    %v1451 = vld [vmem:[%s12] sm:$0xff]
    %v1453 = vlaneseq
    %v1454 = vshrl.u32 %v1453, 7
    %v1455 = vsub.s32 0, %v1454
    %v1456 = vrot.slane %v1451, %v1455
    %v1457 = vlaneseq
    %v1458 = vshrl.u32 %v1457, 7
    %v1459 = vsub.s32 1, %v1458
    %v1460 = vrot.slane %v1451, %v1459
    %v1461 = vlaneseq
    %v1462 = vshrl.u32 %v1461, 7
    %v1463 = vsub.s32 2, %v1462
    %v1464 = vrot.slane %v1451, %v1463
    %v1465 = vlaneseq
    %v1466 = vshrl.u32 %v1465, 7
    %v1467 = vsub.s32 3, %v1466
    %v1468 = vrot.slane %v1451, %v1467
    %v1469 = vlaneseq
    %v1470 = vshrl.u32 %v1469, 7
    %v1471 = vsub.s32 4, %v1470
    %v1472 = vrot.slane %v1451, %v1471
    %v1473 = vlaneseq
    %v1474 = vshrl.u32 %v1473, 7
    %v1475 = vsub.s32 5, %v1474
    %v1476 = vrot.slane %v1451, %v1475
    %v1477 = vlaneseq
    %v1478 = vshrl.u32 %v1477, 7
    %v1479 = vsub.s32 6, %v1478
    %v1480 = vrot.slane %v1451, %v1479
    %v1481 = vlaneseq
    %v1482 = vshrl.u32 %v1481, 7
    %v1483 = vsub.s32 7, %v1482
    %v1484 = vrot.slane %v1451, %v1483
    %v1749 = vunpack.c.l.b16 %v1191
    %v1750 = vunpack.c.h.b16 %v1191
    %v1751 = vunpack.c.l.b16 %v1192
    %v1752 = vunpack.c.h.b16 %v1192
    %v1753 = vunpack.c.l.b16 %v1193
    %v1754 = vunpack.c.h.b16 %v1193
    %v1755 = vunpack.c.l.b16 %v1194
    %v1756 = vunpack.c.h.b16 %v1194
    %v1757 = vunpack.c.l.b16 %v1195
    %v1758 = vunpack.c.h.b16 %v1195
    %v1759 = vunpack.c.l.b16 %v1196
    %v1760 = vunpack.c.h.b16 %v1196
    %v1761 = vunpack.c.l.b16 %v1197
    %v1762 = vunpack.c.h.b16 %v1197
    %v1763 = vunpack.c.l.b16 %v1198
    %v1764 = vunpack.c.h.b16 %v1198
    %v1765 = vunpack.c.l.b16 %v1199
    %v1766 = vunpack.c.h.b16 %v1199
    %v1767 = vunpack.c.l.b16 %v1200
    %v1768 = vunpack.c.h.b16 %v1200
    %v1769 = vunpack.c.l.b16 %v1201
    %v1770 = vunpack.c.h.b16 %v1201
    %v1771 = vunpack.c.l.b16 %v1202
    %v1772 = vunpack.c.h.b16 %v1202
    %v1773 = vunpack.c.l.b16 %v1203
    %v1774 = vunpack.c.h.b16 %v1203
    %v1775 = vunpack.c.l.b16 %v1204
    %v1776 = vunpack.c.h.b16 %v1204
    %v1777 = vunpack.c.l.b16 %v1205
    %v1778 = vunpack.c.h.b16 %v1205
    %v1779 = vunpack.c.l.b16 %v1206
    %v1780 = vunpack.c.h.b16 %v1206
    %v1781 = vunpack.c.l.b16 %v1207
    %v1782 = vunpack.c.h.b16 %v1207
    %v1783 = vunpack.c.l.b16 %v1208
    %v1784 = vunpack.c.h.b16 %v1208
    %v1785 = vunpack.c.l.b16 %v1209
    %v1786 = vunpack.c.h.b16 %v1209
    %v1787 = vunpack.c.l.b16 %v1210
    %v1788 = vunpack.c.h.b16 %v1210
    %v1789 = vunpack.c.l.b16 %v1211
    %v1790 = vunpack.c.h.b16 %v1211
    %v1791 = vunpack.c.l.b16 %v1212
    %v1792 = vunpack.c.h.b16 %v1212
    %v1793 = vunpack.c.l.b16 %v1213
    %v1794 = vunpack.c.h.b16 %v1213
    %v1795 = vunpack.c.l.b16 %v1214
    %v1796 = vunpack.c.h.b16 %v1214
    %v1797 = vunpack.c.l.b16 %v1215
    %v1798 = vunpack.c.h.b16 %v1215
    %v1799 = vunpack.c.l.b16 %v1216
    %v1800 = vunpack.c.h.b16 %v1216
    %v1801 = vunpack.c.l.b16 %v1217
    %v1802 = vunpack.c.h.b16 %v1217
    %v1803 = vunpack.c.l.b16 %v1218
    %v1804 = vunpack.c.h.b16 %v1218
    %v1805 = vunpack.c.l.b16 %v1219
    %v1806 = vunpack.c.h.b16 %v1219
    %v1807 = vunpack.c.l.b16 %v1220
    %v1808 = vunpack.c.h.b16 %v1220
    %v1809 = vunpack.c.l.b16 %v1221
    %v1810 = vunpack.c.h.b16 %v1221
    %v1811 = vunpack.c.l.b16 %v1222
    %v1812 = vunpack.c.h.b16 %v1222
    %v1813 = vunpack.c.l.b16 %v1223
    %v1814 = vunpack.c.h.b16 %v1223
    %v1815 = vunpack.c.l.b16 %v1224
    %v1816 = vunpack.c.h.b16 %v1224
    %v1817 = vunpack.c.l.b16 %v1225
    %v1818 = vunpack.c.h.b16 %v1225
    %v1819 = vunpack.c.l.b16 %v1226
    %v1820 = vunpack.c.h.b16 %v1226
    %v1821 = vunpack.c.l.b16 %v1227
    %v1822 = vunpack.c.h.b16 %v1227
    %v1823 = vunpack.c.l.b16 %v1228
    %v1824 = vunpack.c.h.b16 %v1228
    %v1825 = vunpack.c.l.b16 %v1229
    %v1826 = vunpack.c.h.b16 %v1229
    %v1827 = vunpack.c.l.b16 %v1230
    %v1828 = vunpack.c.h.b16 %v1230
    %v1829 = vunpack.c.l.b16 %v1231
    %v1830 = vunpack.c.h.b16 %v1231
    %v1831 = vunpack.c.l.b16 %v1232
    %v1832 = vunpack.c.h.b16 %v1232
    %v1833 = vunpack.c.l.b16 %v1233
    %v1834 = vunpack.c.h.b16 %v1233
    %v1835 = vunpack.c.l.b16 %v1234
    %v1836 = vunpack.c.h.b16 %v1234
    %v1837 = vunpack.c.l.b16 %v1235
    %v1838 = vunpack.c.h.b16 %v1235
    %v1839 = vunpack.c.l.b16 %v1236
    %v1840 = vunpack.c.h.b16 %v1236
    %v1841 = vunpack.c.l.b16 %v1237
    %v1842 = vunpack.c.h.b16 %v1237
    %v1843 = vunpack.c.l.b16 %v1238
    %v1844 = vunpack.c.h.b16 %v1238
    %v1845 = vunpack.c.l.b16 %v1239
    %v1846 = vunpack.c.h.b16 %v1239
    %v1847 = vunpack.c.l.b16 %v1240
    %v1848 = vunpack.c.h.b16 %v1240
    %v1849 = vunpack.c.l.b16 %v1241
    %v1850 = vunpack.c.h.b16 %v1241
    %v1851 = vunpack.c.l.b16 %v1242
    %v1852 = vunpack.c.h.b16 %v1242
    %v1853 = vunpack.c.l.b16 %v1243
    %v1854 = vunpack.c.h.b16 %v1243
    %v1855 = vunpack.c.l.b16 %v1244
    %v1856 = vunpack.c.h.b16 %v1244
    %v1857 = vunpack.c.l.b16 %v1245
    %v1858 = vunpack.c.h.b16 %v1245
    %v1859 = vunpack.c.l.b16 %v1246
    %v1860 = vunpack.c.h.b16 %v1246
    %v1861 = vunpack.c.l.b16 %v1247
    %v1862 = vunpack.c.h.b16 %v1247
    %v1863 = vunpack.c.l.b16 %v1248
    %v1864 = vunpack.c.h.b16 %v1248
    %v1865 = vunpack.c.l.b16 %v1249
    %v1866 = vunpack.c.h.b16 %v1249
    %v1867 = vunpack.c.l.b16 %v1250
    %v1868 = vunpack.c.h.b16 %v1250
    %v1869 = vunpack.c.l.b16 %v1251
    %v1870 = vunpack.c.h.b16 %v1251
    %v1871 = vunpack.c.l.b16 %v1252
    %v1872 = vunpack.c.h.b16 %v1252
    %v1873 = vunpack.c.l.b16 %v1253
    %v1874 = vunpack.c.h.b16 %v1253
    %v1875 = vunpack.c.l.b16 %v1254
    %v1876 = vunpack.c.h.b16 %v1254
    %v1877 = vunpack.c.l.b16 %v1255
    %v1878 = vunpack.c.h.b16 %v1255
    %v1879 = vunpack.c.l.b16 %v1256
    %v1880 = vunpack.c.h.b16 %v1256
    %v1881 = vunpack.c.l.b16 %v1257
    %v1882 = vunpack.c.h.b16 %v1257
    %v1883 = vunpack.c.l.b16 %v1258
    %v1884 = vunpack.c.h.b16 %v1258
    %v1885 = vunpack.c.l.b16 %v1259
    %v1886 = vunpack.c.h.b16 %v1259
    %v1887 = vunpack.c.l.b16 %v1260
    %v1888 = vunpack.c.h.b16 %v1260
    %v1889 = vunpack.c.l.b16 %v1261
    %v1890 = vunpack.c.h.b16 %v1261
    %v1891 = vunpack.c.l.b16 %v1262
    %v1892 = vunpack.c.h.b16 %v1262
    %v1893 = vunpack.c.l.b16 %v1263
    %v1894 = vunpack.c.h.b16 %v1263
    %v1895 = vunpack.c.l.b16 %v1264
    %v1896 = vunpack.c.h.b16 %v1264
    %v1897 = vunpack.c.l.b16 %v1265
    %v1898 = vunpack.c.h.b16 %v1265
    %v1899 = vunpack.c.l.b16 %v1266
    %v1900 = vunpack.c.h.b16 %v1266
    %v1901 = vunpack.c.l.b16 %v1267
    %v1902 = vunpack.c.h.b16 %v1267
    %v1903 = vunpack.c.l.b16 %v1268
    %v1904 = vunpack.c.h.b16 %v1268
    %v1905 = vunpack.c.l.b16 %v1269
    %v1906 = vunpack.c.h.b16 %v1269
    %v1907 = vunpack.c.l.b16 %v1270
    %v1908 = vunpack.c.h.b16 %v1270
    %v1909 = vunpack.c.l.b16 %v1271
    %v1910 = vunpack.c.h.b16 %v1271
    %v1911 = vunpack.c.l.b16 %v1272
    %v1912 = vunpack.c.h.b16 %v1272
    %v1913 = vunpack.c.l.b16 %v1273
    %v1914 = vunpack.c.h.b16 %v1273
    %v1915 = vunpack.c.l.b16 %v1274
    %v1916 = vunpack.c.h.b16 %v1274
    %v1917 = vunpack.c.l.b16 %v1275
    %v1918 = vunpack.c.h.b16 %v1275
    %v1919 = vunpack.c.l.b16 %v1276
    %v1920 = vunpack.c.h.b16 %v1276
    %v1921 = vunpack.c.l.b16 %v1277
    %v1922 = vunpack.c.h.b16 %v1277
    %v1923 = vunpack.c.l.b16 %v1278
    %v1924 = vunpack.c.h.b16 %v1278
    %v1925 = vunpack.c.l.b16 %v1279
    %v1926 = vunpack.c.h.b16 %v1279
    %v1927 = vunpack.c.l.b16 %v1280
    %v1928 = vunpack.c.h.b16 %v1280
    %v1929 = vunpack.c.l.b16 %v1281
    %v1930 = vunpack.c.h.b16 %v1281
    %v1931 = vunpack.c.l.b16 %v1282
    %v1932 = vunpack.c.h.b16 %v1282
    %v1933 = vunpack.c.l.b16 %v1283
    %v1934 = vunpack.c.h.b16 %v1283
    %v1935 = vunpack.c.l.b16 %v1284
    %v1936 = vunpack.c.h.b16 %v1284
    %v1937 = vunpack.c.l.b16 %v1285
    %v1938 = vunpack.c.h.b16 %v1285
    %v1939 = vunpack.c.l.b16 %v1286
    %v1940 = vunpack.c.h.b16 %v1286
    %v1941 = vunpack.c.l.b16 %v1287
    %v1942 = vunpack.c.h.b16 %v1287
    %v1943 = vunpack.c.l.b16 %v1288
    %v1944 = vunpack.c.h.b16 %v1288
    %v1945 = vunpack.c.l.b16 %v1289
    %v1946 = vunpack.c.h.b16 %v1289
    %v1947 = vunpack.c.l.b16 %v1290
    %v1948 = vunpack.c.h.b16 %v1290
    %v1949 = vunpack.c.l.b16 %v1291
    %v1950 = vunpack.c.h.b16 %v1291
    %v1951 = vunpack.c.l.b16 %v1292
    %v1952 = vunpack.c.h.b16 %v1292
    %v1953 = vunpack.c.l.b16 %v1293
    %v1954 = vunpack.c.h.b16 %v1293
    %v1955 = vunpack.c.l.b16 %v1294
    %v1956 = vunpack.c.h.b16 %v1294
    %v1957 = vunpack.c.l.b16 %v1295
    %v1958 = vunpack.c.h.b16 %v1295
    %v1959 = vunpack.c.l.b16 %v1296
    %v1960 = vunpack.c.h.b16 %v1296
    %v1961 = vunpack.c.l.b16 %v1297
    %v1962 = vunpack.c.h.b16 %v1297
    %v1963 = vunpack.c.l.b16 %v1298
    %v1964 = vunpack.c.h.b16 %v1298
    %v1965 = vunpack.c.l.b16 %v1299
    %v1966 = vunpack.c.h.b16 %v1299
    %v1967 = vunpack.c.l.b16 %v1300
    %v1968 = vunpack.c.h.b16 %v1300
    %v1969 = vunpack.c.l.b16 %v1301
    %v1970 = vunpack.c.h.b16 %v1301
    %v1971 = vunpack.c.l.b16 %v1302
    %v1972 = vunpack.c.h.b16 %v1302
    %v1973 = vunpack.c.l.b16 %v1303
    %v1974 = vunpack.c.h.b16 %v1303
    %v1975 = vunpack.c.l.b16 %v1304
    %v1976 = vunpack.c.h.b16 %v1304
    %v1977 = vunpack.c.l.b16 %v1305
    %v1978 = vunpack.c.h.b16 %v1305
    %v1979 = vunpack.c.l.b16 %v1306
    %v1980 = vunpack.c.h.b16 %v1306
    %v1981 = vunpack.c.l.b16 %v1307
    %v1982 = vunpack.c.h.b16 %v1307
    %v1983 = vunpack.c.l.b16 %v1308
    %v1984 = vunpack.c.h.b16 %v1308
    %v1985 = vunpack.c.l.b16 %v1309
    %v1986 = vunpack.c.h.b16 %v1309
    %v1987 = vunpack.c.l.b16 %v1310
    %v1988 = vunpack.c.h.b16 %v1310
    %v1989 = vunpack.c.l.b16 %v1311
    %v1990 = vunpack.c.h.b16 %v1311
    %v1991 = vunpack.c.l.b16 %v1312
    %v1992 = vunpack.c.h.b16 %v1312
    %v1993 = vunpack.c.l.b16 %v1313
    %v1994 = vunpack.c.h.b16 %v1313
    %v1995 = vunpack.c.l.b16 %v1314
    %v1996 = vunpack.c.h.b16 %v1314
    %v1997 = vunpack.c.l.b16 %v1315
    %v1998 = vunpack.c.h.b16 %v1315
    %v1999 = vunpack.c.l.b16 %v1316
    %v2000 = vunpack.c.h.b16 %v1316
    %v2001 = vunpack.c.l.b16 %v1317
    %v2002 = vunpack.c.h.b16 %v1317
    %v2003 = vunpack.c.l.b16 %v1318
    %v2004 = vunpack.c.h.b16 %v1318
    %v2005 = vunpack.c.l.b16 %v1319
    %v2006 = vunpack.c.h.b16 %v1319
    %v2007 = vunpack.c.l.b16 %v1320
    %v2008 = vunpack.c.h.b16 %v1320
    %v2009 = vunpack.c.l.b16 %v1321
    %v2010 = vunpack.c.h.b16 %v1321
    %v2011 = vunpack.c.l.b16 %v1322
    %v2012 = vunpack.c.h.b16 %v1322
    %v2013 = vunpack.c.l.b16 %v1323
    %v2014 = vunpack.c.h.b16 %v1323
    %v2015 = vunpack.c.l.b16 %v1324
    %v2016 = vunpack.c.h.b16 %v1324
    %v2017 = vunpack.c.l.b16 %v1325
    %v2018 = vunpack.c.h.b16 %v1325
    %v2019 = vunpack.c.l.b16 %v1326
    %v2020 = vunpack.c.h.b16 %v1326
    %v2021 = vunpack.c.l.b16 %v1327
    %v2022 = vunpack.c.h.b16 %v1327
    %v2023 = vunpack.c.l.b16 %v1328
    %v2024 = vunpack.c.h.b16 %v1328
    %v2025 = vunpack.c.l.b16 %v1329
    %v2026 = vunpack.c.h.b16 %v1329
    %v2027 = vunpack.c.l.b16 %v1330
    %v2028 = vunpack.c.h.b16 %v1330
    %v2029 = vunpack.c.l.b16 %v1331
    %v2030 = vunpack.c.h.b16 %v1331
    %v2031 = vunpack.c.l.b16 %v1332
    %v2032 = vunpack.c.h.b16 %v1332
    %v2033 = vunpack.c.l.b16 %v1333
    %v2034 = vunpack.c.h.b16 %v1333
    %v2035 = vunpack.c.l.b16 %v1334
    %v2036 = vunpack.c.h.b16 %v1334
    %v2037 = vunpack.c.l.b16 %v1335
    %v2038 = vunpack.c.h.b16 %v1335
    %v2039 = vunpack.c.l.b16 %v1336
    %v2040 = vunpack.c.h.b16 %v1336
    %v2041 = vunpack.c.l.b16 %v1337
    %v2042 = vunpack.c.h.b16 %v1337
    %v2043 = vunpack.c.l.b16 %v1338
    %v2044 = vunpack.c.h.b16 %v1338
    %v2045 = vunpack.c.l.b16 %v1339
    %v2046 = vunpack.c.h.b16 %v1339
    %v2047 = vunpack.c.l.b16 %v1340
    %v2048 = vunpack.c.h.b16 %v1340
    %v2049 = vunpack.c.l.b16 %v1341
    %v2050 = vunpack.c.h.b16 %v1341
    %v2051 = vunpack.c.l.b16 %v1342
    %v2052 = vunpack.c.h.b16 %v1342
    %v2053 = vunpack.c.l.b16 %v1343
    %v2054 = vunpack.c.h.b16 %v1343
    %v2055 = vunpack.c.l.b16 %v1344
    %v2056 = vunpack.c.h.b16 %v1344
    %v2057 = vunpack.c.l.b16 %v1345
    %v2058 = vunpack.c.h.b16 %v1345
    %v2059 = vunpack.c.l.b16 %v1346
    %v2060 = vunpack.c.h.b16 %v1346
    %v2061 = vunpack.c.l.b16 %v1347
    %v2062 = vunpack.c.h.b16 %v1347
    %v2063 = vunpack.c.l.b16 %v1348
    %v2064 = vunpack.c.h.b16 %v1348
    %v2065 = vunpack.c.l.b16 %v1349
    %v2066 = vunpack.c.h.b16 %v1349
    %v2067 = vunpack.c.l.b16 %v1350
    %v2068 = vunpack.c.h.b16 %v1350
    %v2069 = vunpack.c.l.b16 %v1351
    %v2070 = vunpack.c.h.b16 %v1351
    %v2071 = vunpack.c.l.b16 %v1352
    %v2072 = vunpack.c.h.b16 %v1352
    %v2073 = vunpack.c.l.b16 %v1353
    %v2074 = vunpack.c.h.b16 %v1353
    %v2075 = vunpack.c.l.b16 %v1354
    %v2076 = vunpack.c.h.b16 %v1354
    %v2077 = vunpack.c.l.b16 %v1355
    %v2078 = vunpack.c.h.b16 %v1355
    %v2079 = vunpack.c.l.b16 %v1356
    %v2080 = vunpack.c.h.b16 %v1356
    %v2081 = vunpack.c.l.b16 %v1357
    %v2082 = vunpack.c.h.b16 %v1357
    %v2083 = vunpack.c.l.b16 %v1358
    %v2084 = vunpack.c.h.b16 %v1358
    %v2085 = vunpack.c.l.b16 %v1359
    %v2086 = vunpack.c.h.b16 %v1359
    %v2087 = vunpack.c.l.b16 %v1360
    %v2088 = vunpack.c.h.b16 %v1360
    %v2089 = vunpack.c.l.b16 %v1361
    %v2090 = vunpack.c.h.b16 %v1361
    %v2091 = vunpack.c.l.b16 %v1362
    %v2092 = vunpack.c.h.b16 %v1362
    %v2093 = vunpack.c.l.b16 %v1363
    %v2094 = vunpack.c.h.b16 %v1363
    %v2095 = vunpack.c.l.b16 %v1364
    %v2096 = vunpack.c.h.b16 %v1364
    %v2097 = vunpack.c.l.b16 %v1365
    %v2098 = vunpack.c.h.b16 %v1365
    %v2099 = vunpack.c.l.b16 %v1366
    %v2100 = vunpack.c.h.b16 %v1366
    %v2101 = vunpack.c.l.b16 %v1367
    %v2102 = vunpack.c.h.b16 %v1367
    %v2103 = vunpack.c.l.b16 %v1368
    %v2104 = vunpack.c.h.b16 %v1368
    %v2105 = vunpack.c.l.b16 %v1369
    %v2106 = vunpack.c.h.b16 %v1369
    %v2107 = vunpack.c.l.b16 %v1370
    %v2108 = vunpack.c.h.b16 %v1370
    %v2109 = vunpack.c.l.b16 %v1371
    %v2110 = vunpack.c.h.b16 %v1371
    %v2111 = vunpack.c.l.b16 %v1372
    %v2112 = vunpack.c.h.b16 %v1372
    %v2113 = vunpack.c.l.b16 %v1373
    %v2114 = vunpack.c.h.b16 %v1373
    %v2115 = vunpack.c.l.b16 %v1374
    %v2116 = vunpack.c.h.b16 %v1374
    %v2117 = vunpack.c.l.b16 %v1375
    %v2118 = vunpack.c.h.b16 %v1375
    %v2119 = vunpack.c.l.b16 %v1376
    %v2120 = vunpack.c.h.b16 %v1376
    %v2121 = vunpack.c.l.b16 %v1377
    %v2122 = vunpack.c.h.b16 %v1377
    %v2123 = vunpack.c.l.b16 %v1378
    %v2124 = vunpack.c.h.b16 %v1378
    %v2125 = vunpack.c.l.b16 %v1379
    %v2126 = vunpack.c.h.b16 %v1379
    %v2127 = vunpack.c.l.b16 %v1380
    %v2128 = vunpack.c.h.b16 %v1380
    %v2129 = vunpack.c.l.b16 %v1381
    %v2130 = vunpack.c.h.b16 %v1381
    %v2131 = vunpack.c.l.b16 %v1382
    %v2132 = vunpack.c.h.b16 %v1382
    %v2133 = vunpack.c.l.b16 %v1383
    %v2134 = vunpack.c.h.b16 %v1383
    %v2135 = vunpack.c.l.b16 %v1384
    %v2136 = vunpack.c.h.b16 %v1384
    %v2137 = vunpack.c.l.b16 %v1385
    %v2138 = vunpack.c.h.b16 %v1385
    %v2139 = vunpack.c.l.b16 %v1386
    %v2140 = vunpack.c.h.b16 %v1386
    %v2141 = vunpack.c.l.b16 %v1387
    %v2142 = vunpack.c.h.b16 %v1387
    %v2143 = vunpack.c.l.b16 %v1388
    %v2144 = vunpack.c.h.b16 %v1388
    %v2145 = vunpack.c.l.b16 %v1389
    %v2146 = vunpack.c.h.b16 %v1389
    %v2147 = vunpack.c.l.b16 %v1390
    %v2148 = vunpack.c.h.b16 %v1390
    %v2149 = vunpack.c.l.b16 %v1391
    %v2150 = vunpack.c.h.b16 %v1391
    %v2151 = vunpack.c.l.b16 %v1392
    %v2152 = vunpack.c.h.b16 %v1392
    %v2153 = vunpack.c.l.b16 %v1393
    %v2154 = vunpack.c.h.b16 %v1393
    %v2155 = vunpack.c.l.b16 %v1394
    %v2156 = vunpack.c.h.b16 %v1394
    %v2157 = vunpack.c.l.b16 %v1395
    %v2158 = vunpack.c.h.b16 %v1395
    %v2159 = vunpack.c.l.b16 %v1396
    %v2160 = vunpack.c.h.b16 %v1396
    %v2161 = vunpack.c.l.b16 %v1397
    %v2162 = vunpack.c.h.b16 %v1397
    %v2163 = vunpack.c.l.b16 %v1398
    %v2164 = vunpack.c.h.b16 %v1398
    %v2165 = vunpack.c.l.b16 %v1399
    %v2166 = vunpack.c.h.b16 %v1399
    %v2167 = vunpack.c.l.b16 %v1400
    %v2168 = vunpack.c.h.b16 %v1400
    %v2169 = vunpack.c.l.b16 %v1401
    %v2170 = vunpack.c.h.b16 %v1401
    %v2171 = vunpack.c.l.b16 %v1402
    %v2172 = vunpack.c.h.b16 %v1402
    %v2173 = vunpack.c.l.b16 %v1403
    %v2174 = vunpack.c.h.b16 %v1403
    %v2175 = vunpack.c.l.b16 %v1404
    %v2176 = vunpack.c.h.b16 %v1404
    %v2177 = vunpack.c.l.b16 %v1405
    %v2178 = vunpack.c.h.b16 %v1405
    %v2179 = vunpack.c.l.b16 %v1406
    %v2180 = vunpack.c.h.b16 %v1406
    %v2181 = vunpack.c.l.b16 %v1407
    %v2182 = vunpack.c.h.b16 %v1407
    %v2183 = vunpack.c.l.b16 %v1408
    %v2184 = vunpack.c.h.b16 %v1408
    %v2185 = vunpack.c.l.b16 %v1409
    %v2186 = vunpack.c.h.b16 %v1409
    %v2187 = vunpack.c.l.b16 %v1410
    %v2188 = vunpack.c.h.b16 %v1410
    %v2189 = vunpack.c.l.b16 %v1411
    %v2190 = vunpack.c.h.b16 %v1411
    %v2191 = vunpack.c.l.b16 %v1412
    %v2192 = vunpack.c.h.b16 %v1412
    %v2193 = vunpack.c.l.b16 %v1413
    %v2194 = vunpack.c.h.b16 %v1413
    %v2195 = vunpack.c.l.b16 %v1414
    %v2196 = vunpack.c.h.b16 %v1414
    %v2197 = vunpack.c.l.b16 %v1415
    %v2198 = vunpack.c.h.b16 %v1415
    %v2199 = vunpack.c.l.b16 %v1416
    %v2200 = vunpack.c.h.b16 %v1416
    %v2201 = vunpack.c.l.b16 %v1417
    %v2202 = vunpack.c.h.b16 %v1417
    %v2203 = vunpack.c.l.b16 %v1418
    %v2204 = vunpack.c.h.b16 %v1418
    %v2205 = vunpack.c.l.b16 %v1419
    %v2206 = vunpack.c.h.b16 %v1419
    %v2207 = vunpack.c.l.b16 %v1420
    %v2208 = vunpack.c.h.b16 %v1420
    %v2209 = vunpack.c.l.b16 %v1421
    %v2210 = vunpack.c.h.b16 %v1421
    %v2211 = vunpack.c.l.b16 %v1422
    %v2212 = vunpack.c.h.b16 %v1422
    %v2213 = vunpack.c.l.b16 %v1423
    %v2214 = vunpack.c.h.b16 %v1423
    %v2215 = vunpack.c.l.b16 %v1424
    %v2216 = vunpack.c.h.b16 %v1424
    %v2217 = vunpack.c.l.b16 %v1425
    %v2218 = vunpack.c.h.b16 %v1425
    %v2219 = vunpack.c.l.b16 %v1426
    %v2220 = vunpack.c.h.b16 %v1426
    %v2221 = vunpack.c.l.b16 %v1427
    %v2222 = vunpack.c.h.b16 %v1427
    %v2223 = vunpack.c.l.b16 %v1428
    %v2224 = vunpack.c.h.b16 %v1428
    %v2225 = vunpack.c.l.b16 %v1429
    %v2226 = vunpack.c.h.b16 %v1429
    %v2227 = vunpack.c.l.b16 %v1430
    %v2228 = vunpack.c.h.b16 %v1430
    %v2229 = vunpack.c.l.b16 %v1431
    %v2230 = vunpack.c.h.b16 %v1431
    %v2231 = vunpack.c.l.b16 %v1432
    %v2232 = vunpack.c.h.b16 %v1432
    %v2233 = vunpack.c.l.b16 %v1433
    %v2234 = vunpack.c.h.b16 %v1433
    %v2235 = vunpack.c.l.b16 %v1434
    %v2236 = vunpack.c.h.b16 %v1434
    %v2237 = vunpack.c.l.b16 %v1435
    %v2238 = vunpack.c.h.b16 %v1435
    %v2239 = vunpack.c.l.b16 %v1436
    %v2240 = vunpack.c.h.b16 %v1436
    %v2241 = vunpack.c.l.b16 %v1437
    %v2242 = vunpack.c.h.b16 %v1437
    %v2243 = vunpack.c.l.b16 %v1438
    %v2244 = vunpack.c.h.b16 %v1438
    %v2245 = vunpack.c.l.b16 %v1439
    %v2246 = vunpack.c.h.b16 %v1439
    %v2247 = vunpack.c.l.b16 %v1440
    %v2248 = vunpack.c.h.b16 %v1440
    %v2249 = vunpack.c.l.b16 %v1441
    %v2250 = vunpack.c.h.b16 %v1441
    %v2251 = vunpack.c.l.b16 %v1442
    %v2252 = vunpack.c.h.b16 %v1442
    %v2253 = vunpack.c.l.b16 %v1443
    %v2254 = vunpack.c.h.b16 %v1443
    %v2255 = vunpack.c.l.b16 %v1444
    %v2256 = vunpack.c.h.b16 %v1444
    %v2257 = vunpack.c.l.b16 %v1445
    %v2258 = vunpack.c.h.b16 %v1445
    %v2259 = vunpack.c.l.b16 %v1446
    %v2260 = vunpack.c.h.b16 %v1446
    %v2261 = vpack.c.b16 %v1757, %v1749
    %v2262 = vpack.c.b16 %v1758, %v1750
    %v2263 = vpack.c.b16 %v1759, %v1751
    %v2264 = vpack.c.b16 %v1760, %v1752
    %v2265 = vpack.c.b16 %v1761, %v1753
    %v2266 = vpack.c.b16 %v1762, %v1754
    %v2267 = vpack.c.b16 %v1763, %v1755
    %v2268 = vpack.c.b16 %v1764, %v1756
    %v2269 = vpack.c.b16 %v1773, %v1765
    %v2270 = vpack.c.b16 %v1774, %v1766
    %v2271 = vpack.c.b16 %v1775, %v1767
    %v2272 = vpack.c.b16 %v1776, %v1768
    %v2273 = vpack.c.b16 %v1777, %v1769
    %v2274 = vpack.c.b16 %v1778, %v1770
    %v2275 = vpack.c.b16 %v1779, %v1771
    %v2276 = vpack.c.b16 %v1780, %v1772
    %v2277 = vpack.c.b16 %v1789, %v1781
    %v2278 = vpack.c.b16 %v1790, %v1782
    %v2279 = vpack.c.b16 %v1791, %v1783
    %v2280 = vpack.c.b16 %v1792, %v1784
    %v2281 = vpack.c.b16 %v1793, %v1785
    %v2282 = vpack.c.b16 %v1794, %v1786
    %v2283 = vpack.c.b16 %v1795, %v1787
    %v2284 = vpack.c.b16 %v1796, %v1788
    %v2285 = vpack.c.b16 %v1805, %v1797
    %v2286 = vpack.c.b16 %v1806, %v1798
    %v2287 = vpack.c.b16 %v1807, %v1799
    %v2288 = vpack.c.b16 %v1808, %v1800
    %v2289 = vpack.c.b16 %v1809, %v1801
    %v2290 = vpack.c.b16 %v1810, %v1802
    %v2291 = vpack.c.b16 %v1811, %v1803
    %v2292 = vpack.c.b16 %v1812, %v1804
    %v2293 = vpack.c.b16 %v1821, %v1813
    %v2294 = vpack.c.b16 %v1822, %v1814
    %v2295 = vpack.c.b16 %v1823, %v1815
    %v2296 = vpack.c.b16 %v1824, %v1816
    %v2297 = vpack.c.b16 %v1825, %v1817
    %v2298 = vpack.c.b16 %v1826, %v1818
    %v2299 = vpack.c.b16 %v1827, %v1819
    %v2300 = vpack.c.b16 %v1828, %v1820
    %v2301 = vpack.c.b16 %v1837, %v1829
    %v2302 = vpack.c.b16 %v1838, %v1830
    %v2303 = vpack.c.b16 %v1839, %v1831
    %v2304 = vpack.c.b16 %v1840, %v1832
    %v2305 = vpack.c.b16 %v1841, %v1833
    %v2306 = vpack.c.b16 %v1842, %v1834
    %v2307 = vpack.c.b16 %v1843, %v1835
    %v2308 = vpack.c.b16 %v1844, %v1836
    %v2309 = vpack.c.b16 %v1853, %v1845
    %v2310 = vpack.c.b16 %v1854, %v1846
    %v2311 = vpack.c.b16 %v1855, %v1847
    %v2312 = vpack.c.b16 %v1856, %v1848
    %v2313 = vpack.c.b16 %v1857, %v1849
    %v2314 = vpack.c.b16 %v1858, %v1850
    %v2315 = vpack.c.b16 %v1859, %v1851
    %v2316 = vpack.c.b16 %v1860, %v1852
    %v2317 = vpack.c.b16 %v1869, %v1861
    %v2318 = vpack.c.b16 %v1870, %v1862
    %v2319 = vpack.c.b16 %v1871, %v1863
    %v2320 = vpack.c.b16 %v1872, %v1864
    %v2321 = vpack.c.b16 %v1873, %v1865
    %v2322 = vpack.c.b16 %v1874, %v1866
    %v2323 = vpack.c.b16 %v1875, %v1867
    %v2324 = vpack.c.b16 %v1876, %v1868
    %v2325 = vpack.c.b16 %v1885, %v1877
    %v2326 = vpack.c.b16 %v1886, %v1878
    %v2327 = vpack.c.b16 %v1887, %v1879
    %v2328 = vpack.c.b16 %v1888, %v1880
    %v2329 = vpack.c.b16 %v1889, %v1881
    %v2330 = vpack.c.b16 %v1890, %v1882
    %v2331 = vpack.c.b16 %v1891, %v1883
    %v2332 = vpack.c.b16 %v1892, %v1884
    %v2333 = vpack.c.b16 %v1901, %v1893
    %v2334 = vpack.c.b16 %v1902, %v1894
    %v2335 = vpack.c.b16 %v1903, %v1895
    %v2336 = vpack.c.b16 %v1904, %v1896
    %v2337 = vpack.c.b16 %v1905, %v1897
    %v2338 = vpack.c.b16 %v1906, %v1898
    %v2339 = vpack.c.b16 %v1907, %v1899
    %v2340 = vpack.c.b16 %v1908, %v1900
    %v2341 = vpack.c.b16 %v1917, %v1909
    %v2342 = vpack.c.b16 %v1918, %v1910
    %v2343 = vpack.c.b16 %v1919, %v1911
    %v2344 = vpack.c.b16 %v1920, %v1912
    %v2345 = vpack.c.b16 %v1921, %v1913
    %v2346 = vpack.c.b16 %v1922, %v1914
    %v2347 = vpack.c.b16 %v1923, %v1915
    %v2348 = vpack.c.b16 %v1924, %v1916
    %v2349 = vpack.c.b16 %v1933, %v1925
    %v2350 = vpack.c.b16 %v1934, %v1926
    %v2351 = vpack.c.b16 %v1935, %v1927
    %v2352 = vpack.c.b16 %v1936, %v1928
    %v2353 = vpack.c.b16 %v1937, %v1929
    %v2354 = vpack.c.b16 %v1938, %v1930
    %v2355 = vpack.c.b16 %v1939, %v1931
    %v2356 = vpack.c.b16 %v1940, %v1932
    %v2357 = vpack.c.b16 %v1949, %v1941
    %v2358 = vpack.c.b16 %v1950, %v1942
    %v2359 = vpack.c.b16 %v1951, %v1943
    %v2360 = vpack.c.b16 %v1952, %v1944
    %v2361 = vpack.c.b16 %v1953, %v1945
    %v2362 = vpack.c.b16 %v1954, %v1946
    %v2363 = vpack.c.b16 %v1955, %v1947
    %v2364 = vpack.c.b16 %v1956, %v1948
    %v2365 = vpack.c.b16 %v1965, %v1957
    %v2366 = vpack.c.b16 %v1966, %v1958
    %v2367 = vpack.c.b16 %v1967, %v1959
    %v2368 = vpack.c.b16 %v1968, %v1960
    %v2369 = vpack.c.b16 %v1969, %v1961
    %v2370 = vpack.c.b16 %v1970, %v1962
    %v2371 = vpack.c.b16 %v1971, %v1963
    %v2372 = vpack.c.b16 %v1972, %v1964
    %v2373 = vpack.c.b16 %v1981, %v1973
    %v2374 = vpack.c.b16 %v1982, %v1974
    %v2375 = vpack.c.b16 %v1983, %v1975
    %v2376 = vpack.c.b16 %v1984, %v1976
    %v2377 = vpack.c.b16 %v1985, %v1977
    %v2378 = vpack.c.b16 %v1986, %v1978
    %v2379 = vpack.c.b16 %v1987, %v1979
    %v2380 = vpack.c.b16 %v1988, %v1980
    %v2381 = vpack.c.b16 %v1997, %v1989
    %v2382 = vpack.c.b16 %v1998, %v1990
    %v2383 = vpack.c.b16 %v1999, %v1991
    %v2384 = vpack.c.b16 %v2000, %v1992
    %v2385 = vpack.c.b16 %v2001, %v1993
    %v2386 = vpack.c.b16 %v2002, %v1994
    %v2387 = vpack.c.b16 %v2003, %v1995
    %v2388 = vpack.c.b16 %v2004, %v1996
    %v2389 = vpack.c.b16 %v2013, %v2005
    %v2390 = vpack.c.b16 %v2014, %v2006
    %v2391 = vpack.c.b16 %v2015, %v2007
    %v2392 = vpack.c.b16 %v2016, %v2008
    %v2393 = vpack.c.b16 %v2017, %v2009
    %v2394 = vpack.c.b16 %v2018, %v2010
    %v2395 = vpack.c.b16 %v2019, %v2011
    %v2396 = vpack.c.b16 %v2020, %v2012
    %v2397 = vpack.c.b16 %v2029, %v2021
    %v2398 = vpack.c.b16 %v2030, %v2022
    %v2399 = vpack.c.b16 %v2031, %v2023
    %v2400 = vpack.c.b16 %v2032, %v2024
    %v2401 = vpack.c.b16 %v2033, %v2025
    %v2402 = vpack.c.b16 %v2034, %v2026
    %v2403 = vpack.c.b16 %v2035, %v2027
    %v2404 = vpack.c.b16 %v2036, %v2028
    %v2405 = vpack.c.b16 %v2045, %v2037
    %v2406 = vpack.c.b16 %v2046, %v2038
    %v2407 = vpack.c.b16 %v2047, %v2039
    %v2408 = vpack.c.b16 %v2048, %v2040
    %v2409 = vpack.c.b16 %v2049, %v2041
    %v2410 = vpack.c.b16 %v2050, %v2042
    %v2411 = vpack.c.b16 %v2051, %v2043
    %v2412 = vpack.c.b16 %v2052, %v2044
    %v2413 = vpack.c.b16 %v2061, %v2053
    %v2414 = vpack.c.b16 %v2062, %v2054
    %v2415 = vpack.c.b16 %v2063, %v2055
    %v2416 = vpack.c.b16 %v2064, %v2056
    %v2417 = vpack.c.b16 %v2065, %v2057
    %v2418 = vpack.c.b16 %v2066, %v2058
    %v2419 = vpack.c.b16 %v2067, %v2059
    %v2420 = vpack.c.b16 %v2068, %v2060
    %v2421 = vpack.c.b16 %v2077, %v2069
    %v2422 = vpack.c.b16 %v2078, %v2070
    %v2423 = vpack.c.b16 %v2079, %v2071
    %v2424 = vpack.c.b16 %v2080, %v2072
    %v2425 = vpack.c.b16 %v2081, %v2073
    %v2426 = vpack.c.b16 %v2082, %v2074
    %v2427 = vpack.c.b16 %v2083, %v2075
    %v2428 = vpack.c.b16 %v2084, %v2076
    %v2429 = vpack.c.b16 %v2093, %v2085
    %v2430 = vpack.c.b16 %v2094, %v2086
    %v2431 = vpack.c.b16 %v2095, %v2087
    %v2432 = vpack.c.b16 %v2096, %v2088
    %v2433 = vpack.c.b16 %v2097, %v2089
    %v2434 = vpack.c.b16 %v2098, %v2090
    %v2435 = vpack.c.b16 %v2099, %v2091
    %v2436 = vpack.c.b16 %v2100, %v2092
    %v2437 = vpack.c.b16 %v2109, %v2101
    %v2438 = vpack.c.b16 %v2110, %v2102
    %v2439 = vpack.c.b16 %v2111, %v2103
    %v2440 = vpack.c.b16 %v2112, %v2104
    %v2441 = vpack.c.b16 %v2113, %v2105
    %v2442 = vpack.c.b16 %v2114, %v2106
    %v2443 = vpack.c.b16 %v2115, %v2107
    %v2444 = vpack.c.b16 %v2116, %v2108
    %v2445 = vpack.c.b16 %v2125, %v2117
    %v2446 = vpack.c.b16 %v2126, %v2118
    %v2447 = vpack.c.b16 %v2127, %v2119
    %v2448 = vpack.c.b16 %v2128, %v2120
    %v2449 = vpack.c.b16 %v2129, %v2121
    %v2450 = vpack.c.b16 %v2130, %v2122
    %v2451 = vpack.c.b16 %v2131, %v2123
    %v2452 = vpack.c.b16 %v2132, %v2124
    %v2453 = vpack.c.b16 %v2141, %v2133
    %v2454 = vpack.c.b16 %v2142, %v2134
    %v2455 = vpack.c.b16 %v2143, %v2135
    %v2456 = vpack.c.b16 %v2144, %v2136
    %v2457 = vpack.c.b16 %v2145, %v2137
    %v2458 = vpack.c.b16 %v2146, %v2138
    %v2459 = vpack.c.b16 %v2147, %v2139
    %v2460 = vpack.c.b16 %v2148, %v2140
    %v2461 = vpack.c.b16 %v2157, %v2149
    %v2462 = vpack.c.b16 %v2158, %v2150
    %v2463 = vpack.c.b16 %v2159, %v2151
    %v2464 = vpack.c.b16 %v2160, %v2152
    %v2465 = vpack.c.b16 %v2161, %v2153
    %v2466 = vpack.c.b16 %v2162, %v2154
    %v2467 = vpack.c.b16 %v2163, %v2155
    %v2468 = vpack.c.b16 %v2164, %v2156
    %v2469 = vpack.c.b16 %v2173, %v2165
    %v2470 = vpack.c.b16 %v2174, %v2166
    %v2471 = vpack.c.b16 %v2175, %v2167
    %v2472 = vpack.c.b16 %v2176, %v2168
    %v2473 = vpack.c.b16 %v2177, %v2169
    %v2474 = vpack.c.b16 %v2178, %v2170
    %v2475 = vpack.c.b16 %v2179, %v2171
    %v2476 = vpack.c.b16 %v2180, %v2172
    %v2477 = vpack.c.b16 %v2189, %v2181
    %v2478 = vpack.c.b16 %v2190, %v2182
    %v2479 = vpack.c.b16 %v2191, %v2183
    %v2480 = vpack.c.b16 %v2192, %v2184
    %v2481 = vpack.c.b16 %v2193, %v2185
    %v2482 = vpack.c.b16 %v2194, %v2186
    %v2483 = vpack.c.b16 %v2195, %v2187
    %v2484 = vpack.c.b16 %v2196, %v2188
    %v2485 = vpack.c.b16 %v2205, %v2197
    %v2486 = vpack.c.b16 %v2206, %v2198
    %v2487 = vpack.c.b16 %v2207, %v2199
    %v2488 = vpack.c.b16 %v2208, %v2200
    %v2489 = vpack.c.b16 %v2209, %v2201
    %v2490 = vpack.c.b16 %v2210, %v2202
    %v2491 = vpack.c.b16 %v2211, %v2203
    %v2492 = vpack.c.b16 %v2212, %v2204
    %v2493 = vpack.c.b16 %v2221, %v2213
    %v2494 = vpack.c.b16 %v2222, %v2214
    %v2495 = vpack.c.b16 %v2223, %v2215
    %v2496 = vpack.c.b16 %v2224, %v2216
    %v2497 = vpack.c.b16 %v2225, %v2217
    %v2498 = vpack.c.b16 %v2226, %v2218
    %v2499 = vpack.c.b16 %v2227, %v2219
    %v2500 = vpack.c.b16 %v2228, %v2220
    %v2501 = vpack.c.b16 %v2237, %v2229
    %v2502 = vpack.c.b16 %v2238, %v2230
    %v2503 = vpack.c.b16 %v2239, %v2231
    %v2504 = vpack.c.b16 %v2240, %v2232
    %v2505 = vpack.c.b16 %v2241, %v2233
    %v2506 = vpack.c.b16 %v2242, %v2234
    %v2507 = vpack.c.b16 %v2243, %v2235
    %v2508 = vpack.c.b16 %v2244, %v2236
    %v2509 = vpack.c.b16 %v2253, %v2245
    %v2510 = vpack.c.b16 %v2254, %v2246
    %v2511 = vpack.c.b16 %v2255, %v2247
    %v2512 = vpack.c.b16 %v2256, %v2248
    %v2513 = vpack.c.b16 %v2257, %v2249
    %v2514 = vpack.c.b16 %v2258, %v2250
    %v2515 = vpack.c.b16 %v2259, %v2251
    %v2516 = vpack.c.b16 %v2260, %v2252
    %2773 = vmatprep.subr.bf16.mxu0 %v2262
    %2774 = vmatpush1.bf16.msra.mxu0 %v2261
    %2775 = vmatprep.subr.bf16.mxu0 %v2270
    %2776 = vmatpush1.bf16.msra.mxu0 %v2269
    %2777 = vmatprep.subr.bf16.mxu0 %v2278
    %2778 = vmatpush1.bf16.msra.mxu0 %v2277
    %2779 = vmatprep.subr.bf16.mxu0 %v2286
    %2780 = vmatpush1.bf16.msra.mxu0 %v2285
    %2781 = vmatprep.subr.bf16.mxu0 %v2294
    %2782 = vmatpush1.bf16.msra.mxu0 %v2293
    %2783 = vmatprep.subr.bf16.mxu0 %v2302
    %2784 = vmatpush1.bf16.msra.mxu0 %v2301
    %2785 = vmatprep.subr.bf16.mxu0 %v2310
    %2786 = vmatpush1.bf16.msra.mxu0 %v2309
    %2787 = vmatprep.subr.bf16.mxu0 %v2318
    %2788 = vmatpush1.bf16.msra.mxu0 %v2317
    %2789 = vmatprep.subr.bf16.mxu0 %v2326
    %2790 = vmatpush1.bf16.msra.mxu0 %v2325
    %2791 = vmatprep.subr.bf16.mxu0 %v2334
    %2792 = vmatpush1.bf16.msra.mxu0 %v2333
    %2793 = vmatprep.subr.bf16.mxu0 %v2342
    %2794 = vmatpush1.bf16.msra.mxu0 %v2341
    %2795 = vmatprep.subr.bf16.mxu0 %v2350
    %2796 = vmatpush1.bf16.msra.mxu0 %v2349
    %2797 = vmatprep.subr.bf16.mxu0 %v2358
    %2798 = vmatpush1.bf16.msra.mxu0 %v2357
    %2799 = vmatprep.subr.bf16.mxu0 %v2366
    %2800 = vmatpush1.bf16.msra.mxu0 %v2365
    %2801 = vmatprep.subr.bf16.mxu0 %v2374
    %2802 = vmatpush1.bf16.msra.mxu0 %v2373
    %2803 = vmatprep.subr.bf16.mxu0 %v2382
    %2804 = vmatpush1.bf16.msra.mxu0 %v2381
    %2805 = vmatprep.mubr.bf16.mxu0 %v1448
    %2806 = vmatmul.mubr.bf16.gmra.mrb[0].mxu0 %v1447
    %v2807 = vpop.f32.mrb[0].mxu0
    %v2808 = vadd.f32 %v1456, %v2807
    %v2809 = vpop.f32.mrb[0].mxu0
    %v2810 = vadd.f32 %v1460, %v2809
    %v2811 = vpop.f32.mrb[0].mxu0
    %v2812 = vpop.f32.mrb[0].mxu0
    %2813 = vdwg.mxu0
    %2814 = vmatprep.subr.bf16.mxu0 %v2390
    %2815 = vmatpush1.bf16.msra.mxu0 %v2389
    %2816 = vmatprep.subr.bf16.mxu0 %v2398
    %2817 = vmatpush1.bf16.msra.mxu0 %v2397
    %2818 = vmatprep.subr.bf16.mxu0 %v2406
    %2819 = vmatpush1.bf16.msra.mxu0 %v2405
    %2820 = vmatprep.subr.bf16.mxu0 %v2414
    %2821 = vmatpush1.bf16.msra.mxu0 %v2413
    %2822 = vmatprep.subr.bf16.mxu0 %v2422
    %2823 = vmatpush1.bf16.msra.mxu0 %v2421
    %2824 = vmatprep.subr.bf16.mxu0 %v2430
    %2825 = vmatpush1.bf16.msra.mxu0 %v2429
    %2826 = vmatprep.subr.bf16.mxu0 %v2438
    %2827 = vmatpush1.bf16.msra.mxu0 %v2437
    %2828 = vmatprep.subr.bf16.mxu0 %v2446
    %2829 = vmatpush1.bf16.msra.mxu0 %v2445
    %2830 = vmatprep.subr.bf16.mxu0 %v2454
    %2831 = vmatpush1.bf16.msra.mxu0 %v2453
    %2832 = vmatprep.subr.bf16.mxu0 %v2462
    %2833 = vmatpush1.bf16.msra.mxu0 %v2461
    %2834 = vmatprep.subr.bf16.mxu0 %v2470
    %2835 = vmatpush1.bf16.msra.mxu0 %v2469
    %2836 = vmatprep.subr.bf16.mxu0 %v2478
    %2837 = vmatpush1.bf16.msra.mxu0 %v2477
    %2838 = vmatprep.subr.bf16.mxu0 %v2486
    %2839 = vmatpush1.bf16.msra.mxu0 %v2485
    %2840 = vmatprep.subr.bf16.mxu0 %v2494
    %2841 = vmatpush1.bf16.msra.mxu0 %v2493
    %2842 = vmatprep.subr.bf16.mxu0 %v2502
    %2843 = vmatpush1.bf16.msra.mxu0 %v2501
    %2844 = vmatprep.subr.bf16.mxu0 %v2510
    %2845 = vmatpush1.bf16.msra.mxu0 %v2509
    %2846 = vmatprep.mubr.bf16.mxu0 %v1450
    %2847 = vmatmul.mubr.bf16.gmra.mrb[0].mxu0 %v1449
    %v2848 = vpop.f32.mrb[0].mxu0
    %v2849 = vadd.f32 %v2808, %v2848
    %v2850 = vpop.f32.mrb[0].mxu0
    %v2851 = vadd.f32 %v2810, %v2850
    %v2852 = vpop.f32.mrb[0].mxu0
    %v2853 = vpop.f32.mrb[0].mxu0
    %2854 = vdwg.mxu0
    %2855 = vmatprep.subr.bf16.mxu0 %v2264
    %2856 = vmatpush1.bf16.msra.mxu0 %v2263
    %2857 = vmatprep.subr.bf16.mxu0 %v2272
    %2858 = vmatpush1.bf16.msra.mxu0 %v2271
    %2859 = vmatprep.subr.bf16.mxu0 %v2280
    %2860 = vmatpush1.bf16.msra.mxu0 %v2279
    %2861 = vmatprep.subr.bf16.mxu0 %v2288
    %2862 = vmatpush1.bf16.msra.mxu0 %v2287
    %2863 = vmatprep.subr.bf16.mxu0 %v2296
    %2864 = vmatpush1.bf16.msra.mxu0 %v2295
    %2865 = vmatprep.subr.bf16.mxu0 %v2304
    %2866 = vmatpush1.bf16.msra.mxu0 %v2303
    %2867 = vmatprep.subr.bf16.mxu0 %v2312
    %2868 = vmatpush1.bf16.msra.mxu0 %v2311
    %2869 = vmatprep.subr.bf16.mxu0 %v2320
    %2870 = vmatpush1.bf16.msra.mxu0 %v2319
    %2871 = vmatprep.subr.bf16.mxu0 %v2328
    %2872 = vmatpush1.bf16.msra.mxu0 %v2327
    %2873 = vmatprep.subr.bf16.mxu0 %v2336
    %2874 = vmatpush1.bf16.msra.mxu0 %v2335
    %2875 = vmatprep.subr.bf16.mxu0 %v2344
    %2876 = vmatpush1.bf16.msra.mxu0 %v2343
    %2877 = vmatprep.subr.bf16.mxu0 %v2352
    %2878 = vmatpush1.bf16.msra.mxu0 %v2351
    %2879 = vmatprep.subr.bf16.mxu0 %v2360
    %2880 = vmatpush1.bf16.msra.mxu0 %v2359
    %2881 = vmatprep.subr.bf16.mxu0 %v2368
    %2882 = vmatpush1.bf16.msra.mxu0 %v2367
    %2883 = vmatprep.subr.bf16.mxu0 %v2376
    %2884 = vmatpush1.bf16.msra.mxu0 %v2375
    %2885 = vmatprep.subr.bf16.mxu0 %v2384
    %2886 = vmatpush1.bf16.msra.mxu0 %v2383
    %2887 = vmatprep.mubr.bf16.mxu0 %v1448
    %2888 = vmatmul.mubr.bf16.gmra.mrb[0].mxu0 %v1447
    %v2889 = vpop.f32.mrb[0].mxu0
    %v2890 = vadd.f32 %v1464, %v2889
    %v2891 = vpop.f32.mrb[0].mxu0
    %v2892 = vadd.f32 %v1468, %v2891
    %v2893 = vpop.f32.mrb[0].mxu0
    %v2894 = vpop.f32.mrb[0].mxu0
    %2895 = vdwg.mxu0
    %2896 = vmatprep.subr.bf16.mxu0 %v2392
    %2897 = vmatpush1.bf16.msra.mxu0 %v2391
    %2898 = vmatprep.subr.bf16.mxu0 %v2400
    %2899 = vmatpush1.bf16.msra.mxu0 %v2399
    %2900 = vmatprep.subr.bf16.mxu0 %v2408
    %2901 = vmatpush1.bf16.msra.mxu0 %v2407
    %2902 = vmatprep.subr.bf16.mxu0 %v2416
    %2903 = vmatpush1.bf16.msra.mxu0 %v2415
    %2904 = vmatprep.subr.bf16.mxu0 %v2424
    %2905 = vmatpush1.bf16.msra.mxu0 %v2423
    %2906 = vmatprep.subr.bf16.mxu0 %v2432
    %2907 = vmatpush1.bf16.msra.mxu0 %v2431
    %2908 = vmatprep.subr.bf16.mxu0 %v2440
    %2909 = vmatpush1.bf16.msra.mxu0 %v2439
    %2910 = vmatprep.subr.bf16.mxu0 %v2448
    %2911 = vmatpush1.bf16.msra.mxu0 %v2447
    %2912 = vmatprep.subr.bf16.mxu0 %v2456
    %2913 = vmatpush1.bf16.msra.mxu0 %v2455
    %2914 = vmatprep.subr.bf16.mxu0 %v2464
    %2915 = vmatpush1.bf16.msra.mxu0 %v2463
    %2916 = vmatprep.subr.bf16.mxu0 %v2472
    %2917 = vmatpush1.bf16.msra.mxu0 %v2471
    %2918 = vmatprep.subr.bf16.mxu0 %v2480
    %2919 = vmatpush1.bf16.msra.mxu0 %v2479
    %2920 = vmatprep.subr.bf16.mxu0 %v2488
    %2921 = vmatpush1.bf16.msra.mxu0 %v2487
    %2922 = vmatprep.subr.bf16.mxu0 %v2496
    %2923 = vmatpush1.bf16.msra.mxu0 %v2495
    %2924 = vmatprep.subr.bf16.mxu0 %v2504
    %2925 = vmatpush1.bf16.msra.mxu0 %v2503
    %2926 = vmatprep.subr.bf16.mxu0 %v2512
    %2927 = vmatpush1.bf16.msra.mxu0 %v2511
    %2928 = vmatprep.mubr.bf16.mxu0 %v1450
    %2929 = vmatmul.mubr.bf16.gmra.mrb[0].mxu0 %v1449
    %v2930 = vpop.f32.mrb[0].mxu0
    %v2931 = vadd.f32 %v2890, %v2930
    %v2932 = vpop.f32.mrb[0].mxu0
    %v2933 = vadd.f32 %v2892, %v2932
    %v2934 = vpop.f32.mrb[0].mxu0
    %v2935 = vpop.f32.mrb[0].mxu0
    %2936 = vdwg.mxu0
    %2937 = vmatprep.subr.bf16.mxu0 %v2266
    %2938 = vmatpush1.bf16.msra.mxu0 %v2265
    %2939 = vmatprep.subr.bf16.mxu0 %v2274
    %2940 = vmatpush1.bf16.msra.mxu0 %v2273
    %2941 = vmatprep.subr.bf16.mxu0 %v2282
    %2942 = vmatpush1.bf16.msra.mxu0 %v2281
    %2943 = vmatprep.subr.bf16.mxu0 %v2290
    %2944 = vmatpush1.bf16.msra.mxu0 %v2289
    %2945 = vmatprep.subr.bf16.mxu0 %v2298
    %2946 = vmatpush1.bf16.msra.mxu0 %v2297
    %2947 = vmatprep.subr.bf16.mxu0 %v2306
    %2948 = vmatpush1.bf16.msra.mxu0 %v2305
    %2949 = vmatprep.subr.bf16.mxu0 %v2314
    %2950 = vmatpush1.bf16.msra.mxu0 %v2313
    %2951 = vmatprep.subr.bf16.mxu0 %v2322
    %2952 = vmatpush1.bf16.msra.mxu0 %v2321
    %2953 = vmatprep.subr.bf16.mxu0 %v2330
    %2954 = vmatpush1.bf16.msra.mxu0 %v2329
    %2955 = vmatprep.subr.bf16.mxu0 %v2338
    %2956 = vmatpush1.bf16.msra.mxu0 %v2337
    %2957 = vmatprep.subr.bf16.mxu0 %v2346
    %2958 = vmatpush1.bf16.msra.mxu0 %v2345
    %2959 = vmatprep.subr.bf16.mxu0 %v2354
    %2960 = vmatpush1.bf16.msra.mxu0 %v2353
    %2961 = vmatprep.subr.bf16.mxu0 %v2362
    %2962 = vmatpush1.bf16.msra.mxu0 %v2361
    %2963 = vmatprep.subr.bf16.mxu0 %v2370
    %2964 = vmatpush1.bf16.msra.mxu0 %v2369
    %2965 = vmatprep.subr.bf16.mxu0 %v2378
    %2966 = vmatpush1.bf16.msra.mxu0 %v2377
    %2967 = vmatprep.subr.bf16.mxu0 %v2386
    %2968 = vmatpush1.bf16.msra.mxu0 %v2385
    %2969 = vmatprep.mubr.bf16.mxu0 %v1448
    %2970 = vmatmul.mubr.bf16.gmra.mrb[0].mxu0 %v1447
    %v2971 = vpop.f32.mrb[0].mxu0
    %v2972 = vadd.f32 %v1472, %v2971
    %v2973 = vpop.f32.mrb[0].mxu0
    %v2974 = vadd.f32 %v1476, %v2973
    %v2975 = vpop.f32.mrb[0].mxu0
    %v2976 = vpop.f32.mrb[0].mxu0
    %2977 = vdwg.mxu0
    %2978 = vmatprep.subr.bf16.mxu0 %v2394
    %2979 = vmatpush1.bf16.msra.mxu0 %v2393
    %2980 = vmatprep.subr.bf16.mxu0 %v2402
    %2981 = vmatpush1.bf16.msra.mxu0 %v2401
    %2982 = vmatprep.subr.bf16.mxu0 %v2410
    %2983 = vmatpush1.bf16.msra.mxu0 %v2409
    %2984 = vmatprep.subr.bf16.mxu0 %v2418
    %2985 = vmatpush1.bf16.msra.mxu0 %v2417
    %2986 = vmatprep.subr.bf16.mxu0 %v2426
    %2987 = vmatpush1.bf16.msra.mxu0 %v2425
    %2988 = vmatprep.subr.bf16.mxu0 %v2434
    %2989 = vmatpush1.bf16.msra.mxu0 %v2433
    %2990 = vmatprep.subr.bf16.mxu0 %v2442
    %2991 = vmatpush1.bf16.msra.mxu0 %v2441
    %2992 = vmatprep.subr.bf16.mxu0 %v2450
    %2993 = vmatpush1.bf16.msra.mxu0 %v2449
    %2994 = vmatprep.subr.bf16.mxu0 %v2458
    %2995 = vmatpush1.bf16.msra.mxu0 %v2457
    %2996 = vmatprep.subr.bf16.mxu0 %v2466
    %2997 = vmatpush1.bf16.msra.mxu0 %v2465
    %2998 = vmatprep.subr.bf16.mxu0 %v2474
    %2999 = vmatpush1.bf16.msra.mxu0 %v2473
    %3000 = vmatprep.subr.bf16.mxu0 %v2482
    %3001 = vmatpush1.bf16.msra.mxu0 %v2481
    %3002 = vmatprep.subr.bf16.mxu0 %v2490
    %3003 = vmatpush1.bf16.msra.mxu0 %v2489
    %3004 = vmatprep.subr.bf16.mxu0 %v2498
    %3005 = vmatpush1.bf16.msra.mxu0 %v2497
    %3006 = vmatprep.subr.bf16.mxu0 %v2506
    %3007 = vmatpush1.bf16.msra.mxu0 %v2505
    %3008 = vmatprep.subr.bf16.mxu0 %v2514
    %3009 = vmatpush1.bf16.msra.mxu0 %v2513
    %3010 = vmatprep.mubr.bf16.mxu0 %v1450
    %3011 = vmatmul.mubr.bf16.gmra.mrb[0].mxu0 %v1449
    %v3012 = vpop.f32.mrb[0].mxu0
    %v3013 = vadd.f32 %v2972, %v3012
    %v3014 = vpop.f32.mrb[0].mxu0
    %v3015 = vadd.f32 %v2974, %v3014
    %v3016 = vpop.f32.mrb[0].mxu0
    %v3017 = vpop.f32.mrb[0].mxu0
    %3018 = vdwg.mxu0
    %3019 = vmatprep.subr.bf16.mxu0 %v2268
    %3020 = vmatpush1.bf16.msra.mxu0 %v2267
    %3021 = vmatprep.subr.bf16.mxu0 %v2276
    %3022 = vmatpush1.bf16.msra.mxu0 %v2275
    %3023 = vmatprep.subr.bf16.mxu0 %v2284
    %3024 = vmatpush1.bf16.msra.mxu0 %v2283
    %3025 = vmatprep.subr.bf16.mxu0 %v2292
    %3026 = vmatpush1.bf16.msra.mxu0 %v2291
    %3027 = vmatprep.subr.bf16.mxu0 %v2300
    %3028 = vmatpush1.bf16.msra.mxu0 %v2299
    %3029 = vmatprep.subr.bf16.mxu0 %v2308
    %3030 = vmatpush1.bf16.msra.mxu0 %v2307
    %3031 = vmatprep.subr.bf16.mxu0 %v2316
    %3032 = vmatpush1.bf16.msra.mxu0 %v2315
    %3033 = vmatprep.subr.bf16.mxu0 %v2324
    %3034 = vmatpush1.bf16.msra.mxu0 %v2323
    %3035 = vmatprep.subr.bf16.mxu0 %v2332
    %3036 = vmatpush1.bf16.msra.mxu0 %v2331
    %3037 = vmatprep.subr.bf16.mxu0 %v2340
    %3038 = vmatpush1.bf16.msra.mxu0 %v2339
    %3039 = vmatprep.subr.bf16.mxu0 %v2348
    %3040 = vmatpush1.bf16.msra.mxu0 %v2347
    %3041 = vmatprep.subr.bf16.mxu0 %v2356
    %3042 = vmatpush1.bf16.msra.mxu0 %v2355
    %3043 = vmatprep.subr.bf16.mxu0 %v2364
    %3044 = vmatpush1.bf16.msra.mxu0 %v2363
    %3045 = vmatprep.subr.bf16.mxu0 %v2372
    %3046 = vmatpush1.bf16.msra.mxu0 %v2371
    %3047 = vmatprep.subr.bf16.mxu0 %v2380
    %3048 = vmatpush1.bf16.msra.mxu0 %v2379
    %3049 = vmatprep.subr.bf16.mxu0 %v2388
    %3050 = vmatpush1.bf16.msra.mxu0 %v2387
    %3051 = vmatprep.mubr.bf16.mxu0 %v1448
    %3052 = vmatmul.mubr.bf16.gmra.mrb[0].mxu0 %v1447
    %v3053 = vpop.f32.mrb[0].mxu0
    %v3054 = vadd.f32 %v1480, %v3053
    %v3055 = vpop.f32.mrb[0].mxu0
    %v3056 = vadd.f32 %v1484, %v3055
    %v3057 = vpop.f32.mrb[0].mxu0
    %v3058 = vpop.f32.mrb[0].mxu0
    %3059 = vdwg.mxu0
    %3060 = vmatprep.subr.bf16.mxu0 %v2396
    %3061 = vmatpush1.bf16.msra.mxu0 %v2395
    %3062 = vmatprep.subr.bf16.mxu0 %v2404
    %3063 = vmatpush1.bf16.msra.mxu0 %v2403
    %3064 = vmatprep.subr.bf16.mxu0 %v2412
    %3065 = vmatpush1.bf16.msra.mxu0 %v2411
    %3066 = vmatprep.subr.bf16.mxu0 %v2420
    %3067 = vmatpush1.bf16.msra.mxu0 %v2419
    %3068 = vmatprep.subr.bf16.mxu0 %v2428
    %3069 = vmatpush1.bf16.msra.mxu0 %v2427
    %3070 = vmatprep.subr.bf16.mxu0 %v2436
    %3071 = vmatpush1.bf16.msra.mxu0 %v2435
    %3072 = vmatprep.subr.bf16.mxu0 %v2444
    %3073 = vmatpush1.bf16.msra.mxu0 %v2443
    %3074 = vmatprep.subr.bf16.mxu0 %v2452
    %3075 = vmatpush1.bf16.msra.mxu0 %v2451
    %3076 = vmatprep.subr.bf16.mxu0 %v2460
    %3077 = vmatpush1.bf16.msra.mxu0 %v2459
    %3078 = vmatprep.subr.bf16.mxu0 %v2468
    %3079 = vmatpush1.bf16.msra.mxu0 %v2467
    %3080 = vmatprep.subr.bf16.mxu0 %v2476
    %3081 = vmatpush1.bf16.msra.mxu0 %v2475
    %3082 = vmatprep.subr.bf16.mxu0 %v2484
    %3083 = vmatpush1.bf16.msra.mxu0 %v2483
    %3084 = vmatprep.subr.bf16.mxu0 %v2492
    %3085 = vmatpush1.bf16.msra.mxu0 %v2491
    %3086 = vmatprep.subr.bf16.mxu0 %v2500
    %3087 = vmatpush1.bf16.msra.mxu0 %v2499
    %3088 = vmatprep.subr.bf16.mxu0 %v2508
    %3089 = vmatpush1.bf16.msra.mxu0 %v2507
    %3090 = vmatprep.subr.bf16.mxu0 %v2516
    %3091 = vmatpush1.bf16.msra.mxu0 %v2515
    %3092 = vmatprep.mubr.bf16.mxu0 %v1450
    %3093 = vmatmul.mubr.bf16.gmra.mrb[0].mxu0 %v1449
    %v3094 = vpop.f32.mrb[0].mxu0
    %v3095 = vadd.f32 %v3054, %v3094
    %v3096 = vpop.f32.mrb[0].mxu0
    %v3097 = vadd.f32 %v3056, %v3096
    %v3098 = vpop.f32.mrb[0].mxu0
    %v3099 = vpop.f32.mrb[0].mxu0
    %3100 = vdwg.mxu0
    %v3101 = vld [vmem:[%s13] sm:$0xff]
    %v3102 = vld [vmem:[%s14] sm:$0xff]
    %v3103 = vrot.slane %v2849, 4
    %v3104 = vadd.f32 %v2849, %v3103
    %v3105 = vrot.slane %v3104, 2
    %v3106 = vadd.f32 %v3104, %v3105
    %v3107 = vrot.slane %v3106, 1
    %v3108 = vadd.f32 %v3106, %v3107
    %v3109 = vrot.slane %v2851, 4
    %v3110 = vadd.f32 %v2851, %v3109
    %v3111 = vrot.slane %v3110, 2
    %v3112 = vadd.f32 %v3110, %v3111
    %v3113 = vrot.slane %v3112, 1
    %v3114 = vadd.f32 %v3112, %v3113
    %v3115 = vrot.slane %v2931, 4
    %v3116 = vadd.f32 %v2931, %v3115
    %v3117 = vrot.slane %v3116, 2
    %v3118 = vadd.f32 %v3116, %v3117
    %v3119 = vrot.slane %v3118, 1
    %v3120 = vadd.f32 %v3118, %v3119
    %v3121 = vrot.slane %v2933, 4
    %v3122 = vadd.f32 %v2933, %v3121
    %v3123 = vrot.slane %v3122, 2
    %v3124 = vadd.f32 %v3122, %v3123
    %v3125 = vrot.slane %v3124, 1
    %v3126 = vadd.f32 %v3124, %v3125
    %v3127 = vrot.slane %v3013, 4
    %v3128 = vadd.f32 %v3013, %v3127
    %v3129 = vrot.slane %v3128, 2
    %v3130 = vadd.f32 %v3128, %v3129
    %v3131 = vrot.slane %v3130, 1
    %v3132 = vadd.f32 %v3130, %v3131
    %v3133 = vrot.slane %v3015, 4
    %v3134 = vadd.f32 %v3015, %v3133
    %v3135 = vrot.slane %v3134, 2
    %v3136 = vadd.f32 %v3134, %v3135
    %v3137 = vrot.slane %v3136, 1
    %v3138 = vadd.f32 %v3136, %v3137
    %v3139 = vrot.slane %v3095, 4
    %v3140 = vadd.f32 %v3095, %v3139
    %v3141 = vrot.slane %v3140, 2
    %v3142 = vadd.f32 %v3140, %v3141
    %v3143 = vrot.slane %v3142, 1
    %v3144 = vadd.f32 %v3142, %v3143
    %v3145 = vrot.slane %v3097, 4
    %v3146 = vadd.f32 %v3097, %v3145
    %v3147 = vrot.slane %v3146, 2
    %v3148 = vadd.f32 %v3146, %v3147
    %v3149 = vrot.slane %v3148, 1
    %v3150 = vadd.f32 %v3148, %v3149
    %v3151 = vmul.f32 %v2849, %v2849
    %v3152 = vmul.f32 %v2851, %v2851
    %v3153 = vmul.f32 %v2931, %v2931
    %v3154 = vmul.f32 %v2933, %v2933
    %v3155 = vmul.f32 %v3013, %v3013
    %v3156 = vmul.f32 %v3015, %v3015
    %v3157 = vmul.f32 %v3095, %v3095
    %v3158 = vmul.f32 %v3097, %v3097
    %v3159 = vrot.slane %v3151, 4
    %v3160 = vadd.f32 %v3151, %v3159
    %v3161 = vrot.slane %v3160, 2
    %v3162 = vadd.f32 %v3160, %v3161
    %v3163 = vrot.slane %v3162, 1
    %v3164 = vadd.f32 %v3162, %v3163
    %v3165 = vrot.slane %v3152, 4
    %v3166 = vadd.f32 %v3152, %v3165
    %v3167 = vrot.slane %v3166, 2
    %v3168 = vadd.f32 %v3166, %v3167
    %v3169 = vrot.slane %v3168, 1
    %v3170 = vadd.f32 %v3168, %v3169
    %v3171 = vrot.slane %v3153, 4
    %v3172 = vadd.f32 %v3153, %v3171
    %v3173 = vrot.slane %v3172, 2
    %v3174 = vadd.f32 %v3172, %v3173
    %v3175 = vrot.slane %v3174, 1
    %v3176 = vadd.f32 %v3174, %v3175
    %v3177 = vrot.slane %v3154, 4
    %v3178 = vadd.f32 %v3154, %v3177
    %v3179 = vrot.slane %v3178, 2
    %v3180 = vadd.f32 %v3178, %v3179
    %v3181 = vrot.slane %v3180, 1
    %v3182 = vadd.f32 %v3180, %v3181
    %v3183 = vrot.slane %v3155, 4
    %v3184 = vadd.f32 %v3155, %v3183
    %v3185 = vrot.slane %v3184, 2
    %v3186 = vadd.f32 %v3184, %v3185
    %v3187 = vrot.slane %v3186, 1
    %v3188 = vadd.f32 %v3186, %v3187
    %v3189 = vrot.slane %v3156, 4
    %v3190 = vadd.f32 %v3156, %v3189
    %v3191 = vrot.slane %v3190, 2
    %v3192 = vadd.f32 %v3190, %v3191
    %v3193 = vrot.slane %v3192, 1
    %v3194 = vadd.f32 %v3192, %v3193
    %v3195 = vrot.slane %v3157, 4
    %v3196 = vadd.f32 %v3157, %v3195
    %v3197 = vrot.slane %v3196, 2
    %v3198 = vadd.f32 %v3196, %v3197
    %v3199 = vrot.slane %v3198, 1
    %v3200 = vadd.f32 %v3198, %v3199
    %v3201 = vrot.slane %v3158, 4
    %v3202 = vadd.f32 %v3158, %v3201
    %v3203 = vrot.slane %v3202, 2
    %v3204 = vadd.f32 %v3202, %v3203
    %v3205 = vrot.slane %v3204, 1
    %v3206 = vadd.f32 %v3204, %v3205
    %v3207 = vmul.f32 %v3108, 0.125
    %v3208 = vmul.f32 %v3114, 0.125
    %v3209 = vmul.f32 %v3120, 0.125
    %v3210 = vmul.f32 %v3126, 0.125
    %v3211 = vmul.f32 %v3132, 0.125
    %v3212 = vmul.f32 %v3138, 0.125
    %v3213 = vmul.f32 %v3144, 0.125
    %v3214 = vmul.f32 %v3150, 0.125
    %v3215 = vmul.f32 %v3164, 0.125
    %v3216 = vmul.f32 %v3170, 0.125
    %v3217 = vmul.f32 %v3176, 0.125
    %v3218 = vmul.f32 %v3182, 0.125
    %v3219 = vmul.f32 %v3188, 0.125
    %v3220 = vmul.f32 %v3194, 0.125
    %v3221 = vmul.f32 %v3200, 0.125
    %v3222 = vmul.f32 %v3206, 0.125
    %v3223 = vmul.f32 %v3207, %v3207
    %v3224 = vmul.f32 %v3208, %v3208
    %v3225 = vmul.f32 %v3209, %v3209
    %v3226 = vmul.f32 %v3210, %v3210
    %v3227 = vmul.f32 %v3211, %v3211
    %v3228 = vmul.f32 %v3212, %v3212
    %v3229 = vmul.f32 %v3213, %v3213
    %v3230 = vmul.f32 %v3214, %v3214
    %v3231 = vsub.f32 %v3215, %v3223
    %v3232 = vsub.f32 %v3216, %v3224
    %v3233 = vsub.f32 %v3217, %v3225
    %v3234 = vsub.f32 %v3218, %v3226
    %v3235 = vsub.f32 %v3219, %v3227
    %v3236 = vsub.f32 %v3220, %v3228
    %v3237 = vsub.f32 %v3221, %v3229
    %v3238 = vsub.f32 %v3222, %v3230
    %v3239 = vsub.f32 %v2849, %v3207
    %v3240 = vsub.f32 %v2851, %v3208
    %v3241 = vsub.f32 %v2931, %v3209
    %v3242 = vsub.f32 %v2933, %v3210
    %v3243 = vsub.f32 %v3013, %v3211
    %v3244 = vsub.f32 %v3015, %v3212
    %v3245 = vsub.f32 %v3095, %v3213
    %v3246 = vsub.f32 %v3097, %v3214
    %v3247 = vadd.f32 %v3231, 0.8
    %v3248 = vadd.f32 %v3232, 0.8
    %v3249 = vadd.f32 %v3233, 0.8
    %v3250 = vadd.f32 %v3234, 0.8
    %v3251 = vadd.f32 %v3235, 0.8
    %v3252 = vadd.f32 %v3236, 0.8
    %v3253 = vadd.f32 %v3237, 0.8
    %v3254 = vadd.f32 %v3238, 0.8
    %v3255 = vrsqrt.pop %v3247
    %v3256 = vrsqrt.pop %v3248
    %v3257 = vrsqrt.pop %v3249
    %v3258 = vrsqrt.pop %v3250
    %v3259 = vrsqrt.pop %v3251
    %v3260 = vrsqrt.pop %v3252
    %v3261 = vrsqrt.pop %v3253
    %v3262 = vrsqrt.pop %v3254
    %v3263 = vmul.f32 %v3239, %v3255
    %v3264 = vmul.f32 %v3240, %v3256
    %v3265 = vmul.f32 %v3241, %v3257
    %v3266 = vmul.f32 %v3242, %v3258
    %v3267 = vmul.f32 %v3243, %v3259
    %v3268 = vmul.f32 %v3244, %v3260
    %v3269 = vmul.f32 %v3245, %v3261
    %v3270 = vmul.f32 %v3246, %v3262
    %v3272 = vlaneseq
    %v3273 = vshrl.u32 %v3272, 7
    %v3274 = vsub.s32 0, %v3273
    %v3275 = vrot.slane %v3101, %v3274
    %v3276 = vlaneseq
    %v3277 = vshrl.u32 %v3276, 7
    %v3278 = vsub.s32 1, %v3277
    %v3279 = vrot.slane %v3101, %v3278
    %v3280 = vlaneseq
    %v3281 = vshrl.u32 %v3280, 7
    %v3282 = vsub.s32 2, %v3281
    %v3283 = vrot.slane %v3101, %v3282
    %v3284 = vlaneseq
    %v3285 = vshrl.u32 %v3284, 7
    %v3286 = vsub.s32 3, %v3285
    %v3287 = vrot.slane %v3101, %v3286
    %v3288 = vlaneseq
    %v3289 = vshrl.u32 %v3288, 7
    %v3290 = vsub.s32 4, %v3289
    %v3291 = vrot.slane %v3101, %v3290
    %v3292 = vlaneseq
    %v3293 = vshrl.u32 %v3292, 7
    %v3294 = vsub.s32 5, %v3293
    %v3295 = vrot.slane %v3101, %v3294
    %v3296 = vlaneseq
    %v3297 = vshrl.u32 %v3296, 7
    %v3298 = vsub.s32 6, %v3297
    %v3299 = vrot.slane %v3101, %v3298
    %v3300 = vlaneseq
    %v3301 = vshrl.u32 %v3300, 7
    %v3302 = vsub.s32 7, %v3301
    %v3303 = vrot.slane %v3101, %v3302
    %v3312 = vmul.f32 %v3263, %v3275
    %v3313 = vmul.f32 %v3264, %v3279
    %v3314 = vmul.f32 %v3265, %v3283
    %v3315 = vmul.f32 %v3266, %v3287
    %v3316 = vmul.f32 %v3267, %v3291
    %v3317 = vmul.f32 %v3268, %v3295
    %v3318 = vmul.f32 %v3269, %v3299
    %v3319 = vmul.f32 %v3270, %v3303
    %v3321 = vlaneseq
    %v3322 = vshrl.u32 %v3321, 7
    %v3323 = vsub.s32 0, %v3322
    %v3324 = vrot.slane %v3102, %v3323
    %v3325 = vlaneseq
    %v3326 = vshrl.u32 %v3325, 7
    %v3327 = vsub.s32 1, %v3326
    %v3328 = vrot.slane %v3102, %v3327
    %v3329 = vlaneseq
    %v3330 = vshrl.u32 %v3329, 7
    %v3331 = vsub.s32 2, %v3330
    %v3332 = vrot.slane %v3102, %v3331
    %v3333 = vlaneseq
    %v3334 = vshrl.u32 %v3333, 7
    %v3335 = vsub.s32 3, %v3334
    %v3336 = vrot.slane %v3102, %v3335
    %v3337 = vlaneseq
    %v3338 = vshrl.u32 %v3337, 7
    %v3339 = vsub.s32 4, %v3338
    %v3340 = vrot.slane %v3102, %v3339
    %v3341 = vlaneseq
    %v3342 = vshrl.u32 %v3341, 7
    %v3343 = vsub.s32 5, %v3342
    %v3344 = vrot.slane %v3102, %v3343
    %v3345 = vlaneseq
    %v3346 = vshrl.u32 %v3345, 7
    %v3347 = vsub.s32 6, %v3346
    %v3348 = vrot.slane %v3102, %v3347
    %v3349 = vlaneseq
    %v3350 = vshrl.u32 %v3349, 7
    %v3351 = vsub.s32 7, %v3350
    %v3352 = vrot.slane %v3102, %v3351
    %v3361 = vadd.f32 %v3312, %v3324
    %v3362 = vadd.f32 %v3313, %v3328
    %v3363 = vadd.f32 %v3314, %v3332
    %v3364 = vadd.f32 %v3315, %v3336
    %v3365 = vadd.f32 %v3316, %v3340
    %v3366 = vadd.f32 %v3317, %v3344
    %v3367 = vadd.f32 %v3318, %v3348
    %v3368 = vadd.f32 %v3319, %v3352
    %v3369 = vmul.f32 %v3361, 0.2
    %v3370 = vmul.f32 %v3362, 0.2
    %v3371 = vmul.f32 %v3363, 0.2
    %v3372 = vmul.f32 %v3364, 0.2
    %v3373 = vmul.f32 %v3365, 0.2
    %v3374 = vmul.f32 %v3366, 0.2
    %v3375 = vmul.f32 %v3367, 0.2
    %v3376 = vmul.f32 %v3368, 0.2
    %v3377 = vmax.f32 %v3361, %v3369
    %v3378 = vmax.f32 %v3362, %v3370
    %v3379 = vmax.f32 %v3363, %v3371
    %v3380 = vmax.f32 %v3364, %v3372
    %v3381 = vmax.f32 %v3365, %v3373
    %v3382 = vmax.f32 %v3366, %v3374
    %v3383 = vmax.f32 %v3367, %v3375
    %v3384 = vmax.f32 %v3368, %v3376
    %v3385 = vld [vmem:[#allocation16] sm:$0xf]
    %v3386 = vld [vmem:[#allocation16 + $0x4] sm:$0xf]
    %v3387 = vld [vmem:[#allocation16 + $0x8] sm:$0xf]
    %v3388 = vld [vmem:[#allocation16 + $0xc] sm:$0xf]
    %v3389 = vld [vmem:[#allocation16 + $0x10] sm:$0xf]
    %v3390 = vld [vmem:[#allocation16 + $0x14] sm:$0xf]
    %v3391 = vld [vmem:[#allocation16 + $0x18] sm:$0xf]
    %v3392 = vld [vmem:[#allocation16 + $0x1c] sm:$0xf]
    %v3393 = vld [vmem:[#allocation16 + $0x20] sm:$0xf]
    %v3394 = vld [vmem:[#allocation16 + $0x24] sm:$0xf]
    %v3395 = vld [vmem:[#allocation16 + $0x28] sm:$0xf]
    %v3396 = vld [vmem:[#allocation16 + $0x2c] sm:$0xf]
    %v3397 = vld [vmem:[#allocation16 + $0x30] sm:$0xf]
    %v3398 = vld [vmem:[#allocation16 + $0x34] sm:$0xf]
    %v3399 = vld [vmem:[#allocation16 + $0x38] sm:$0xf]
    %v3400 = vld [vmem:[#allocation16 + $0x3c] sm:$0xf]
    %v3401 = vld [vmem:[#allocation16 + $0x40] sm:$0xf]
    %v3402 = vld [vmem:[#allocation16 + $0x44] sm:$0xf]
    %v3403 = vld [vmem:[#allocation16 + $0x48] sm:$0xf]
    %v3404 = vld [vmem:[#allocation16 + $0x4c] sm:$0xf]
    %v3405 = vld [vmem:[#allocation16 + $0x50] sm:$0xf]
    %v3406 = vld [vmem:[#allocation16 + $0x54] sm:$0xf]
    %v3407 = vld [vmem:[#allocation16 + $0x58] sm:$0xf]
    %v3408 = vld [vmem:[#allocation16 + $0x5c] sm:$0xf]
    %v3409 = vld [vmem:[#allocation16 + $0x60] sm:$0xf]
    %v3410 = vld [vmem:[#allocation16 + $0x64] sm:$0xf]
    %v3411 = vld [vmem:[#allocation16 + $0x68] sm:$0xf]
    %v3412 = vld [vmem:[#allocation16 + $0x6c] sm:$0xf]
    %v3413 = vld [vmem:[#allocation16 + $0x70] sm:$0xf]
    %v3414 = vld [vmem:[#allocation16 + $0x74] sm:$0xf]
    %v3415 = vld [vmem:[#allocation16 + $0x78] sm:$0xf]
    %v3416 = vld [vmem:[#allocation16 + $0x7c] sm:$0xf]
    %v3417 = vld [vmem:[#allocation16 + $0x80] sm:$0xf]
    %v3418 = vld [vmem:[#allocation16 + $0x84] sm:$0xf]
    %v3419 = vld [vmem:[#allocation16 + $0x88] sm:$0xf]
    %v3420 = vld [vmem:[#allocation16 + $0x8c] sm:$0xf]
    %v3421 = vld [vmem:[#allocation16 + $0x90] sm:$0xf]
    %v3422 = vld [vmem:[#allocation16 + $0x94] sm:$0xf]
    %v3423 = vld [vmem:[#allocation16 + $0x98] sm:$0xf]
    %v3424 = vld [vmem:[#allocation16 + $0x9c] sm:$0xf]
    %v3425 = vld [vmem:[#allocation16 + $0xa0] sm:$0xf]
    %v3426 = vld [vmem:[#allocation16 + $0xa4] sm:$0xf]
    %v3427 = vld [vmem:[#allocation16 + $0xa8] sm:$0xf]
    %v3428 = vld [vmem:[#allocation16 + $0xac] sm:$0xf]
    %v3429 = vld [vmem:[#allocation16 + $0xb0] sm:$0xf]
    %v3430 = vld [vmem:[#allocation16 + $0xb4] sm:$0xf]
    %v3431 = vld [vmem:[#allocation16 + $0xb8] sm:$0xf]
    %v3432 = vld [vmem:[#allocation16 + $0xbc] sm:$0xf]
    %v3433 = vld [vmem:[#allocation16 + $0xc0] sm:$0xf]
    %v3434 = vld [vmem:[#allocation16 + $0xc4] sm:$0xf]
    %v3435 = vld [vmem:[#allocation16 + $0xc8] sm:$0xf]
    %v3436 = vld [vmem:[#allocation16 + $0xcc] sm:$0xf]
    %v3437 = vld [vmem:[#allocation16 + $0xd0] sm:$0xf]
    %v3438 = vld [vmem:[#allocation16 + $0xd4] sm:$0xf]
    %v3439 = vld [vmem:[#allocation16 + $0xd8] sm:$0xf]
    %v3440 = vld [vmem:[#allocation16 + $0xdc] sm:$0xf]
    %v3441 = vld [vmem:[#allocation16 + $0xe0] sm:$0xf]
    %v3442 = vld [vmem:[#allocation16 + $0xe4] sm:$0xf]
    %v3443 = vld [vmem:[#allocation16 + $0xe8] sm:$0xf]
    %v3444 = vld [vmem:[#allocation16 + $0xec] sm:$0xf]
    %v3445 = vld [vmem:[#allocation16 + $0xf0] sm:$0xf]
    %v3446 = vld [vmem:[#allocation16 + $0xf4] sm:$0xf]
    %v3447 = vld [vmem:[#allocation16 + $0xf8] sm:$0xf]
    %v3448 = vld [vmem:[#allocation16 + $0xfc] sm:$0xf]
    %v3449 = vld [vmem:[#allocation16 + $0x100] sm:$0xf]
    %v3450 = vld [vmem:[#allocation16 + $0x104] sm:$0xf]
    %v3451 = vld [vmem:[#allocation16 + $0x108] sm:$0xf]
    %v3452 = vld [vmem:[#allocation16 + $0x10c] sm:$0xf]
    %v3453 = vld [vmem:[#allocation16 + $0x110] sm:$0xf]
    %v3454 = vld [vmem:[#allocation16 + $0x114] sm:$0xf]
    %v3455 = vld [vmem:[#allocation16 + $0x118] sm:$0xf]
    %v3456 = vld [vmem:[#allocation16 + $0x11c] sm:$0xf]
    %v3457 = vld [vmem:[#allocation16 + $0x120] sm:$0xf]
    %v3458 = vld [vmem:[#allocation16 + $0x124] sm:$0xf]
    %v3459 = vld [vmem:[#allocation16 + $0x128] sm:$0xf]
    %v3460 = vld [vmem:[#allocation16 + $0x12c] sm:$0xf]
    %v3461 = vld [vmem:[#allocation16 + $0x130] sm:$0xf]
    %v3462 = vld [vmem:[#allocation16 + $0x134] sm:$0xf]
    %v3463 = vld [vmem:[#allocation16 + $0x138] sm:$0xf]
    %v3464 = vld [vmem:[#allocation16 + $0x13c] sm:$0xf]
    %v3465 = vld [vmem:[#allocation16 + $0x140] sm:$0xf]
    %v3466 = vld [vmem:[#allocation16 + $0x144] sm:$0xf]
    %v3467 = vld [vmem:[#allocation16 + $0x148] sm:$0xf]
    %v3468 = vld [vmem:[#allocation16 + $0x14c] sm:$0xf]
    %v3469 = vld [vmem:[#allocation16 + $0x150] sm:$0xf]
    %v3470 = vld [vmem:[#allocation16 + $0x154] sm:$0xf]
    %v3471 = vld [vmem:[#allocation16 + $0x158] sm:$0xf]
    %v3472 = vld [vmem:[#allocation16 + $0x15c] sm:$0xf]
    %v3473 = vld [vmem:[#allocation16 + $0x160] sm:$0xf]
    %v3474 = vld [vmem:[#allocation16 + $0x164] sm:$0xf]
    %v3475 = vld [vmem:[#allocation16 + $0x168] sm:$0xf]
    %v3476 = vld [vmem:[#allocation16 + $0x16c] sm:$0xf]
    %v3477 = vld [vmem:[#allocation16 + $0x170] sm:$0xf]
    %v3478 = vld [vmem:[#allocation16 + $0x174] sm:$0xf]
    %v3479 = vld [vmem:[#allocation16 + $0x178] sm:$0xf]
    %v3480 = vld [vmem:[#allocation16 + $0x17c] sm:$0xf]
    %v3481 = vld [vmem:[#allocation16 + $0x180] sm:$0xf]
    %v3482 = vld [vmem:[#allocation16 + $0x184] sm:$0xf]
    %v3483 = vld [vmem:[#allocation16 + $0x188] sm:$0xf]
    %v3484 = vld [vmem:[#allocation16 + $0x18c] sm:$0xf]
    %v3485 = vld [vmem:[#allocation16 + $0x190] sm:$0xf]
    %v3486 = vld [vmem:[#allocation16 + $0x194] sm:$0xf]
    %v3487 = vld [vmem:[#allocation16 + $0x198] sm:$0xf]
    %v3488 = vld [vmem:[#allocation16 + $0x19c] sm:$0xf]
    %v3489 = vld [vmem:[#allocation16 + $0x1a0] sm:$0xf]
    %v3490 = vld [vmem:[#allocation16 + $0x1a4] sm:$0xf]
    %v3491 = vld [vmem:[#allocation16 + $0x1a8] sm:$0xf]
    %v3492 = vld [vmem:[#allocation16 + $0x1ac] sm:$0xf]
    %v3493 = vld [vmem:[#allocation16 + $0x1b0] sm:$0xf]
    %v3494 = vld [vmem:[#allocation16 + $0x1b4] sm:$0xf]
    %v3495 = vld [vmem:[#allocation16 + $0x1b8] sm:$0xf]
    %v3496 = vld [vmem:[#allocation16 + $0x1bc] sm:$0xf]
    %v3497 = vld [vmem:[#allocation16 + $0x1c0] sm:$0xf]
    %v3498 = vld [vmem:[#allocation16 + $0x1c4] sm:$0xf]
    %v3499 = vld [vmem:[#allocation16 + $0x1c8] sm:$0xf]
    %v3500 = vld [vmem:[#allocation16 + $0x1cc] sm:$0xf]
    %v3501 = vld [vmem:[#allocation16 + $0x1d0] sm:$0xf]
    %v3502 = vld [vmem:[#allocation16 + $0x1d4] sm:$0xf]
    %v3503 = vld [vmem:[#allocation16 + $0x1d8] sm:$0xf]
    %v3504 = vld [vmem:[#allocation16 + $0x1dc] sm:$0xf]
    %v3505 = vld [vmem:[#allocation16 + $0x1e0] sm:$0xf]
    %v3506 = vld [vmem:[#allocation16 + $0x1e4] sm:$0xf]
    %v3507 = vld [vmem:[#allocation16 + $0x1e8] sm:$0xf]
    %v3508 = vld [vmem:[#allocation16 + $0x1ec] sm:$0xf]
    %v3509 = vld [vmem:[#allocation16 + $0x1f0] sm:$0xf]
    %v3510 = vld [vmem:[#allocation16 + $0x1f4] sm:$0xf]
    %v3511 = vld [vmem:[#allocation16 + $0x1f8] sm:$0xf]
    %v3512 = vld [vmem:[#allocation16 + $0x1fc] sm:$0xf]
    %v3513 = vpack.c.bf16 %v3377, %v3377
    %v3514 = vpack.c.bf16 %v3378, %v3378
    %v3515 = vpack.c.bf16 %v3379, %v3379
    %v3516 = vpack.c.bf16 %v3380, %v3380
    %v3517 = vpack.c.bf16 %v3381, %v3381
    %v3518 = vpack.c.bf16 %v3382, %v3382
    %v3519 = vpack.c.bf16 %v3383, %v3383
    %v3520 = vpack.c.bf16 %v3384, %v3384
    %v3521 = vld [vmem:[#allocation17] sm:$0x1]
    %v3523 = vlaneseq
    %v3524 = vshrl.u32 %v3523, 7
    %v3525 = vsub.s32 0, %v3524
    %v3526 = vrot.slane %v3521, %v3525
    %v3656 = vunpack.c.l.b16 %v3385
    %v3657 = vunpack.c.l.b16 %v3386
    %v3658 = vunpack.c.l.b16 %v3387
    %v3659 = vunpack.c.l.b16 %v3388
    %v3660 = vunpack.c.l.b16 %v3389
    %v3661 = vunpack.c.l.b16 %v3390
    %v3662 = vunpack.c.l.b16 %v3391
    %v3663 = vunpack.c.l.b16 %v3392
    %v3664 = vunpack.c.l.b16 %v3393
    %v3665 = vunpack.c.l.b16 %v3394
    %v3666 = vunpack.c.l.b16 %v3395
    %v3667 = vunpack.c.l.b16 %v3396
    %v3668 = vunpack.c.l.b16 %v3397
    %v3669 = vunpack.c.l.b16 %v3398
    %v3670 = vunpack.c.l.b16 %v3399
    %v3671 = vunpack.c.l.b16 %v3400
    %v3672 = vunpack.c.l.b16 %v3401
    %v3673 = vunpack.c.l.b16 %v3402
    %v3674 = vunpack.c.l.b16 %v3403
    %v3675 = vunpack.c.l.b16 %v3404
    %v3676 = vunpack.c.l.b16 %v3405
    %v3677 = vunpack.c.l.b16 %v3406
    %v3678 = vunpack.c.l.b16 %v3407
    %v3679 = vunpack.c.l.b16 %v3408
    %v3680 = vunpack.c.l.b16 %v3409
    %v3681 = vunpack.c.l.b16 %v3410
    %v3682 = vunpack.c.l.b16 %v3411
    %v3683 = vunpack.c.l.b16 %v3412
    %v3684 = vunpack.c.l.b16 %v3413
    %v3685 = vunpack.c.l.b16 %v3414
    %v3686 = vunpack.c.l.b16 %v3415
    %v3687 = vunpack.c.l.b16 %v3416
    %v3688 = vunpack.c.l.b16 %v3417
    %v3689 = vunpack.c.l.b16 %v3418
    %v3690 = vunpack.c.l.b16 %v3419
    %v3691 = vunpack.c.l.b16 %v3420
    %v3692 = vunpack.c.l.b16 %v3421
    %v3693 = vunpack.c.l.b16 %v3422
    %v3694 = vunpack.c.l.b16 %v3423
    %v3695 = vunpack.c.l.b16 %v3424
    %v3696 = vunpack.c.l.b16 %v3425
    %v3697 = vunpack.c.l.b16 %v3426
    %v3698 = vunpack.c.l.b16 %v3427
    %v3699 = vunpack.c.l.b16 %v3428
    %v3700 = vunpack.c.l.b16 %v3429
    %v3701 = vunpack.c.l.b16 %v3430
    %v3702 = vunpack.c.l.b16 %v3431
    %v3703 = vunpack.c.l.b16 %v3432
    %v3704 = vunpack.c.l.b16 %v3433
    %v3705 = vunpack.c.l.b16 %v3434
    %v3706 = vunpack.c.l.b16 %v3435
    %v3707 = vunpack.c.l.b16 %v3436
    %v3708 = vunpack.c.l.b16 %v3437
    %v3709 = vunpack.c.l.b16 %v3438
    %v3710 = vunpack.c.l.b16 %v3439
    %v3711 = vunpack.c.l.b16 %v3440
    %v3712 = vunpack.c.l.b16 %v3441
    %v3713 = vunpack.c.l.b16 %v3442
    %v3714 = vunpack.c.l.b16 %v3443
    %v3715 = vunpack.c.l.b16 %v3444
    %v3716 = vunpack.c.l.b16 %v3445
    %v3717 = vunpack.c.l.b16 %v3446
    %v3718 = vunpack.c.l.b16 %v3447
    %v3719 = vunpack.c.l.b16 %v3448
    %v3720 = vunpack.c.l.b16 %v3449
    %v3721 = vunpack.c.l.b16 %v3450
    %v3722 = vunpack.c.l.b16 %v3451
    %v3723 = vunpack.c.l.b16 %v3452
    %v3724 = vunpack.c.l.b16 %v3453
    %v3725 = vunpack.c.l.b16 %v3454
    %v3726 = vunpack.c.l.b16 %v3455
    %v3727 = vunpack.c.l.b16 %v3456
    %v3728 = vunpack.c.l.b16 %v3457
    %v3729 = vunpack.c.l.b16 %v3458
    %v3730 = vunpack.c.l.b16 %v3459
    %v3731 = vunpack.c.l.b16 %v3460
    %v3732 = vunpack.c.l.b16 %v3461
    %v3733 = vunpack.c.l.b16 %v3462
    %v3734 = vunpack.c.l.b16 %v3463
    %v3735 = vunpack.c.l.b16 %v3464
    %v3736 = vunpack.c.l.b16 %v3465
    %v3737 = vunpack.c.l.b16 %v3466
    %v3738 = vunpack.c.l.b16 %v3467
    %v3739 = vunpack.c.l.b16 %v3468
    %v3740 = vunpack.c.l.b16 %v3469
    %v3741 = vunpack.c.l.b16 %v3470
    %v3742 = vunpack.c.l.b16 %v3471
    %v3743 = vunpack.c.l.b16 %v3472
    %v3744 = vunpack.c.l.b16 %v3473
    %v3745 = vunpack.c.l.b16 %v3474
    %v3746 = vunpack.c.l.b16 %v3475
    %v3747 = vunpack.c.l.b16 %v3476
    %v3748 = vunpack.c.l.b16 %v3477
    %v3749 = vunpack.c.l.b16 %v3478
    %v3750 = vunpack.c.l.b16 %v3479
    %v3751 = vunpack.c.l.b16 %v3480
    %v3752 = vunpack.c.l.b16 %v3481
    %v3753 = vunpack.c.l.b16 %v3482
    %v3754 = vunpack.c.l.b16 %v3483
    %v3755 = vunpack.c.l.b16 %v3484
    %v3756 = vunpack.c.l.b16 %v3485
    %v3757 = vunpack.c.l.b16 %v3486
    %v3758 = vunpack.c.l.b16 %v3487
    %v3759 = vunpack.c.l.b16 %v3488
    %v3760 = vunpack.c.l.b16 %v3489
    %v3761 = vunpack.c.l.b16 %v3490
    %v3762 = vunpack.c.l.b16 %v3491
    %v3763 = vunpack.c.l.b16 %v3492
    %v3764 = vunpack.c.l.b16 %v3493
    %v3765 = vunpack.c.l.b16 %v3494
    %v3766 = vunpack.c.l.b16 %v3495
    %v3767 = vunpack.c.l.b16 %v3496
    %v3768 = vunpack.c.l.b16 %v3497
    %v3769 = vunpack.c.l.b16 %v3498
    %v3770 = vunpack.c.l.b16 %v3499
    %v3771 = vunpack.c.l.b16 %v3500
    %v3772 = vunpack.c.l.b16 %v3501
    %v3773 = vunpack.c.l.b16 %v3502
    %v3774 = vunpack.c.l.b16 %v3503
    %v3775 = vunpack.c.l.b16 %v3504
    %v3776 = vunpack.c.l.b16 %v3505
    %v3777 = vunpack.c.l.b16 %v3506
    %v3778 = vunpack.c.l.b16 %v3507
    %v3779 = vunpack.c.l.b16 %v3508
    %v3780 = vunpack.c.l.b16 %v3509
    %v3781 = vunpack.c.l.b16 %v3510
    %v3782 = vunpack.c.l.b16 %v3511
    %v3783 = vunpack.c.l.b16 %v3512
    %v3784 = vpack.c.b16 %v3657, %v3656
    %v3785 = vpack.c.b16 %v3659, %v3658
    %v3786 = vpack.c.b16 %v3661, %v3660
    %v3787 = vpack.c.b16 %v3663, %v3662
    %v3788 = vpack.c.b16 %v3665, %v3664
    %v3789 = vpack.c.b16 %v3667, %v3666
    %v3790 = vpack.c.b16 %v3669, %v3668
    %v3791 = vpack.c.b16 %v3671, %v3670
    %v3792 = vpack.c.b16 %v3673, %v3672
    %v3793 = vpack.c.b16 %v3675, %v3674
    %v3794 = vpack.c.b16 %v3677, %v3676
    %v3795 = vpack.c.b16 %v3679, %v3678
    %v3796 = vpack.c.b16 %v3681, %v3680
    %v3797 = vpack.c.b16 %v3683, %v3682
    %v3798 = vpack.c.b16 %v3685, %v3684
    %v3799 = vpack.c.b16 %v3687, %v3686
    %v3800 = vpack.c.b16 %v3689, %v3688
    %v3801 = vpack.c.b16 %v3691, %v3690
    %v3802 = vpack.c.b16 %v3693, %v3692
    %v3803 = vpack.c.b16 %v3695, %v3694
    %v3804 = vpack.c.b16 %v3697, %v3696
    %v3805 = vpack.c.b16 %v3699, %v3698
    %v3806 = vpack.c.b16 %v3701, %v3700
    %v3807 = vpack.c.b16 %v3703, %v3702
    %v3808 = vpack.c.b16 %v3705, %v3704
    %v3809 = vpack.c.b16 %v3707, %v3706
    %v3810 = vpack.c.b16 %v3709, %v3708
    %v3811 = vpack.c.b16 %v3711, %v3710
    %v3812 = vpack.c.b16 %v3713, %v3712
    %v3813 = vpack.c.b16 %v3715, %v3714
    %v3814 = vpack.c.b16 %v3717, %v3716
    %v3815 = vpack.c.b16 %v3719, %v3718
    %v3816 = vpack.c.b16 %v3721, %v3720
    %v3817 = vpack.c.b16 %v3723, %v3722
    %v3818 = vpack.c.b16 %v3725, %v3724
    %v3819 = vpack.c.b16 %v3727, %v3726
    %v3820 = vpack.c.b16 %v3729, %v3728
    %v3821 = vpack.c.b16 %v3731, %v3730
    %v3822 = vpack.c.b16 %v3733, %v3732
    %v3823 = vpack.c.b16 %v3735, %v3734
    %v3824 = vpack.c.b16 %v3737, %v3736
    %v3825 = vpack.c.b16 %v3739, %v3738
    %v3826 = vpack.c.b16 %v3741, %v3740
    %v3827 = vpack.c.b16 %v3743, %v3742
    %v3828 = vpack.c.b16 %v3745, %v3744
    %v3829 = vpack.c.b16 %v3747, %v3746
    %v3830 = vpack.c.b16 %v3749, %v3748
    %v3831 = vpack.c.b16 %v3751, %v3750
    %v3832 = vpack.c.b16 %v3753, %v3752
    %v3833 = vpack.c.b16 %v3755, %v3754
    %v3834 = vpack.c.b16 %v3757, %v3756
    %v3835 = vpack.c.b16 %v3759, %v3758
    %v3836 = vpack.c.b16 %v3761, %v3760
    %v3837 = vpack.c.b16 %v3763, %v3762
    %v3838 = vpack.c.b16 %v3765, %v3764
    %v3839 = vpack.c.b16 %v3767, %v3766
    %v3840 = vpack.c.b16 %v3769, %v3768
    %v3841 = vpack.c.b16 %v3771, %v3770
    %v3842 = vpack.c.b16 %v3773, %v3772
    %v3843 = vpack.c.b16 %v3775, %v3774
    %v3844 = vpack.c.b16 %v3777, %v3776
    %v3845 = vpack.c.b16 %v3779, %v3778
    %v3846 = vpack.c.b16 %v3781, %v3780
    %v3847 = vpack.c.b16 %v3783, %v3782
    %3912 = vmatprep.subr.bf16.mxu0 0
    %3913 = vmatpush1.bf16.msra.mxu0 %v3784
    %3914 = vmatprep.subr.bf16.mxu0 0
    %3915 = vmatpush1.bf16.msra.mxu0 %v3785
    %3916 = vmatprep.subr.bf16.mxu0 0
    %3917 = vmatpush1.bf16.msra.mxu0 %v3786
    %3918 = vmatprep.subr.bf16.mxu0 0
    %3919 = vmatpush1.bf16.msra.mxu0 %v3787
    %3920 = vmatprep.subr.bf16.mxu0 0
    %3921 = vmatpush1.bf16.msra.mxu0 %v3788
    %3922 = vmatprep.subr.bf16.mxu0 0
    %3923 = vmatpush1.bf16.msra.mxu0 %v3789
    %3924 = vmatprep.subr.bf16.mxu0 0
    %3925 = vmatpush1.bf16.msra.mxu0 %v3790
    %3926 = vmatprep.subr.bf16.mxu0 0
    %3927 = vmatpush1.bf16.msra.mxu0 %v3791
    %3928 = vmatprep.subr.bf16.mxu0 0
    %3929 = vmatpush1.bf16.msra.mxu0 %v3792
    %3930 = vmatprep.subr.bf16.mxu0 0
    %3931 = vmatpush1.bf16.msra.mxu0 %v3793
    %3932 = vmatprep.subr.bf16.mxu0 0
    %3933 = vmatpush1.bf16.msra.mxu0 %v3794
    %3934 = vmatprep.subr.bf16.mxu0 0
    %3935 = vmatpush1.bf16.msra.mxu0 %v3795
    %3936 = vmatprep.subr.bf16.mxu0 0
    %3937 = vmatpush1.bf16.msra.mxu0 %v3796
    %3938 = vmatprep.subr.bf16.mxu0 0
    %3939 = vmatpush1.bf16.msra.mxu0 %v3797
    %3940 = vmatprep.subr.bf16.mxu0 0
    %3941 = vmatpush1.bf16.msra.mxu0 %v3798
    %3942 = vmatprep.subr.bf16.mxu0 0
    %3943 = vmatpush1.bf16.msra.mxu0 %v3799
    %3944 = vmatprep.mubr.bf16.mxu0 %v3514
    %3945 = vmatmul.mubr.bf16.gmra.mrb[0].mxu0 %v3513
    %v3946 = vpop.f32.mrb[0].mxu0
    %v3947 = vadd.f32 %v3526, %v3946
    %v3948 = vpop.f32.mrb[0].mxu0
    %v3949 = vpop.f32.mrb[0].mxu0
    %v3950 = vpop.f32.mrb[0].mxu0
    %3951 = vdwg.mxu0
    %3952 = vmatprep.subr.bf16.mxu0 0
    %3953 = vmatpush1.bf16.msra.mxu0 %v3800
    %3954 = vmatprep.subr.bf16.mxu0 0
    %3955 = vmatpush1.bf16.msra.mxu0 %v3801
    %3956 = vmatprep.subr.bf16.mxu0 0
    %3957 = vmatpush1.bf16.msra.mxu0 %v3802
    %3958 = vmatprep.subr.bf16.mxu0 0
    %3959 = vmatpush1.bf16.msra.mxu0 %v3803
    %3960 = vmatprep.subr.bf16.mxu0 0
    %3961 = vmatpush1.bf16.msra.mxu0 %v3804
    %3962 = vmatprep.subr.bf16.mxu0 0
    %3963 = vmatpush1.bf16.msra.mxu0 %v3805
    %3964 = vmatprep.subr.bf16.mxu0 0
    %3965 = vmatpush1.bf16.msra.mxu0 %v3806
    %3966 = vmatprep.subr.bf16.mxu0 0
    %3967 = vmatpush1.bf16.msra.mxu0 %v3807
    %3968 = vmatprep.subr.bf16.mxu0 0
    %3969 = vmatpush1.bf16.msra.mxu0 %v3808
    %3970 = vmatprep.subr.bf16.mxu0 0
    %3971 = vmatpush1.bf16.msra.mxu0 %v3809
    %3972 = vmatprep.subr.bf16.mxu0 0
    %3973 = vmatpush1.bf16.msra.mxu0 %v3810
    %3974 = vmatprep.subr.bf16.mxu0 0
    %3975 = vmatpush1.bf16.msra.mxu0 %v3811
    %3976 = vmatprep.subr.bf16.mxu0 0
    %3977 = vmatpush1.bf16.msra.mxu0 %v3812
    %3978 = vmatprep.subr.bf16.mxu0 0
    %3979 = vmatpush1.bf16.msra.mxu0 %v3813
    %3980 = vmatprep.subr.bf16.mxu0 0
    %3981 = vmatpush1.bf16.msra.mxu0 %v3814
    %3982 = vmatprep.subr.bf16.mxu0 0
    %3983 = vmatpush1.bf16.msra.mxu0 %v3815
    %3984 = vmatprep.mubr.bf16.mxu0 %v3516
    %3985 = vmatmul.mubr.bf16.gmra.mrb[0].mxu0 %v3515
    %v3986 = vpop.f32.mrb[0].mxu0
    %v3987 = vadd.f32 %v3947, %v3986
    %v3988 = vpop.f32.mrb[0].mxu0
    %v3989 = vpop.f32.mrb[0].mxu0
    %v3990 = vpop.f32.mrb[0].mxu0
    %3991 = vdwg.mxu0
    %3992 = vmatprep.subr.bf16.mxu0 0
    %3993 = vmatpush1.bf16.msra.mxu0 %v3816
    %3994 = vmatprep.subr.bf16.mxu0 0
    %3995 = vmatpush1.bf16.msra.mxu0 %v3817
    %3996 = vmatprep.subr.bf16.mxu0 0
    %3997 = vmatpush1.bf16.msra.mxu0 %v3818
    %3998 = vmatprep.subr.bf16.mxu0 0
    %3999 = vmatpush1.bf16.msra.mxu0 %v3819
    %4000 = vmatprep.subr.bf16.mxu0 0
    %4001 = vmatpush1.bf16.msra.mxu0 %v3820
    %4002 = vmatprep.subr.bf16.mxu0 0
    %4003 = vmatpush1.bf16.msra.mxu0 %v3821
    %4004 = vmatprep.subr.bf16.mxu0 0
    %4005 = vmatpush1.bf16.msra.mxu0 %v3822
    %4006 = vmatprep.subr.bf16.mxu0 0
    %4007 = vmatpush1.bf16.msra.mxu0 %v3823
    %4008 = vmatprep.subr.bf16.mxu0 0
    %4009 = vmatpush1.bf16.msra.mxu0 %v3824
    %4010 = vmatprep.subr.bf16.mxu0 0
    %4011 = vmatpush1.bf16.msra.mxu0 %v3825
    %4012 = vmatprep.subr.bf16.mxu0 0
    %4013 = vmatpush1.bf16.msra.mxu0 %v3826
    %4014 = vmatprep.subr.bf16.mxu0 0
    %4015 = vmatpush1.bf16.msra.mxu0 %v3827
    %4016 = vmatprep.subr.bf16.mxu0 0
    %4017 = vmatpush1.bf16.msra.mxu0 %v3828
    %4018 = vmatprep.subr.bf16.mxu0 0
    %4019 = vmatpush1.bf16.msra.mxu0 %v3829
    %4020 = vmatprep.subr.bf16.mxu0 0
    %4021 = vmatpush1.bf16.msra.mxu0 %v3830
    %4022 = vmatprep.subr.bf16.mxu0 0
    %4023 = vmatpush1.bf16.msra.mxu0 %v3831
    %4024 = vmatprep.mubr.bf16.mxu0 %v3518
    %4025 = vmatmul.mubr.bf16.gmra.mrb[0].mxu0 %v3517
    %v4026 = vpop.f32.mrb[0].mxu0
    %v4027 = vadd.f32 %v3987, %v4026
    %v4028 = vpop.f32.mrb[0].mxu0
    %v4029 = vpop.f32.mrb[0].mxu0
    %v4030 = vpop.f32.mrb[0].mxu0
    %4031 = vdwg.mxu0
    %4032 = vmatprep.subr.bf16.mxu0 0
    %4033 = vmatpush1.bf16.msra.mxu0 %v3832
    %4034 = vmatprep.subr.bf16.mxu0 0
    %4035 = vmatpush1.bf16.msra.mxu0 %v3833
    %4036 = vmatprep.subr.bf16.mxu0 0
    %4037 = vmatpush1.bf16.msra.mxu0 %v3834
    %4038 = vmatprep.subr.bf16.mxu0 0
    %4039 = vmatpush1.bf16.msra.mxu0 %v3835
    %4040 = vmatprep.subr.bf16.mxu0 0
    %4041 = vmatpush1.bf16.msra.mxu0 %v3836
    %4042 = vmatprep.subr.bf16.mxu0 0
    %4043 = vmatpush1.bf16.msra.mxu0 %v3837
    %4044 = vmatprep.subr.bf16.mxu0 0
    %4045 = vmatpush1.bf16.msra.mxu0 %v3838
    %4046 = vmatprep.subr.bf16.mxu0 0
    %4047 = vmatpush1.bf16.msra.mxu0 %v3839
    %4048 = vmatprep.subr.bf16.mxu0 0
    %4049 = vmatpush1.bf16.msra.mxu0 %v3840
    %4050 = vmatprep.subr.bf16.mxu0 0
    %4051 = vmatpush1.bf16.msra.mxu0 %v3841
    %4052 = vmatprep.subr.bf16.mxu0 0
    %4053 = vmatpush1.bf16.msra.mxu0 %v3842
    %4054 = vmatprep.subr.bf16.mxu0 0
    %4055 = vmatpush1.bf16.msra.mxu0 %v3843
    %4056 = vmatprep.subr.bf16.mxu0 0
    %4057 = vmatpush1.bf16.msra.mxu0 %v3844
    %4058 = vmatprep.subr.bf16.mxu0 0
    %4059 = vmatpush1.bf16.msra.mxu0 %v3845
    %4060 = vmatprep.subr.bf16.mxu0 0
    %4061 = vmatpush1.bf16.msra.mxu0 %v3846
    %4062 = vmatprep.subr.bf16.mxu0 0
    %4063 = vmatpush1.bf16.msra.mxu0 %v3847
    %4064 = vmatprep.mubr.bf16.mxu0 %v3520
    %4065 = vmatmul.mubr.bf16.gmra.mrb[0].mxu0 %v3519
    %v4066 = vpop.f32.mrb[0].mxu0
    %v4067 = vadd.f32 %v4027, %v4066
    %v4068 = vpop.f32.mrb[0].mxu0
    %v4069 = vpop.f32.mrb[0].mxu0
    %v4070 = vpop.f32.mrb[0].mxu0
    %4071 = vdwg.mxu0
    %v4072 = vld [vmem:[#allocation19] sm:$0xff]
    %v4073 = vld [vmem:[#allocation19 + $0x8] sm:$0xff]
    %v4074 = vld [vmem:[#allocation19 + $0x10] sm:$0xff]
    %v4075 = vld [vmem:[#allocation19 + $0x18] sm:$0xff]
    %v4076 = vld [vmem:[#allocation19 + $0x20] sm:$0xff]
    %v4077 = vld [vmem:[#allocation19 + $0x28] sm:$0xff]
    %v4078 = vld [vmem:[#allocation19 + $0x30] sm:$0xff]
    %v4079 = vld [vmem:[#allocation19 + $0x38] sm:$0xff]
    %v4080 = vld [vmem:[#allocation19 + $0x40] sm:$0xff]
    %v4081 = vld [vmem:[#allocation19 + $0x48] sm:$0xff]
    %v4082 = vld [vmem:[#allocation19 + $0x50] sm:$0xff]
    %v4083 = vld [vmem:[#allocation19 + $0x58] sm:$0xff]
    %v4084 = vld [vmem:[#allocation19 + $0x60] sm:$0xff]
    %v4085 = vld [vmem:[#allocation19 + $0x68] sm:$0xff]
    %v4086 = vld [vmem:[#allocation19 + $0x70] sm:$0xff]
    %v4087 = vld [vmem:[#allocation19 + $0x78] sm:$0xff]
    %v4088 = vld [vmem:[#allocation19 + $0x80] sm:$0xff]
    %v4089 = vld [vmem:[#allocation19 + $0x88] sm:$0xff]
    %v4090 = vld [vmem:[#allocation19 + $0x90] sm:$0xff]
    %v4091 = vld [vmem:[#allocation19 + $0x98] sm:$0xff]
    %v4092 = vld [vmem:[#allocation19 + $0xa0] sm:$0xff]
    %v4093 = vld [vmem:[#allocation19 + $0xa8] sm:$0xff]
    %v4094 = vld [vmem:[#allocation19 + $0xb0] sm:$0xff]
    %v4095 = vld [vmem:[#allocation19 + $0xb8] sm:$0xff]
    %v4096 = vld [vmem:[#allocation19 + $0xc0] sm:$0xff]
    %v4097 = vld [vmem:[#allocation19 + $0xc8] sm:$0xff]
    %v4098 = vld [vmem:[#allocation19 + $0xd0] sm:$0xff]
    %v4099 = vld [vmem:[#allocation19 + $0xd8] sm:$0xff]
    %v4100 = vld [vmem:[#allocation19 + $0xe0] sm:$0xff]
    %v4101 = vld [vmem:[#allocation19 + $0xe8] sm:$0xff]
    %v4102 = vld [vmem:[#allocation19 + $0xf0] sm:$0xff]
    %v4103 = vld [vmem:[#allocation19 + $0xf8] sm:$0xff]
    %v4104 = vpack.c.bf16 %v4067, %v4067
    %v4105 = vld [vmem:[#allocation20] sm:$0xf]
    %v4107 = vlaneseq
    %v4108 = vshrl.u32 %v4107, 7
    %v4109 = vsub.s32 0, %v4108
    %v4110 = vrot.slane %v4105, %v4109
    %v4111 = vlaneseq
    %v4112 = vshrl.u32 %v4111, 7
    %v4113 = vsub.s32 1, %v4112
    %v4114 = vrot.slane %v4105, %v4113
    %v4115 = vlaneseq
    %v4116 = vshrl.u32 %v4115, 7
    %v4117 = vsub.s32 2, %v4116
    %v4118 = vrot.slane %v4105, %v4117
    %v4119 = vlaneseq
    %v4120 = vshrl.u32 %v4119, 7
    %v4121 = vsub.s32 3, %v4120
    %v4122 = vrot.slane %v4105, %v4121
    %v4159 = vunpack.c.l.b16 %v4072
    %v4160 = vunpack.c.h.b16 %v4072
    %v4161 = vunpack.c.l.b16 %v4073
    %v4162 = vunpack.c.h.b16 %v4073
    %v4163 = vunpack.c.l.b16 %v4074
    %v4164 = vunpack.c.h.b16 %v4074
    %v4165 = vunpack.c.l.b16 %v4075
    %v4166 = vunpack.c.h.b16 %v4075
    %v4167 = vunpack.c.l.b16 %v4076
    %v4168 = vunpack.c.h.b16 %v4076
    %v4169 = vunpack.c.l.b16 %v4077
    %v4170 = vunpack.c.h.b16 %v4077
    %v4171 = vunpack.c.l.b16 %v4078
    %v4172 = vunpack.c.h.b16 %v4078
    %v4173 = vunpack.c.l.b16 %v4079
    %v4174 = vunpack.c.h.b16 %v4079
    %v4175 = vunpack.c.l.b16 %v4080
    %v4176 = vunpack.c.h.b16 %v4080
    %v4177 = vunpack.c.l.b16 %v4081
    %v4178 = vunpack.c.h.b16 %v4081
    %v4179 = vunpack.c.l.b16 %v4082
    %v4180 = vunpack.c.h.b16 %v4082
    %v4181 = vunpack.c.l.b16 %v4083
    %v4182 = vunpack.c.h.b16 %v4083
    %v4183 = vunpack.c.l.b16 %v4084
    %v4184 = vunpack.c.h.b16 %v4084
    %v4185 = vunpack.c.l.b16 %v4085
    %v4186 = vunpack.c.h.b16 %v4085
    %v4187 = vunpack.c.l.b16 %v4086
    %v4188 = vunpack.c.h.b16 %v4086
    %v4189 = vunpack.c.l.b16 %v4087
    %v4190 = vunpack.c.h.b16 %v4087
    %v4191 = vunpack.c.l.b16 %v4088
    %v4192 = vunpack.c.h.b16 %v4088
    %v4193 = vunpack.c.l.b16 %v4089
    %v4194 = vunpack.c.h.b16 %v4089
    %v4195 = vunpack.c.l.b16 %v4090
    %v4196 = vunpack.c.h.b16 %v4090
    %v4197 = vunpack.c.l.b16 %v4091
    %v4198 = vunpack.c.h.b16 %v4091
    %v4199 = vunpack.c.l.b16 %v4092
    %v4200 = vunpack.c.h.b16 %v4092
    %v4201 = vunpack.c.l.b16 %v4093
    %v4202 = vunpack.c.h.b16 %v4093
    %v4203 = vunpack.c.l.b16 %v4094
    %v4204 = vunpack.c.h.b16 %v4094
    %v4205 = vunpack.c.l.b16 %v4095
    %v4206 = vunpack.c.h.b16 %v4095
    %v4207 = vunpack.c.l.b16 %v4096
    %v4208 = vunpack.c.h.b16 %v4096
    %v4209 = vunpack.c.l.b16 %v4097
    %v4210 = vunpack.c.h.b16 %v4097
    %v4211 = vunpack.c.l.b16 %v4098
    %v4212 = vunpack.c.h.b16 %v4098
    %v4213 = vunpack.c.l.b16 %v4099
    %v4214 = vunpack.c.h.b16 %v4099
    %v4215 = vunpack.c.l.b16 %v4100
    %v4216 = vunpack.c.h.b16 %v4100
    %v4217 = vunpack.c.l.b16 %v4101
    %v4218 = vunpack.c.h.b16 %v4101
    %v4219 = vunpack.c.l.b16 %v4102
    %v4220 = vunpack.c.h.b16 %v4102
    %v4221 = vunpack.c.l.b16 %v4103
    %v4222 = vunpack.c.h.b16 %v4103
    %v4223 = vpack.c.b16 %v4163, %v4159
    %v4224 = vpack.c.b16 %v4164, %v4160
    %v4225 = vpack.c.b16 %v4165, %v4161
    %v4226 = vpack.c.b16 %v4166, %v4162
    %v4227 = vpack.c.b16 %v4171, %v4167
    %v4228 = vpack.c.b16 %v4172, %v4168
    %v4229 = vpack.c.b16 %v4173, %v4169
    %v4230 = vpack.c.b16 %v4174, %v4170
    %v4231 = vpack.c.b16 %v4179, %v4175
    %v4232 = vpack.c.b16 %v4180, %v4176
    %v4233 = vpack.c.b16 %v4181, %v4177
    %v4234 = vpack.c.b16 %v4182, %v4178
    %v4235 = vpack.c.b16 %v4187, %v4183
    %v4236 = vpack.c.b16 %v4188, %v4184
    %v4237 = vpack.c.b16 %v4189, %v4185
    %v4238 = vpack.c.b16 %v4190, %v4186
    %v4239 = vpack.c.b16 %v4195, %v4191
    %v4240 = vpack.c.b16 %v4196, %v4192
    %v4241 = vpack.c.b16 %v4197, %v4193
    %v4242 = vpack.c.b16 %v4198, %v4194
    %v4243 = vpack.c.b16 %v4203, %v4199
    %v4244 = vpack.c.b16 %v4204, %v4200
    %v4245 = vpack.c.b16 %v4205, %v4201
    %v4246 = vpack.c.b16 %v4206, %v4202
    %v4247 = vpack.c.b16 %v4211, %v4207
    %v4248 = vpack.c.b16 %v4212, %v4208
    %v4249 = vpack.c.b16 %v4213, %v4209
    %v4250 = vpack.c.b16 %v4214, %v4210
    %v4251 = vpack.c.b16 %v4219, %v4215
    %v4252 = vpack.c.b16 %v4220, %v4216
    %v4253 = vpack.c.b16 %v4221, %v4217
    %v4254 = vpack.c.b16 %v4222, %v4218
    %4287 = vmatprep.subr.bf16.mxu0 %v4224
    %4288 = vmatpush1.bf16.msra.mxu0 %v4223
    %4289 = vmatprep.subr.bf16.mxu0 %v4228
    %4290 = vmatpush1.bf16.msra.mxu0 %v4227
    %4291 = vmatprep.subr.bf16.mxu0 %v4232
    %4292 = vmatpush1.bf16.msra.mxu0 %v4231
    %4293 = vmatprep.subr.bf16.mxu0 %v4236
    %4294 = vmatpush1.bf16.msra.mxu0 %v4235
    %4295 = vmatprep.subr.bf16.mxu0 %v4240
    %4296 = vmatpush1.bf16.msra.mxu0 %v4239
    %4297 = vmatprep.subr.bf16.mxu0 %v4244
    %4298 = vmatpush1.bf16.msra.mxu0 %v4243
    %4299 = vmatprep.subr.bf16.mxu0 %v4248
    %4300 = vmatpush1.bf16.msra.mxu0 %v4247
    %4301 = vmatprep.subr.bf16.mxu0 %v4252
    %4302 = vmatpush1.bf16.msra.mxu0 %v4251
    %4303 = vmatprep.subr.bf16.mxu0 0
    %4304 = vmatpush1.bf16.msra.mxu0 0
    %4305 = vmatprep.subr.bf16.mxu0 0
    %4306 = vmatpush1.bf16.msra.mxu0 0
    %4307 = vmatprep.subr.bf16.mxu0 0
    %4308 = vmatpush1.bf16.msra.mxu0 0
    %4309 = vmatprep.subr.bf16.mxu0 0
    %4310 = vmatpush1.bf16.msra.mxu0 0
    %4311 = vmatprep.subr.bf16.mxu0 0
    %4312 = vmatpush1.bf16.msra.mxu0 0
    %4313 = vmatprep.subr.bf16.mxu0 0
    %4314 = vmatpush1.bf16.msra.mxu0 0
    %4315 = vmatprep.subr.bf16.mxu0 0
    %4316 = vmatpush1.bf16.msra.mxu0 0
    %4317 = vmatprep.subr.bf16.mxu0 0
    %4318 = vmatpush1.bf16.msra.mxu0 0
    %4319 = vmatprep.mubr.bf16.mxu0 0
    %4320 = vmatmul.mubr.bf16.gmra.mrb[0].mxu0 %v4104
    %v4321 = vpop.f32.mrb[0].mxu0
    %v4322 = vadd.f32 %v4110, %v4321
    %v4323 = vpop.f32.mrb[0].mxu0
    %v4324 = vadd.f32 %v4114, %v4323
    %v4325 = vpop.f32.mrb[0].mxu0
    %v4326 = vpop.f32.mrb[0].mxu0
    %4327 = vdwg.mxu0
    %4328 = vmatprep.subr.bf16.mxu0 %v4226
    %4329 = vmatpush1.bf16.msra.mxu0 %v4225
    %4330 = vmatprep.subr.bf16.mxu0 %v4230
    %4331 = vmatpush1.bf16.msra.mxu0 %v4229
    %4332 = vmatprep.subr.bf16.mxu0 %v4234
    %4333 = vmatpush1.bf16.msra.mxu0 %v4233
    %4334 = vmatprep.subr.bf16.mxu0 %v4238
    %4335 = vmatpush1.bf16.msra.mxu0 %v4237
    %4336 = vmatprep.subr.bf16.mxu0 %v4242
    %4337 = vmatpush1.bf16.msra.mxu0 %v4241
    %4338 = vmatprep.subr.bf16.mxu0 %v4246
    %4339 = vmatpush1.bf16.msra.mxu0 %v4245
    %4340 = vmatprep.subr.bf16.mxu0 %v4250
    %4341 = vmatpush1.bf16.msra.mxu0 %v4249
    %4342 = vmatprep.subr.bf16.mxu0 %v4254
    %4343 = vmatpush1.bf16.msra.mxu0 %v4253
    %4344 = vmatprep.subr.bf16.mxu0 0
    %4345 = vmatpush1.bf16.msra.mxu0 0
    %4346 = vmatprep.subr.bf16.mxu0 0
    %4347 = vmatpush1.bf16.msra.mxu0 0
    %4348 = vmatprep.subr.bf16.mxu0 0
    %4349 = vmatpush1.bf16.msra.mxu0 0
    %4350 = vmatprep.subr.bf16.mxu0 0
    %4351 = vmatpush1.bf16.msra.mxu0 0
    %4352 = vmatprep.subr.bf16.mxu0 0
    %4353 = vmatpush1.bf16.msra.mxu0 0
    %4354 = vmatprep.subr.bf16.mxu0 0
    %4355 = vmatpush1.bf16.msra.mxu0 0
    %4356 = vmatprep.subr.bf16.mxu0 0
    %4357 = vmatpush1.bf16.msra.mxu0 0
    %4358 = vmatprep.subr.bf16.mxu0 0
    %4359 = vmatpush1.bf16.msra.mxu0 0
    %4360 = vmatprep.mubr.bf16.mxu0 0
    %4361 = vmatmul.mubr.bf16.gmra.mrb[0].mxu0 %v4104
    %v4362 = vpop.f32.mrb[0].mxu0
    %v4363 = vadd.f32 %v4118, %v4362
    %v4364 = vpop.f32.mrb[0].mxu0
    %v4365 = vadd.f32 %v4122, %v4364
    %v4366 = vpop.f32.mrb[0].mxu0
    %v4367 = vpop.f32.mrb[0].mxu0
    %4368 = vdwg.mxu0
    %v4369 = vmul.f32 %v4322, 0.2
    %v4370 = vmul.f32 %v4324, 0.2
    %v4371 = vmul.f32 %v4363, 0.2
    %v4372 = vmul.f32 %v4365, 0.2
    %v4373 = vmax.f32 %v4322, %v4369
    %v4374 = vmax.f32 %v4324, %v4370
    %v4375 = vmax.f32 %v4363, %v4371
    %v4376 = vmax.f32 %v4365, %v4372
    %v4377 = vld [vmem:[#allocation22] sm:$0xff]
    %v4378 = vld [vmem:[#allocation22 + $0x8] sm:$0xff]
    %v4379 = vld [vmem:[#allocation22 + $0x10] sm:$0xff]
    %v4380 = vld [vmem:[#allocation22 + $0x18] sm:$0xff]
    %v4381 = vld [vmem:[#allocation22 + $0x20] sm:$0xff]
    %v4382 = vld [vmem:[#allocation22 + $0x28] sm:$0xff]
    %v4383 = vld [vmem:[#allocation22 + $0x30] sm:$0xff]
    %v4384 = vld [vmem:[#allocation22 + $0x38] sm:$0xff]
    %v4385 = vld [vmem:[#allocation22 + $0x40] sm:$0xff]
    %v4386 = vld [vmem:[#allocation22 + $0x48] sm:$0xff]
    %v4387 = vld [vmem:[#allocation22 + $0x50] sm:$0xff]
    %v4388 = vld [vmem:[#allocation22 + $0x58] sm:$0xff]
    %v4389 = vld [vmem:[#allocation22 + $0x60] sm:$0xff]
    %v4390 = vld [vmem:[#allocation22 + $0x68] sm:$0xff]
    %v4391 = vld [vmem:[#allocation22 + $0x70] sm:$0xff]
    %v4392 = vld [vmem:[#allocation22 + $0x78] sm:$0xff]
    %v4393 = vld [vmem:[#allocation22 + $0x80] sm:$0xff]
    %v4394 = vld [vmem:[#allocation22 + $0x88] sm:$0xff]
    %v4395 = vld [vmem:[#allocation22 + $0x90] sm:$0xff]
    %v4396 = vld [vmem:[#allocation22 + $0x98] sm:$0xff]
    %v4397 = vld [vmem:[#allocation22 + $0xa0] sm:$0xff]
    %v4398 = vld [vmem:[#allocation22 + $0xa8] sm:$0xff]
    %v4399 = vld [vmem:[#allocation22 + $0xb0] sm:$0xff]
    %v4400 = vld [vmem:[#allocation22 + $0xb8] sm:$0xff]
    %v4401 = vld [vmem:[#allocation22 + $0xc0] sm:$0xff]
    %v4402 = vld [vmem:[#allocation22 + $0xc8] sm:$0xff]
    %v4403 = vld [vmem:[#allocation22 + $0xd0] sm:$0xff]
    %v4404 = vld [vmem:[#allocation22 + $0xd8] sm:$0xff]
    %v4405 = vld [vmem:[#allocation22 + $0xe0] sm:$0xff]
    %v4406 = vld [vmem:[#allocation22 + $0xe8] sm:$0xff]
    %v4407 = vld [vmem:[#allocation22 + $0xf0] sm:$0xff]
    %v4408 = vld [vmem:[#allocation22 + $0xf8] sm:$0xff]
    %v4409 = vld [vmem:[#allocation22 + $0x100] sm:$0xff]
    %v4410 = vld [vmem:[#allocation22 + $0x108] sm:$0xff]
    %v4411 = vld [vmem:[#allocation22 + $0x110] sm:$0xff]
    %v4412 = vld [vmem:[#allocation22 + $0x118] sm:$0xff]
    %v4413 = vld [vmem:[#allocation22 + $0x120] sm:$0xff]
    %v4414 = vld [vmem:[#allocation22 + $0x128] sm:$0xff]
    %v4415 = vld [vmem:[#allocation22 + $0x130] sm:$0xff]
    %v4416 = vld [vmem:[#allocation22 + $0x138] sm:$0xff]
    %v4417 = vld [vmem:[#allocation22 + $0x140] sm:$0xff]
    %v4418 = vld [vmem:[#allocation22 + $0x148] sm:$0xff]
    %v4419 = vld [vmem:[#allocation22 + $0x150] sm:$0xff]
    %v4420 = vld [vmem:[#allocation22 + $0x158] sm:$0xff]
    %v4421 = vld [vmem:[#allocation22 + $0x160] sm:$0xff]
    %v4422 = vld [vmem:[#allocation22 + $0x168] sm:$0xff]
    %v4423 = vld [vmem:[#allocation22 + $0x170] sm:$0xff]
    %v4424 = vld [vmem:[#allocation22 + $0x178] sm:$0xff]
    %v4425 = vld [vmem:[#allocation22 + $0x180] sm:$0xff]
    %v4426 = vld [vmem:[#allocation22 + $0x188] sm:$0xff]
    %v4427 = vld [vmem:[#allocation22 + $0x190] sm:$0xff]
    %v4428 = vld [vmem:[#allocation22 + $0x198] sm:$0xff]
    %v4429 = vld [vmem:[#allocation22 + $0x1a0] sm:$0xff]
    %v4430 = vld [vmem:[#allocation22 + $0x1a8] sm:$0xff]
    %v4431 = vld [vmem:[#allocation22 + $0x1b0] sm:$0xff]
    %v4432 = vld [vmem:[#allocation22 + $0x1b8] sm:$0xff]
    %v4433 = vld [vmem:[#allocation22 + $0x1c0] sm:$0xff]
    %v4434 = vld [vmem:[#allocation22 + $0x1c8] sm:$0xff]
    %v4435 = vld [vmem:[#allocation22 + $0x1d0] sm:$0xff]
    %v4436 = vld [vmem:[#allocation22 + $0x1d8] sm:$0xff]
    %v4437 = vld [vmem:[#allocation22 + $0x1e0] sm:$0xff]
    %v4438 = vld [vmem:[#allocation22 + $0x1e8] sm:$0xff]
    %v4439 = vld [vmem:[#allocation22 + $0x1f0] sm:$0xff]
    %v4440 = vld [vmem:[#allocation22 + $0x1f8] sm:$0xff]
    %v4441 = vpack.c.bf16 %v4373, %v4373
    %v4442 = vpack.c.bf16 %v4374, %v4374
    %v4443 = vpack.c.bf16 %v4375, %v4375
    %v4444 = vpack.c.bf16 %v4376, %v4376
    %v4445 = vld [vmem:[#allocation23] sm:$0x3]
    %v4447 = vlaneseq
    %v4448 = vshrl.u32 %v4447, 7
    %v4449 = vsub.s32 0, %v4448
    %v4450 = vrot.slane %v4445, %v4449
    %v4451 = vlaneseq
    %v4452 = vshrl.u32 %v4451, 7
    %v4453 = vsub.s32 1, %v4452
    %v4454 = vrot.slane %v4445, %v4453
    %v4521 = vunpack.c.l.b16 %v4377
    %v4522 = vunpack.c.h.b16 %v4377
    %v4523 = vunpack.c.l.b16 %v4378
    %v4524 = vunpack.c.h.b16 %v4378
    %v4525 = vunpack.c.l.b16 %v4379
    %v4526 = vunpack.c.h.b16 %v4379
    %v4527 = vunpack.c.l.b16 %v4380
    %v4528 = vunpack.c.h.b16 %v4380
    %v4529 = vunpack.c.l.b16 %v4381
    %v4530 = vunpack.c.h.b16 %v4381
    %v4531 = vunpack.c.l.b16 %v4382
    %v4532 = vunpack.c.h.b16 %v4382
    %v4533 = vunpack.c.l.b16 %v4383
    %v4534 = vunpack.c.h.b16 %v4383
    %v4535 = vunpack.c.l.b16 %v4384
    %v4536 = vunpack.c.h.b16 %v4384
    %v4537 = vunpack.c.l.b16 %v4385
    %v4538 = vunpack.c.h.b16 %v4385
    %v4539 = vunpack.c.l.b16 %v4386
    %v4540 = vunpack.c.h.b16 %v4386
    %v4541 = vunpack.c.l.b16 %v4387
    %v4542 = vunpack.c.h.b16 %v4387
    %v4543 = vunpack.c.l.b16 %v4388
    %v4544 = vunpack.c.h.b16 %v4388
    %v4545 = vunpack.c.l.b16 %v4389
    %v4546 = vunpack.c.h.b16 %v4389
    %v4547 = vunpack.c.l.b16 %v4390
    %v4548 = vunpack.c.h.b16 %v4390
    %v4549 = vunpack.c.l.b16 %v4391
    %v4550 = vunpack.c.h.b16 %v4391
    %v4551 = vunpack.c.l.b16 %v4392
    %v4552 = vunpack.c.h.b16 %v4392
    %v4553 = vunpack.c.l.b16 %v4393
    %v4554 = vunpack.c.h.b16 %v4393
    %v4555 = vunpack.c.l.b16 %v4394
    %v4556 = vunpack.c.h.b16 %v4394
    %v4557 = vunpack.c.l.b16 %v4395
    %v4558 = vunpack.c.h.b16 %v4395
    %v4559 = vunpack.c.l.b16 %v4396
    %v4560 = vunpack.c.h.b16 %v4396
    %v4561 = vunpack.c.l.b16 %v4397
    %v4562 = vunpack.c.h.b16 %v4397
    %v4563 = vunpack.c.l.b16 %v4398
    %v4564 = vunpack.c.h.b16 %v4398
    %v4565 = vunpack.c.l.b16 %v4399
    %v4566 = vunpack.c.h.b16 %v4399
    %v4567 = vunpack.c.l.b16 %v4400
    %v4568 = vunpack.c.h.b16 %v4400
    %v4569 = vunpack.c.l.b16 %v4401
    %v4570 = vunpack.c.h.b16 %v4401
    %v4571 = vunpack.c.l.b16 %v4402
    %v4572 = vunpack.c.h.b16 %v4402
    %v4573 = vunpack.c.l.b16 %v4403
    %v4574 = vunpack.c.h.b16 %v4403
    %v4575 = vunpack.c.l.b16 %v4404
    %v4576 = vunpack.c.h.b16 %v4404
    %v4577 = vunpack.c.l.b16 %v4405
    %v4578 = vunpack.c.h.b16 %v4405
    %v4579 = vunpack.c.l.b16 %v4406
    %v4580 = vunpack.c.h.b16 %v4406
    %v4581 = vunpack.c.l.b16 %v4407
    %v4582 = vunpack.c.h.b16 %v4407
    %v4583 = vunpack.c.l.b16 %v4408
    %v4584 = vunpack.c.h.b16 %v4408
    %v4585 = vunpack.c.l.b16 %v4409
    %v4586 = vunpack.c.h.b16 %v4409
    %v4587 = vunpack.c.l.b16 %v4410
    %v4588 = vunpack.c.h.b16 %v4410
    %v4589 = vunpack.c.l.b16 %v4411
    %v4590 = vunpack.c.h.b16 %v4411
    %v4591 = vunpack.c.l.b16 %v4412
    %v4592 = vunpack.c.h.b16 %v4412
    %v4593 = vunpack.c.l.b16 %v4413
    %v4594 = vunpack.c.h.b16 %v4413
    %v4595 = vunpack.c.l.b16 %v4414
    %v4596 = vunpack.c.h.b16 %v4414
    %v4597 = vunpack.c.l.b16 %v4415
    %v4598 = vunpack.c.h.b16 %v4415
    %v4599 = vunpack.c.l.b16 %v4416
    %v4600 = vunpack.c.h.b16 %v4416
    %v4601 = vunpack.c.l.b16 %v4417
    %v4602 = vunpack.c.h.b16 %v4417
    %v4603 = vunpack.c.l.b16 %v4418
    %v4604 = vunpack.c.h.b16 %v4418
    %v4605 = vunpack.c.l.b16 %v4419
    %v4606 = vunpack.c.h.b16 %v4419
    %v4607 = vunpack.c.l.b16 %v4420
    %v4608 = vunpack.c.h.b16 %v4420
    %v4609 = vunpack.c.l.b16 %v4421
    %v4610 = vunpack.c.h.b16 %v4421
    %v4611 = vunpack.c.l.b16 %v4422
    %v4612 = vunpack.c.h.b16 %v4422
    %v4613 = vunpack.c.l.b16 %v4423
    %v4614 = vunpack.c.h.b16 %v4423
    %v4615 = vunpack.c.l.b16 %v4424
    %v4616 = vunpack.c.h.b16 %v4424
    %v4617 = vunpack.c.l.b16 %v4425
    %v4618 = vunpack.c.h.b16 %v4425
    %v4619 = vunpack.c.l.b16 %v4426
    %v4620 = vunpack.c.h.b16 %v4426
    %v4621 = vunpack.c.l.b16 %v4427
    %v4622 = vunpack.c.h.b16 %v4427
    %v4623 = vunpack.c.l.b16 %v4428
    %v4624 = vunpack.c.h.b16 %v4428
    %v4625 = vunpack.c.l.b16 %v4429
    %v4626 = vunpack.c.h.b16 %v4429
    %v4627 = vunpack.c.l.b16 %v4430
    %v4628 = vunpack.c.h.b16 %v4430
    %v4629 = vunpack.c.l.b16 %v4431
    %v4630 = vunpack.c.h.b16 %v4431
    %v4631 = vunpack.c.l.b16 %v4432
    %v4632 = vunpack.c.h.b16 %v4432
    %v4633 = vunpack.c.l.b16 %v4433
    %v4634 = vunpack.c.h.b16 %v4433
    %v4635 = vunpack.c.l.b16 %v4434
    %v4636 = vunpack.c.h.b16 %v4434
    %v4637 = vunpack.c.l.b16 %v4435
    %v4638 = vunpack.c.h.b16 %v4435
    %v4639 = vunpack.c.l.b16 %v4436
    %v4640 = vunpack.c.h.b16 %v4436
    %v4641 = vunpack.c.l.b16 %v4437
    %v4642 = vunpack.c.h.b16 %v4437
    %v4643 = vunpack.c.l.b16 %v4438
    %v4644 = vunpack.c.h.b16 %v4438
    %v4645 = vunpack.c.l.b16 %v4439
    %v4646 = vunpack.c.h.b16 %v4439
    %v4647 = vunpack.c.l.b16 %v4440
    %v4648 = vunpack.c.h.b16 %v4440
    %v4649 = vpack.c.b16 %v4523, %v4521
    %v4650 = vpack.c.b16 %v4524, %v4522
    %v4651 = vpack.c.b16 %v4527, %v4525
    %v4652 = vpack.c.b16 %v4528, %v4526
    %v4653 = vpack.c.b16 %v4531, %v4529
    %v4654 = vpack.c.b16 %v4532, %v4530
    %v4655 = vpack.c.b16 %v4535, %v4533
    %v4656 = vpack.c.b16 %v4536, %v4534
    %v4657 = vpack.c.b16 %v4539, %v4537
    %v4658 = vpack.c.b16 %v4540, %v4538
    %v4659 = vpack.c.b16 %v4543, %v4541
    %v4660 = vpack.c.b16 %v4544, %v4542
    %v4661 = vpack.c.b16 %v4547, %v4545
    %v4662 = vpack.c.b16 %v4548, %v4546
    %v4663 = vpack.c.b16 %v4551, %v4549
    %v4664 = vpack.c.b16 %v4552, %v4550
    %v4665 = vpack.c.b16 %v4555, %v4553
    %v4666 = vpack.c.b16 %v4556, %v4554
    %v4667 = vpack.c.b16 %v4559, %v4557
    %v4668 = vpack.c.b16 %v4560, %v4558
    %v4669 = vpack.c.b16 %v4563, %v4561
    %v4670 = vpack.c.b16 %v4564, %v4562
    %v4671 = vpack.c.b16 %v4567, %v4565
    %v4672 = vpack.c.b16 %v4568, %v4566
    %v4673 = vpack.c.b16 %v4571, %v4569
    %v4674 = vpack.c.b16 %v4572, %v4570
    %v4675 = vpack.c.b16 %v4575, %v4573
    %v4676 = vpack.c.b16 %v4576, %v4574
    %v4677 = vpack.c.b16 %v4579, %v4577
    %v4678 = vpack.c.b16 %v4580, %v4578
    %v4679 = vpack.c.b16 %v4583, %v4581
    %v4680 = vpack.c.b16 %v4584, %v4582
    %v4681 = vpack.c.b16 %v4587, %v4585
    %v4682 = vpack.c.b16 %v4588, %v4586
    %v4683 = vpack.c.b16 %v4591, %v4589
    %v4684 = vpack.c.b16 %v4592, %v4590
    %v4685 = vpack.c.b16 %v4595, %v4593
    %v4686 = vpack.c.b16 %v4596, %v4594
    %v4687 = vpack.c.b16 %v4599, %v4597
    %v4688 = vpack.c.b16 %v4600, %v4598
    %v4689 = vpack.c.b16 %v4603, %v4601
    %v4690 = vpack.c.b16 %v4604, %v4602
    %v4691 = vpack.c.b16 %v4607, %v4605
    %v4692 = vpack.c.b16 %v4608, %v4606
    %v4693 = vpack.c.b16 %v4611, %v4609
    %v4694 = vpack.c.b16 %v4612, %v4610
    %v4695 = vpack.c.b16 %v4615, %v4613
    %v4696 = vpack.c.b16 %v4616, %v4614
    %v4697 = vpack.c.b16 %v4619, %v4617
    %v4698 = vpack.c.b16 %v4620, %v4618
    %v4699 = vpack.c.b16 %v4623, %v4621
    %v4700 = vpack.c.b16 %v4624, %v4622
    %v4701 = vpack.c.b16 %v4627, %v4625
    %v4702 = vpack.c.b16 %v4628, %v4626
    %v4703 = vpack.c.b16 %v4631, %v4629
    %v4704 = vpack.c.b16 %v4632, %v4630
    %v4705 = vpack.c.b16 %v4635, %v4633
    %v4706 = vpack.c.b16 %v4636, %v4634
    %v4707 = vpack.c.b16 %v4639, %v4637
    %v4708 = vpack.c.b16 %v4640, %v4638
    %v4709 = vpack.c.b16 %v4643, %v4641
    %v4710 = vpack.c.b16 %v4644, %v4642
    %v4711 = vpack.c.b16 %v4647, %v4645
    %v4712 = vpack.c.b16 %v4648, %v4646
    %4777 = vmatprep.subr.bf16.mxu0 %v4650
    %4778 = vmatpush1.bf16.msra.mxu0 %v4649
    %4779 = vmatprep.subr.bf16.mxu0 %v4652
    %4780 = vmatpush1.bf16.msra.mxu0 %v4651
    %4781 = vmatprep.subr.bf16.mxu0 %v4654
    %4782 = vmatpush1.bf16.msra.mxu0 %v4653
    %4783 = vmatprep.subr.bf16.mxu0 %v4656
    %4784 = vmatpush1.bf16.msra.mxu0 %v4655
    %4785 = vmatprep.subr.bf16.mxu0 %v4658
    %4786 = vmatpush1.bf16.msra.mxu0 %v4657
    %4787 = vmatprep.subr.bf16.mxu0 %v4660
    %4788 = vmatpush1.bf16.msra.mxu0 %v4659
    %4789 = vmatprep.subr.bf16.mxu0 %v4662
    %4790 = vmatpush1.bf16.msra.mxu0 %v4661
    %4791 = vmatprep.subr.bf16.mxu0 %v4664
    %4792 = vmatpush1.bf16.msra.mxu0 %v4663
    %4793 = vmatprep.subr.bf16.mxu0 %v4666
    %4794 = vmatpush1.bf16.msra.mxu0 %v4665
    %4795 = vmatprep.subr.bf16.mxu0 %v4668
    %4796 = vmatpush1.bf16.msra.mxu0 %v4667
    %4797 = vmatprep.subr.bf16.mxu0 %v4670
    %4798 = vmatpush1.bf16.msra.mxu0 %v4669
    %4799 = vmatprep.subr.bf16.mxu0 %v4672
    %4800 = vmatpush1.bf16.msra.mxu0 %v4671
    %4801 = vmatprep.subr.bf16.mxu0 %v4674
    %4802 = vmatpush1.bf16.msra.mxu0 %v4673
    %4803 = vmatprep.subr.bf16.mxu0 %v4676
    %4804 = vmatpush1.bf16.msra.mxu0 %v4675
    %4805 = vmatprep.subr.bf16.mxu0 %v4678
    %4806 = vmatpush1.bf16.msra.mxu0 %v4677
    %4807 = vmatprep.subr.bf16.mxu0 %v4680
    %4808 = vmatpush1.bf16.msra.mxu0 %v4679
    %4809 = vmatprep.mubr.bf16.mxu0 %v4442
    %4810 = vmatmul.mubr.bf16.gmra.mrb[0].mxu0 %v4441
    %v4811 = vpop.f32.mrb[0].mxu0
    %v4812 = vadd.f32 %v4450, %v4811
    %v4813 = vpop.f32.mrb[0].mxu0
    %v4814 = vadd.f32 %v4454, %v4813
    %v4815 = vpop.f32.mrb[0].mxu0
    %v4816 = vpop.f32.mrb[0].mxu0
    %4817 = vdwg.mxu0
    %4818 = vmatprep.subr.bf16.mxu0 %v4682
    %4819 = vmatpush1.bf16.msra.mxu0 %v4681
    %4820 = vmatprep.subr.bf16.mxu0 %v4684
    %4821 = vmatpush1.bf16.msra.mxu0 %v4683
    %4822 = vmatprep.subr.bf16.mxu0 %v4686
    %4823 = vmatpush1.bf16.msra.mxu0 %v4685
    %4824 = vmatprep.subr.bf16.mxu0 %v4688
    %4825 = vmatpush1.bf16.msra.mxu0 %v4687
    %4826 = vmatprep.subr.bf16.mxu0 %v4690
    %4827 = vmatpush1.bf16.msra.mxu0 %v4689
    %4828 = vmatprep.subr.bf16.mxu0 %v4692
    %4829 = vmatpush1.bf16.msra.mxu0 %v4691
    %4830 = vmatprep.subr.bf16.mxu0 %v4694
    %4831 = vmatpush1.bf16.msra.mxu0 %v4693
    %4832 = vmatprep.subr.bf16.mxu0 %v4696
    %4833 = vmatpush1.bf16.msra.mxu0 %v4695
    %4834 = vmatprep.subr.bf16.mxu0 %v4698
    %4835 = vmatpush1.bf16.msra.mxu0 %v4697
    %4836 = vmatprep.subr.bf16.mxu0 %v4700
    %4837 = vmatpush1.bf16.msra.mxu0 %v4699
    %4838 = vmatprep.subr.bf16.mxu0 %v4702
    %4839 = vmatpush1.bf16.msra.mxu0 %v4701
    %4840 = vmatprep.subr.bf16.mxu0 %v4704
    %4841 = vmatpush1.bf16.msra.mxu0 %v4703
    %4842 = vmatprep.subr.bf16.mxu0 %v4706
    %4843 = vmatpush1.bf16.msra.mxu0 %v4705
    %4844 = vmatprep.subr.bf16.mxu0 %v4708
    %4845 = vmatpush1.bf16.msra.mxu0 %v4707
    %4846 = vmatprep.subr.bf16.mxu0 %v4710
    %4847 = vmatpush1.bf16.msra.mxu0 %v4709
    %4848 = vmatprep.subr.bf16.mxu0 %v4712
    %4849 = vmatpush1.bf16.msra.mxu0 %v4711
    %4850 = vmatprep.mubr.bf16.mxu0 %v4444
    %4851 = vmatmul.mubr.bf16.gmra.mrb[0].mxu0 %v4443
    %v4852 = vpop.f32.mrb[0].mxu0
    %v4853 = vadd.f32 %v4812, %v4852
    %v4854 = vpop.f32.mrb[0].mxu0
    %v4855 = vadd.f32 %v4814, %v4854
    %v4856 = vpop.f32.mrb[0].mxu0
    %v4857 = vpop.f32.mrb[0].mxu0
    %4858 = vdwg.mxu0
    %v4859 = vmul.f32 %v4853, 0.2
    %v4860 = vmul.f32 %v4855, 0.2
    %v4861 = vmax.f32 %v4853, %v4859
    %v4862 = vmax.f32 %v4855, %v4860
    %v4863 = vld [vmem:[#allocation25] sm:$0x3]
    %v4865 = vlaneseq
    %v4866 = vshrl.u32 %v4865, 7
    %v4867 = vsub.s32 0, %v4866
    %v4868 = vrot.slane %v4863, %v4867
    %v4869 = vlaneseq
    %v4870 = vshrl.u32 %v4869, 7
    %v4871 = vsub.s32 1, %v4870
    %v4872 = vrot.slane %v4863, %v4871
    %v4875 = vmul.f32 %v4861, %v4868
    %v4876 = vmul.f32 %v4862, %v4872
    %v4877 = vadd.f32 %v4875, %v4876
    %4878 = vadd.xlane.f32.xlu0 %v4877
    %v4879 = vpop.xlane.xlu0 %4878
    %v4880 = vld [vmem:[#allocation2] sm:$0x1]
    %v4882 = vlaneseq
    %v4883 = vshrl.u32 %v4882, 7
    %v4884 = vsub.s32 0, %v4883
    %v4885 = vrot.slane %v4880, %v4884
    %v4887 = vadd.f32 %v4879, %v4885
    %v4888 = vlaneseq
    %v4889 = vand.u32 %v4888, 127
    %vm4890 = vcmp.eq.s32.totalorder %v4889, 32
    %4892 = vset.pattern.permute.xlu0 0
    %4893 = vperm.xlu0 %4892, %v4887
    %v4894 = vpop.permute.xlu0 %4893
    %v4896 = vsel %vm4890, %v4894, %v4067
    %4897 = vst [vmem:[%s23] sm:$0xff] %v4896
    // Predicated region
    $region154: #{wgan_div_forward.1} parent=1 // pred_check
      _
    $region155: #{wgan_div_forward.1} parent=1 // pred_check_branch
      %4899 = sbr.rel (0) target = $region157
    $region156: #{wgan_div_forward.1} parent=1 // pred_region
      _
    $region157: #{wgan_div_forward.1} parent=1 // pred_fallthru
      _
    // Predicated region
    $region158: #{wgan_div_forward.1} parent=1 // pred_check
      _
    $region159: #{wgan_div_forward.1} parent=1 // pred_check_branch
      %4901 = sbr.rel (0) target = $region161
    $region160: #{wgan_div_forward.1} parent=1 // pred_region
      _
    $region161: #{wgan_div_forward.1} parent=1 // pred_fallthru
      _
    %4902 = vsyncpa [#allocation4], 1
    %4903 = vsyncpa [#allocation6], 1
    %4904 = vsyncpa [#allocation9], 1
    %4905 = vsyncpa [#allocation12], 1
    %4906 = vsyncpa [#allocation15], 1
    %4907 = vsyncpa [#allocation18], 1
    %4908 = vsyncpa [#allocation21], 1
    %4909 = vsyncpa [#allocation24], 1

</llo_original>
